<compile_context>
chip_gen: v6e
topology: v6e:2x2x1
jax: 0.10.0
libtpu: 0.0.40
codegen_flags: <defaults>
</compile_context>

<pallas_src>
import jax
import jax.numpy as jnp
from jax import lax
from jax.experimental import pallas as pl
from jax.experimental.pallas import tpu as pltpu  # noqa: F401  (kept for completeness)


# ---------------------------------------------------------------------------
# Fused forward kernel
# ---------------------------------------------------------------------------

def _make_fused_forward_kernel(T, H, n_layers):
    H2, H4, H8 = 2 * H, 4 * H, 8 * H

    def bilstm_layer(x_seq, wih_bf, whh_bf, bias, dir_mask, half_mask):
        # Batched input projection for all timesteps & both directions: one bf16 MXU
        # matmul with f32 accumulation.
        xw = jnp.dot(x_seq.astype(jnp.bfloat16), wih_bf,
                     preferred_element_type=jnp.float32) + bias              # (T, 8H) f32

        # Direction select hoisted out of the recurrence (off the h/c critical path):
        # fwd gate columns read xw[t], bwd gate columns read xw[T-1-t].
        gate_in = [jnp.where(dir_mask, xw[t:t + 1, :], xw[T - 1 - t:T - t, :])
                   for t in range(T)]

        h = jnp.zeros((1, H2), jnp.float32)   # [h_fwd | h_bwd]  (loop-carried vregs)
        c = jnp.zeros((1, H2), jnp.float32)
        h_steps = []
        for t in range(T):                    # fully unrolled: T is compile-time fixed
            gates = gate_in[t] + jnp.dot(h.astype(jnp.bfloat16), whh_bf,
                                         preferred_element_type=jnp.float32)  # (1, 8H)
            # gate-major, direction-minor layout: [i_f i_b | f_f f_b | g_f g_b | o_f o_b]
            if_act = jax.nn.sigmoid(gates[:, 0:H4])   # i & f gates: one 128-lane-aligned op
            i_g = if_act[:, 0:H2]
            f_g = if_act[:, H2:H4]
            g_g = jnp.tanh(gates[:, H4:H4 + H2])
            o_g = jax.nn.sigmoid(gates[:, H4 + H2:H8])
            c = f_g * c + i_g * g_g
            h = o_g * jnp.tanh(c)
            h_steps.append(h)

        # Bidirectional output re-assembly WITHOUT lane-granular slicing:
        #   Hcat[p] = [h_fwd(p)     | h_bwd at fused step p (= time T-1-p)]
        #   Hrev[p] = [h_fwd(T-1-p) | h_bwd(p)]
        #   out[p]  = [h_fwd(p)     | h_bwd(p)]   -> one full-width lane select.
        Hcat = jnp.concatenate(h_steps, axis=0)          # (T, 2H)
        Hrev = jnp.concatenate(h_steps[::-1], axis=0)    # (T, 2H)  (trace-time reorder)
        return jnp.where(half_mask, Hcat, Hrev)          # (T, 2H)

    def kernel(*refs):
        x_ref = refs[0]
        lstm_refs = refs[1:1 + 3 * n_layers]
        (w1a_ref, w1b_ref, fb1_ref, w2_ref, fb2_ref,
         w3_ref, fb3_ref) = refs[1 + 3 * n_layers:1 + 3 * n_layers + 7]
        o_ref = refs[-1]

        # Forward-direction column mask for the gate-major/direction-minor packing
        # (iota + compares only; built once).
        lane8 = lax.broadcasted_iota(jnp.int32, (1, H8), 1)
        dir_mask = jnp.zeros((1, H8), jnp.bool_)
        for g in range(4):
            dir_mask = jnp.logical_or(
                dir_mask, jnp.logical_and(lane8 >= g * H2, lane8 < g * H2 + H))
        # Fwd-half lane mask of a (*, 2H) bidirectional row.
        lane2 = lax.broadcasted_iota(jnp.int32, (1, H2), 1)
        half_mask = lane2 < H

        out = x_ref[...]
        for l in range(n_layers):
            out = bilstm_layer(out, lstm_refs[3 * l][...], lstm_refs[3 * l + 1][...],
                               lstm_refs[3 * l + 2][...], dir_mask, half_mask)
            # TODO(synk): inter-layer LSTM dropout omitted (inference semantics).

        # ---- Pair-feature MLP, fully batched over all T*T pairs --------------------
        # Linear(4H,128) folded through linearity: h1[i*T+j] = relu(out[i]@W1a + out[j]@W1b + b1),
        # so the (T*T, 4H) pair-feature matrix is never materialized.
        out_bf = out.astype(jnp.bfloat16)
        A = jnp.dot(out_bf, w1a_ref[...], preferred_element_type=jnp.float32)            # (T, 128)
        Bb = jnp.dot(out_bf, w1b_ref[...], preferred_element_type=jnp.float32) + fb1_ref[...]
        # (T*T, 128) H1 tile assembled from T sublane-stacked (T, 128) blocks.
        h1 = jnp.concatenate(
            [jnp.maximum(A[i:i + 1, :] + Bb, 0.0) for i in range(T)], axis=0)             # (T*T, 128)
        # TODO(synk): fc dropout layers omitted (identity at inference).
        h2 = jnp.maximum(
            jnp.dot(h1.astype(jnp.bfloat16), w2_ref[...],
                    preferred_element_type=jnp.float32) + fb2_ref[...], 0.0)              # (T*T, 64)
        # Final Linear(64,1) as one K-contraction -> lane-dense (1, T*T) score row.
        scores = lax.dot_general(w3_ref[...], h2, (((1,), (1,)), ((), ())),
                                 preferred_element_type=jnp.float32) + fb3_ref[...]       # (1, T*T)
        o_ref[...] = scores

    return kernel


def _full_spec(a):
    return pl.BlockSpec(a.shape, lambda i: (0,) * a.ndim)


def fused_forward(x, lstm_params, fc_params):
    """x: (T, D_in) float32 sequence for batch element 0; returns (T, T) scores."""
    T = x.shape[0]
    H = lstm_params[0][1].shape[0] // 2      # W_hh_bd is (2H, 8H)
    n_layers = len(lstm_params)
    args = (x,) + tuple(w for layer in lstm_params for w in layer) + tuple(fc_params)
    kernel = _make_fused_forward_kernel(T, H, n_layers)
    flat = pl.pallas_call(
        kernel,
        out_shape=jax.ShapeDtypeStruct((1, T * T), jnp.float32),
        grid=(1,),
        in_specs=[_full_spec(a) for a in args],
        out_specs=pl.BlockSpec((1, T * T), lambda i: (0, 0)),
    )(*args)
    return flat.reshape(T, T)


# ---------------------------------------------------------------------------
# Parameter packing + initialization + forward
# ---------------------------------------------------------------------------

def _pack_bilstm_layer(wih_f, whh_f, b_f, wih_b, whh_b, b_b, H):
    """Pack per-direction weights ([in,4H]/[H,4H]/[4H], gate order i,f,g,o) into the
    fused gate-major / direction-minor layout used by the kernel.  Matmul weights are
    stored in bf16 (f32 accumulation in-kernel); biases stay f32."""
    def gate(w, g):
        return w[:, g * H:(g + 1) * H]

    wih = jnp.concatenate(
        [blk for g in range(4) for blk in (gate(wih_f, g), gate(wih_b, g))], axis=1)
    Z = jnp.zeros((H, H), jnp.float32)
    top = jnp.concatenate([blk for g in range(4) for blk in (gate(whh_f, g), Z)], axis=1)
    bot = jnp.concatenate([blk for g in range(4) for blk in (Z, gate(whh_b, g))], axis=1)
    whh = jnp.concatenate([top, bot], axis=0)            # (2H, 8H) block-diagonal
    b = jnp.concatenate(
        [blk for g in range(4)
         for blk in (b_f[g * H:(g + 1) * H], b_b[g * H:(g + 1) * H])])[None, :]   # (1, 8H)
    return (wih.astype(jnp.bfloat16), whh.astype(jnp.bfloat16), b)


def init_params(key, n_word_embed, d_word_embed, d_hidden, n_layers,
                d_pretrained_embed):
    """Deterministic synthetic initialization (shapes match nn.Module.__init__)."""
    d_lstm_input = d_word_embed + d_pretrained_embed     # ignore_pos=True
    keys = iter(jax.random.split(key, 64))

    def u(shape, scale=0.1):
        return jax.random.uniform(next(keys), shape, jnp.float32, -scale, scale)

    H = d_hidden
    params = {}
    params["word_embed"] = jax.random.normal(
        next(keys), (n_word_embed, d_word_embed), jnp.float32)

    lstm = []
    din = d_lstm_input
    for _ in range(n_layers):
        wih_f, whh_f, b_f = u((din, 4 * H)), u((H, 4 * H)), u((4 * H,))
        wih_b, whh_b, b_b = u((din, 4 * H)), u((H, 4 * H)), u((4 * H,))
        lstm.append(_pack_bilstm_layer(wih_f, whh_f, b_f, wih_b, whh_b, b_b, H))
        din = 2 * H
    params["lstm"] = lstm

    # fc: Linear(4H,128) -> ReLU -> Linear(128,64) -> ReLU -> Linear(64,1)
    w1 = u((4 * H, 128))
    params["fc"] = (
        w1[:2 * H, :].astype(jnp.bfloat16),   # W1a: acts on out[i] (left half of pair feature)
        w1[2 * H:, :].astype(jnp.bfloat16),   # W1b: acts on out[j] (right half)
        u((1, 128)),                          # b1
        u((128, 64)).astype(jnp.bfloat16),    # W2
        u((1, 64)),                           # b2
        u((1, 64)),                           # W3 as an f32 row vector
        u((1, 1)),                            # b3
    )
    return params


def model_forward(params, X, P, w2v):
    del P  # ignore_pos=True -> pos_embed branch unused
    word = params["word_embed"][X]                              # (B, T, dW) gather (JAX glue)
    inp = jnp.concatenate([word, w2v], axis=-1).astype(jnp.float32)
    x = inp[0]                                                  # PyTorch consumes out[0] only
    return fused_forward(x, params["lstm"], params["fc"])       # (T, T)


# ---------------------------------------------------------------------------

if __name__ == "__main__":
    # Small, module-consistent shapes.
    n_word_embed, d_word_embed = 50, 32
    n_pos_embed, d_pos_embed = 20, 16
    d_hidden, n_layers = 32, 2
    d_pretrained_embed = 300
    B, T = 2, 8

    key = jax.random.PRNGKey(0)
    kx, kp, kw, kparam = jax.random.split(key, 4)
    X = jax.random.randint(kx, (B, T), 0, n_word_embed, dtype=jnp.int32)
    P = jax.random.randint(kp, (B, T), 0, n_pos_embed, dtype=jnp.int32)
    w2v = jax.random.normal(kw, (B, T, d_pretrained_embed), jnp.float32)

    params = init_params(kparam, n_word_embed, d_word_embed, d_hidden,
                         n_layers, d_pretrained_embed)

    fwd = jax.jit(model_forward)
    out = jax.block_until_ready(fwd(params, X, P, w2v))

    assert out.shape == (T, T), out.shape
    assert bool(jnp.all(jnp.isfinite(out)))
    print("KERNEL_OK")
</pallas_src>

<mosaic_0001>
module attributes {stable_mosaic.version = 11 : i64} {
  func.func @kernel(%arg0: i32, %arg1: memref<8x332xf32, #tpu.memory_space<vmem>>, %arg2: memref<332x256xbf16, #tpu.memory_space<vmem>>, %arg3: memref<64x256xbf16, #tpu.memory_space<vmem>>, %arg4: memref<1x256xf32, #tpu.memory_space<vmem>>, %arg5: memref<64x256xbf16, #tpu.memory_space<vmem>>, %arg6: memref<64x256xbf16, #tpu.memory_space<vmem>>, %arg7: memref<1x256xf32, #tpu.memory_space<vmem>>, %arg8: memref<64x128xbf16, #tpu.memory_space<vmem>>, %arg9: memref<64x128xbf16, #tpu.memory_space<vmem>>, %arg10: memref<1x128xf32, #tpu.memory_space<vmem>>, %arg11: memref<128x64xbf16, #tpu.memory_space<vmem>>, %arg12: memref<1x64xf32, #tpu.memory_space<vmem>>, %arg13: memref<1x64xf32, #tpu.memory_space<vmem>>, %arg14: memref<1x1xf32, #tpu.memory_space<vmem>>, %arg15: memref<1x64xf32, #tpu.memory_space<vmem>>) attributes {dimension_semantics = [#tpu.dimension_semantics<arbitrary>], iteration_bounds = array<i64: 1>, scalar_prefetch = 0 : i64, scratch_operands = 0 : i64, tpu.core_type = #tpu.core_type<tc>, window_params = [{pipeline_mode = #tpu.pipeline_mode<synchronous>, transform_indices = @transform_0, window_bounds = array<i64: 8, 332>}, {pipeline_mode = #tpu.pipeline_mode<synchronous>, transform_indices = @transform_1, window_bounds = array<i64: 332, 256>}, {pipeline_mode = #tpu.pipeline_mode<synchronous>, transform_indices = @transform_2, window_bounds = array<i64: 64, 256>}, {pipeline_mode = #tpu.pipeline_mode<synchronous>, transform_indices = @transform_3, window_bounds = array<i64: 1, 256>}, {pipeline_mode = #tpu.pipeline_mode<synchronous>, transform_indices = @transform_4, window_bounds = array<i64: 64, 256>}, {pipeline_mode = #tpu.pipeline_mode<synchronous>, transform_indices = @transform_5, window_bounds = array<i64: 64, 256>}, {pipeline_mode = #tpu.pipeline_mode<synchronous>, transform_indices = @transform_6, window_bounds = array<i64: 1, 256>}, {pipeline_mode = #tpu.pipeline_mode<synchronous>, transform_indices = @transform_7, window_bounds = array<i64: 64, 128>}, {pipeline_mode = #tpu.pipeline_mode<synchronous>, transform_indices = @transform_8, window_bounds = array<i64: 64, 128>}, {pipeline_mode = #tpu.pipeline_mode<synchronous>, transform_indices = @transform_9, window_bounds = array<i64: 1, 128>}, {pipeline_mode = #tpu.pipeline_mode<synchronous>, transform_indices = @transform_10, window_bounds = array<i64: 128, 64>}, {pipeline_mode = #tpu.pipeline_mode<synchronous>, transform_indices = @transform_11, window_bounds = array<i64: 1, 64>}, {pipeline_mode = #tpu.pipeline_mode<synchronous>, transform_indices = @transform_12, window_bounds = array<i64: 1, 64>}, {pipeline_mode = #tpu.pipeline_mode<synchronous>, transform_indices = @transform_13, window_bounds = array<i64: 1, 1>}, {pipeline_mode = #tpu.pipeline_mode<synchronous>, transform_indices = @transform_14, window_bounds = array<i64: 1, 64>}]} {
    %0 = tpu.iota {dimensions = array<i32: 1>} : vector<1x256xi32>
    %false = arith.constant false
    %1 = vector.broadcast %false : i1 to vector<1x256xi1>
    %c0_i32 = arith.constant 0 : i32
    %2 = vector.broadcast %c0_i32 : i32 to vector<1x256xi32>
    %3 = arith.cmpi sge, %0, %2 : vector<1x256xi32>
    %c32_i32 = arith.constant 32 : i32
    %4 = vector.broadcast %c32_i32 : i32 to vector<1x256xi32>
    %5 = arith.cmpi slt, %0, %4 : vector<1x256xi32>
    %6 = arith.andi %3, %5 : vector<1x256xi1>
    %7 = arith.ori %1, %6 : vector<1x256xi1>
    %c64_i32 = arith.constant 64 : i32
    %8 = vector.broadcast %c64_i32 : i32 to vector<1x256xi32>
    %9 = arith.cmpi sge, %0, %8 : vector<1x256xi32>
    %c96_i32 = arith.constant 96 : i32
    %10 = vector.broadcast %c96_i32 : i32 to vector<1x256xi32>
    %11 = arith.cmpi slt, %0, %10 : vector<1x256xi32>
    %12 = arith.andi %9, %11 : vector<1x256xi1>
    %13 = arith.ori %7, %12 : vector<1x256xi1>
    %c128_i32 = arith.constant 128 : i32
    %14 = vector.broadcast %c128_i32 : i32 to vector<1x256xi32>
    %15 = arith.cmpi sge, %0, %14 : vector<1x256xi32>
    %c160_i32 = arith.constant 160 : i32
    %16 = vector.broadcast %c160_i32 : i32 to vector<1x256xi32>
    %17 = arith.cmpi slt, %0, %16 : vector<1x256xi32>
    %18 = arith.andi %15, %17 : vector<1x256xi1>
    %19 = arith.ori %13, %18 : vector<1x256xi1>
    %c192_i32 = arith.constant 192 : i32
    %20 = vector.broadcast %c192_i32 : i32 to vector<1x256xi32>
    %21 = arith.cmpi sge, %0, %20 : vector<1x256xi32>
    %c224_i32 = arith.constant 224 : i32
    %22 = vector.broadcast %c224_i32 : i32 to vector<1x256xi32>
    %23 = arith.cmpi slt, %0, %22 : vector<1x256xi32>
    %24 = arith.andi %21, %23 : vector<1x256xi1>
    %25 = arith.ori %19, %24 : vector<1x256xi1>
    %26 = tpu.iota {dimensions = array<i32: 1>} : vector<1x64xi32>
    %c32_i32_0 = arith.constant 32 : i32
    %27 = vector.broadcast %c32_i32_0 : i32 to vector<1x64xi32>
    %28 = arith.cmpi slt, %26, %27 : vector<1x64xi32>
    %c0 = arith.constant 0 : index
    %c0_1 = arith.constant 0 : index
    %29 = vector.load %arg1[%c0, %c0_1] : memref<8x332xf32, #tpu.memory_space<vmem>>, vector<8x332xf32>
    %c0_2 = arith.constant 0 : index
    %c0_3 = arith.constant 0 : index
    %30 = vector.load %arg2[%c0_2, %c0_3] : memref<332x256xbf16, #tpu.memory_space<vmem>>, vector<332x256xbf16>
    %c0_4 = arith.constant 0 : index
    %c0_5 = arith.constant 0 : index
    %31 = vector.load %arg3[%c0_4, %c0_5] : memref<64x256xbf16, #tpu.memory_space<vmem>>, vector<64x256xbf16>
    %c0_6 = arith.constant 0 : index
    %c0_7 = arith.constant 0 : index
    %32 = vector.load %arg4[%c0_6, %c0_7] : memref<1x256xf32, #tpu.memory_space<vmem>>, vector<1x256xf32>
    %33 = arith.truncf %29 : vector<8x332xf32> to vector<8x332xbf16>
    %cst = arith.constant dense<0.000000e+00> : vector<8x256xf32>
    %34 = tpu.matmul %33, %30, %cst {dimension_numbers = #tpu.dot_dimension_numbers<[1], [0], [0], [1], [0, 0, 1, 1], [], []>} : vector<8x332xbf16>, vector<332x256xbf16>, vector<8x256xf32> -> vector<8x256xf32>
    %35 = vector.broadcast %32 : vector<1x256xf32> to vector<8x256xf32>
    %36 = arith.addf %34, %35 : vector<8x256xf32>
    %37 = vector.extract_strided_slice %36 {offsets = [0, 0], sizes = [1, 256], strides = [1, 1]} : vector<8x256xf32> to vector<1x256xf32>
    %38 = vector.extract_strided_slice %36 {offsets = [7, 0], sizes = [1, 256], strides = [1, 1]} : vector<8x256xf32> to vector<1x256xf32>
    %39 = arith.select %25, %37, %38 : vector<1x256xi1>, vector<1x256xf32>
    %40 = vector.extract_strided_slice %36 {offsets = [1, 0], sizes = [1, 256], strides = [1, 1]} : vector<8x256xf32> to vector<1x256xf32>
    %41 = vector.extract_strided_slice %36 {offsets = [6, 0], sizes = [1, 256], strides = [1, 1]} : vector<8x256xf32> to vector<1x256xf32>
    %42 = arith.select %25, %40, %41 : vector<1x256xi1>, vector<1x256xf32>
    %43 = vector.extract_strided_slice %36 {offsets = [2, 0], sizes = [1, 256], strides = [1, 1]} : vector<8x256xf32> to vector<1x256xf32>
    %44 = vector.extract_strided_slice %36 {offsets = [5, 0], sizes = [1, 256], strides = [1, 1]} : vector<8x256xf32> to vector<1x256xf32>
    %45 = arith.select %25, %43, %44 : vector<1x256xi1>, vector<1x256xf32>
    %46 = vector.extract_strided_slice %36 {offsets = [3, 0], sizes = [1, 256], strides = [1, 1]} : vector<8x256xf32> to vector<1x256xf32>
    %47 = vector.extract_strided_slice %36 {offsets = [4, 0], sizes = [1, 256], strides = [1, 1]} : vector<8x256xf32> to vector<1x256xf32>
    %48 = arith.select %25, %46, %47 : vector<1x256xi1>, vector<1x256xf32>
    %49 = vector.extract_strided_slice %36 {offsets = [4, 0], sizes = [1, 256], strides = [1, 1]} : vector<8x256xf32> to vector<1x256xf32>
    %50 = vector.extract_strided_slice %36 {offsets = [3, 0], sizes = [1, 256], strides = [1, 1]} : vector<8x256xf32> to vector<1x256xf32>
    %51 = arith.select %25, %49, %50 : vector<1x256xi1>, vector<1x256xf32>
    %52 = vector.extract_strided_slice %36 {offsets = [5, 0], sizes = [1, 256], strides = [1, 1]} : vector<8x256xf32> to vector<1x256xf32>
    %53 = vector.extract_strided_slice %36 {offsets = [2, 0], sizes = [1, 256], strides = [1, 1]} : vector<8x256xf32> to vector<1x256xf32>
    %54 = arith.select %25, %52, %53 : vector<1x256xi1>, vector<1x256xf32>
    %55 = vector.extract_strided_slice %36 {offsets = [6, 0], sizes = [1, 256], strides = [1, 1]} : vector<8x256xf32> to vector<1x256xf32>
    %56 = vector.extract_strided_slice %36 {offsets = [1, 0], sizes = [1, 256], strides = [1, 1]} : vector<8x256xf32> to vector<1x256xf32>
    %57 = arith.select %25, %55, %56 : vector<1x256xi1>, vector<1x256xf32>
    %58 = vector.extract_strided_slice %36 {offsets = [7, 0], sizes = [1, 256], strides = [1, 1]} : vector<8x256xf32> to vector<1x256xf32>
    %59 = vector.extract_strided_slice %36 {offsets = [0, 0], sizes = [1, 256], strides = [1, 1]} : vector<8x256xf32> to vector<1x256xf32>
    %60 = arith.select %25, %58, %59 : vector<1x256xi1>, vector<1x256xf32>
    %cst_8 = arith.constant 0.000000e+00 : f32
    %61 = vector.broadcast %cst_8 : f32 to vector<1x64xf32>
    %cst_9 = arith.constant 0.000000e+00 : f32
    %62 = vector.broadcast %cst_9 : f32 to vector<1x64xf32>
    %63 = arith.truncf %61 : vector<1x64xf32> to vector<1x64xbf16>
    %cst_10 = arith.constant dense<0.000000e+00> : vector<1x256xf32>
    %64 = tpu.matmul %63, %31, %cst_10 {dimension_numbers = #tpu.dot_dimension_numbers<[1], [0], [0], [1], [0, 0, 1, 1], [], []>} : vector<1x64xbf16>, vector<64x256xbf16>, vector<1x256xf32> -> vector<1x256xf32>
    %65 = arith.addf %39, %64 : vector<1x256xf32>
    %66 = vector.extract_strided_slice %65 {offsets = [0, 0], sizes = [1, 128], strides = [1, 1]} : vector<1x256xf32> to vector<1x128xf32>
    %67 = arith.negf %66 : vector<1x128xf32>
    %68 = math.exp %67 : vector<1x128xf32>
    %cst_11 = arith.constant 1.000000e+00 : f32
    %69 = vector.broadcast %cst_11 : f32 to vector<1x128xf32>
    %70 = arith.addf %69, %68 : vector<1x128xf32>
    %71 = arith.divf %69, %70 : vector<1x128xf32>
    %72 = vector.extract_strided_slice %71 {offsets = [0, 0], sizes = [1, 64], strides = [1, 1]} : vector<1x128xf32> to vector<1x64xf32>
    %73 = vector.extract_strided_slice %71 {offsets = [0, 64], sizes = [1, 64], strides = [1, 1]} : vector<1x128xf32> to vector<1x64xf32>
    %74 = vector.extract_strided_slice %65 {offsets = [0, 128], sizes = [1, 64], strides = [1, 1]} : vector<1x256xf32> to vector<1x64xf32>
    %75 = math.tanh %74 : vector<1x64xf32>
    %76 = vector.extract_strided_slice %65 {offsets = [0, 192], sizes = [1, 64], strides = [1, 1]} : vector<1x256xf32> to vector<1x64xf32>
    %77 = arith.negf %76 : vector<1x64xf32>
    %78 = math.exp %77 : vector<1x64xf32>
    %cst_12 = arith.constant 1.000000e+00 : f32
    %79 = vector.broadcast %cst_12 : f32 to vector<1x64xf32>
    %80 = arith.addf %79, %78 : vector<1x64xf32>
    %81 = arith.divf %79, %80 : vector<1x64xf32>
    %82 = arith.mulf %73, %62 : vector<1x64xf32>
    %83 = arith.mulf %72, %75 : vector<1x64xf32>
    %84 = arith.addf %82, %83 : vector<1x64xf32>
    %85 = math.tanh %84 : vector<1x64xf32>
    %86 = arith.mulf %81, %85 : vector<1x64xf32>
    %87 = arith.truncf %86 : vector<1x64xf32> to vector<1x64xbf16>
    %cst_13 = arith.constant dense<0.000000e+00> : vector<1x256xf32>
    %88 = tpu.matmul %87, %31, %cst_13 {dimension_numbers = #tpu.dot_dimension_numbers<[1], [0], [0], [1], [0, 0, 1, 1], [], []>} : vector<1x64xbf16>, vector<64x256xbf16>, vector<1x256xf32> -> vector<1x256xf32>
    %89 = arith.addf %42, %88 : vector<1x256xf32>
    %90 = vector.extract_strided_slice %89 {offsets = [0, 0], sizes = [1, 128], strides = [1, 1]} : vector<1x256xf32> to vector<1x128xf32>
    %91 = arith.negf %90 : vector<1x128xf32>
    %92 = math.exp %91 : vector<1x128xf32>
    %cst_14 = arith.constant 1.000000e+00 : f32
    %93 = vector.broadcast %cst_14 : f32 to vector<1x128xf32>
    %94 = arith.addf %93, %92 : vector<1x128xf32>
    %95 = arith.divf %93, %94 : vector<1x128xf32>
    %96 = vector.extract_strided_slice %95 {offsets = [0, 0], sizes = [1, 64], strides = [1, 1]} : vector<1x128xf32> to vector<1x64xf32>
    %97 = vector.extract_strided_slice %95 {offsets = [0, 64], sizes = [1, 64], strides = [1, 1]} : vector<1x128xf32> to vector<1x64xf32>
    %98 = vector.extract_strided_slice %89 {offsets = [0, 128], sizes = [1, 64], strides = [1, 1]} : vector<1x256xf32> to vector<1x64xf32>
    %99 = math.tanh %98 : vector<1x64xf32>
    %100 = vector.extract_strided_slice %89 {offsets = [0, 192], sizes = [1, 64], strides = [1, 1]} : vector<1x256xf32> to vector<1x64xf32>
    %101 = arith.negf %100 : vector<1x64xf32>
    %102 = math.exp %101 : vector<1x64xf32>
    %cst_15 = arith.constant 1.000000e+00 : f32
    %103 = vector.broadcast %cst_15 : f32 to vector<1x64xf32>
    %104 = arith.addf %103, %102 : vector<1x64xf32>
    %105 = arith.divf %103, %104 : vector<1x64xf32>
    %106 = arith.mulf %97, %84 : vector<1x64xf32>
    %107 = arith.mulf %96, %99 : vector<1x64xf32>
    %108 = arith.addf %106, %107 : vector<1x64xf32>
    %109 = math.tanh %108 : vector<1x64xf32>
    %110 = arith.mulf %105, %109 : vector<1x64xf32>
    %111 = arith.truncf %110 : vector<1x64xf32> to vector<1x64xbf16>
    %cst_16 = arith.constant dense<0.000000e+00> : vector<1x256xf32>
    %112 = tpu.matmul %111, %31, %cst_16 {dimension_numbers = #tpu.dot_dimension_numbers<[1], [0], [0], [1], [0, 0, 1, 1], [], []>} : vector<1x64xbf16>, vector<64x256xbf16>, vector<1x256xf32> -> vector<1x256xf32>
    %113 = arith.addf %45, %112 : vector<1x256xf32>
    %114 = vector.extract_strided_slice %113 {offsets = [0, 0], sizes = [1, 128], strides = [1, 1]} : vector<1x256xf32> to vector<1x128xf32>
    %115 = arith.negf %114 : vector<1x128xf32>
    %116 = math.exp %115 : vector<1x128xf32>
    %cst_17 = arith.constant 1.000000e+00 : f32
    %117 = vector.broadcast %cst_17 : f32 to vector<1x128xf32>
    %118 = arith.addf %117, %116 : vector<1x128xf32>
    %119 = arith.divf %117, %118 : vector<1x128xf32>
    %120 = vector.extract_strided_slice %119 {offsets = [0, 0], sizes = [1, 64], strides = [1, 1]} : vector<1x128xf32> to vector<1x64xf32>
    %121 = vector.extract_strided_slice %119 {offsets = [0, 64], sizes = [1, 64], strides = [1, 1]} : vector<1x128xf32> to vector<1x64xf32>
    %122 = vector.extract_strided_slice %113 {offsets = [0, 128], sizes = [1, 64], strides = [1, 1]} : vector<1x256xf32> to vector<1x64xf32>
    %123 = math.tanh %122 : vector<1x64xf32>
    %124 = vector.extract_strided_slice %113 {offsets = [0, 192], sizes = [1, 64], strides = [1, 1]} : vector<1x256xf32> to vector<1x64xf32>
    %125 = arith.negf %124 : vector<1x64xf32>
    %126 = math.exp %125 : vector<1x64xf32>
    %cst_18 = arith.constant 1.000000e+00 : f32
    %127 = vector.broadcast %cst_18 : f32 to vector<1x64xf32>
    %128 = arith.addf %127, %126 : vector<1x64xf32>
    %129 = arith.divf %127, %128 : vector<1x64xf32>
    %130 = arith.mulf %121, %108 : vector<1x64xf32>
    %131 = arith.mulf %120, %123 : vector<1x64xf32>
    %132 = arith.addf %130, %131 : vector<1x64xf32>
    %133 = math.tanh %132 : vector<1x64xf32>
    %134 = arith.mulf %129, %133 : vector<1x64xf32>
    %135 = arith.truncf %134 : vector<1x64xf32> to vector<1x64xbf16>
    %cst_19 = arith.constant dense<0.000000e+00> : vector<1x256xf32>
    %136 = tpu.matmul %135, %31, %cst_19 {dimension_numbers = #tpu.dot_dimension_numbers<[1], [0], [0], [1], [0, 0, 1, 1], [], []>} : vector<1x64xbf16>, vector<64x256xbf16>, vector<1x256xf32> -> vector<1x256xf32>
    %137 = arith.addf %48, %136 : vector<1x256xf32>
    %138 = vector.extract_strided_slice %137 {offsets = [0, 0], sizes = [1, 128], strides = [1, 1]} : vector<1x256xf32> to vector<1x128xf32>
    %139 = arith.negf %138 : vector<1x128xf32>
    %140 = math.exp %139 : vector<1x128xf32>
    %cst_20 = arith.constant 1.000000e+00 : f32
    %141 = vector.broadcast %cst_20 : f32 to vector<1x128xf32>
    %142 = arith.addf %141, %140 : vector<1x128xf32>
    %143 = arith.divf %141, %142 : vector<1x128xf32>
    %144 = vector.extract_strided_slice %143 {offsets = [0, 0], sizes = [1, 64], strides = [1, 1]} : vector<1x128xf32> to vector<1x64xf32>
    %145 = vector.extract_strided_slice %143 {offsets = [0, 64], sizes = [1, 64], strides = [1, 1]} : vector<1x128xf32> to vector<1x64xf32>
    %146 = vector.extract_strided_slice %137 {offsets = [0, 128], sizes = [1, 64], strides = [1, 1]} : vector<1x256xf32> to vector<1x64xf32>
    %147 = math.tanh %146 : vector<1x64xf32>
    %148 = vector.extract_strided_slice %137 {offsets = [0, 192], sizes = [1, 64], strides = [1, 1]} : vector<1x256xf32> to vector<1x64xf32>
    %149 = arith.negf %148 : vector<1x64xf32>
    %150 = math.exp %149 : vector<1x64xf32>
    %cst_21 = arith.constant 1.000000e+00 : f32
    %151 = vector.broadcast %cst_21 : f32 to vector<1x64xf32>
    %152 = arith.addf %151, %150 : vector<1x64xf32>
    %153 = arith.divf %151, %152 : vector<1x64xf32>
    %154 = arith.mulf %145, %132 : vector<1x64xf32>
    %155 = arith.mulf %144, %147 : vector<1x64xf32>
    %156 = arith.addf %154, %155 : vector<1x64xf32>
    %157 = math.tanh %156 : vector<1x64xf32>
    %158 = arith.mulf %153, %157 : vector<1x64xf32>
    %159 = arith.truncf %158 : vector<1x64xf32> to vector<1x64xbf16>
    %cst_22 = arith.constant dense<0.000000e+00> : vector<1x256xf32>
    %160 = tpu.matmul %159, %31, %cst_22 {dimension_numbers = #tpu.dot_dimension_numbers<[1], [0], [0], [1], [0, 0, 1, 1], [], []>} : vector<1x64xbf16>, vector<64x256xbf16>, vector<1x256xf32> -> vector<1x256xf32>
    %161 = arith.addf %51, %160 : vector<1x256xf32>
    %162 = vector.extract_strided_slice %161 {offsets = [0, 0], sizes = [1, 128], strides = [1, 1]} : vector<1x256xf32> to vector<1x128xf32>
    %163 = arith.negf %162 : vector<1x128xf32>
    %164 = math.exp %163 : vector<1x128xf32>
    %cst_23 = arith.constant 1.000000e+00 : f32
    %165 = vector.broadcast %cst_23 : f32 to vector<1x128xf32>
    %166 = arith.addf %165, %164 : vector<1x128xf32>
    %167 = arith.divf %165, %166 : vector<1x128xf32>
    %168 = vector.extract_strided_slice %167 {offsets = [0, 0], sizes = [1, 64], strides = [1, 1]} : vector<1x128xf32> to vector<1x64xf32>
    %169 = vector.extract_strided_slice %167 {offsets = [0, 64], sizes = [1, 64], strides = [1, 1]} : vector<1x128xf32> to vector<1x64xf32>
    %170 = vector.extract_strided_slice %161 {offsets = [0, 128], sizes = [1, 64], strides = [1, 1]} : vector<1x256xf32> to vector<1x64xf32>
    %171 = math.tanh %170 : vector<1x64xf32>
    %172 = vector.extract_strided_slice %161 {offsets = [0, 192], sizes = [1, 64], strides = [1, 1]} : vector<1x256xf32> to vector<1x64xf32>
    %173 = arith.negf %172 : vector<1x64xf32>
    %174 = math.exp %173 : vector<1x64xf32>
    %cst_24 = arith.constant 1.000000e+00 : f32
    %175 = vector.broadcast %cst_24 : f32 to vector<1x64xf32>
    %176 = arith.addf %175, %174 : vector<1x64xf32>
    %177 = arith.divf %175, %176 : vector<1x64xf32>
    %178 = arith.mulf %169, %156 : vector<1x64xf32>
    %179 = arith.mulf %168, %171 : vector<1x64xf32>
    %180 = arith.addf %178, %179 : vector<1x64xf32>
    %181 = math.tanh %180 : vector<1x64xf32>
    %182 = arith.mulf %177, %181 : vector<1x64xf32>
    %183 = arith.truncf %182 : vector<1x64xf32> to vector<1x64xbf16>
    %cst_25 = arith.constant dense<0.000000e+00> : vector<1x256xf32>
    %184 = tpu.matmul %183, %31, %cst_25 {dimension_numbers = #tpu.dot_dimension_numbers<[1], [0], [0], [1], [0, 0, 1, 1], [], []>} : vector<1x64xbf16>, vector<64x256xbf16>, vector<1x256xf32> -> vector<1x256xf32>
    %185 = arith.addf %54, %184 : vector<1x256xf32>
    %186 = vector.extract_strided_slice %185 {offsets = [0, 0], sizes = [1, 128], strides = [1, 1]} : vector<1x256xf32> to vector<1x128xf32>
    %187 = arith.negf %186 : vector<1x128xf32>
    %188 = math.exp %187 : vector<1x128xf32>
    %cst_26 = arith.constant 1.000000e+00 : f32
    %189 = vector.broadcast %cst_26 : f32 to vector<1x128xf32>
    %190 = arith.addf %189, %188 : vector<1x128xf32>
    %191 = arith.divf %189, %190 : vector<1x128xf32>
    %192 = vector.extract_strided_slice %191 {offsets = [0, 0], sizes = [1, 64], strides = [1, 1]} : vector<1x128xf32> to vector<1x64xf32>
    %193 = vector.extract_strided_slice %191 {offsets = [0, 64], sizes = [1, 64], strides = [1, 1]} : vector<1x128xf32> to vector<1x64xf32>
    %194 = vector.extract_strided_slice %185 {offsets = [0, 128], sizes = [1, 64], strides = [1, 1]} : vector<1x256xf32> to vector<1x64xf32>
    %195 = math.tanh %194 : vector<1x64xf32>
    %196 = vector.extract_strided_slice %185 {offsets = [0, 192], sizes = [1, 64], strides = [1, 1]} : vector<1x256xf32> to vector<1x64xf32>
    %197 = arith.negf %196 : vector<1x64xf32>
    %198 = math.exp %197 : vector<1x64xf32>
    %cst_27 = arith.constant 1.000000e+00 : f32
    %199 = vector.broadcast %cst_27 : f32 to vector<1x64xf32>
    %200 = arith.addf %199, %198 : vector<1x64xf32>
    %201 = arith.divf %199, %200 : vector<1x64xf32>
    %202 = arith.mulf %193, %180 : vector<1x64xf32>
    %203 = arith.mulf %192, %195 : vector<1x64xf32>
    %204 = arith.addf %202, %203 : vector<1x64xf32>
    %205 = math.tanh %204 : vector<1x64xf32>
    %206 = arith.mulf %201, %205 : vector<1x64xf32>
    %207 = arith.truncf %206 : vector<1x64xf32> to vector<1x64xbf16>
    %cst_28 = arith.constant dense<0.000000e+00> : vector<1x256xf32>
    %208 = tpu.matmul %207, %31, %cst_28 {dimension_numbers = #tpu.dot_dimension_numbers<[1], [0], [0], [1], [0, 0, 1, 1], [], []>} : vector<1x64xbf16>, vector<64x256xbf16>, vector<1x256xf32> -> vector<1x256xf32>
    %209 = arith.addf %57, %208 : vector<1x256xf32>
    %210 = vector.extract_strided_slice %209 {offsets = [0, 0], sizes = [1, 128], strides = [1, 1]} : vector<1x256xf32> to vector<1x128xf32>
    %211 = arith.negf %210 : vector<1x128xf32>
    %212 = math.exp %211 : vector<1x128xf32>
    %cst_29 = arith.constant 1.000000e+00 : f32
    %213 = vector.broadcast %cst_29 : f32 to vector<1x128xf32>
    %214 = arith.addf %213, %212 : vector<1x128xf32>
    %215 = arith.divf %213, %214 : vector<1x128xf32>
    %216 = vector.extract_strided_slice %215 {offsets = [0, 0], sizes = [1, 64], strides = [1, 1]} : vector<1x128xf32> to vector<1x64xf32>
    %217 = vector.extract_strided_slice %215 {offsets = [0, 64], sizes = [1, 64], strides = [1, 1]} : vector<1x128xf32> to vector<1x64xf32>
    %218 = vector.extract_strided_slice %209 {offsets = [0, 128], sizes = [1, 64], strides = [1, 1]} : vector<1x256xf32> to vector<1x64xf32>
    %219 = math.tanh %218 : vector<1x64xf32>
    %220 = vector.extract_strided_slice %209 {offsets = [0, 192], sizes = [1, 64], strides = [1, 1]} : vector<1x256xf32> to vector<1x64xf32>
    %221 = arith.negf %220 : vector<1x64xf32>
    %222 = math.exp %221 : vector<1x64xf32>
    %cst_30 = arith.constant 1.000000e+00 : f32
    %223 = vector.broadcast %cst_30 : f32 to vector<1x64xf32>
    %224 = arith.addf %223, %222 : vector<1x64xf32>
    %225 = arith.divf %223, %224 : vector<1x64xf32>
    %226 = arith.mulf %217, %204 : vector<1x64xf32>
    %227 = arith.mulf %216, %219 : vector<1x64xf32>
    %228 = arith.addf %226, %227 : vector<1x64xf32>
    %229 = math.tanh %228 : vector<1x64xf32>
    %230 = arith.mulf %225, %229 : vector<1x64xf32>
    %231 = arith.truncf %230 : vector<1x64xf32> to vector<1x64xbf16>
    %cst_31 = arith.constant dense<0.000000e+00> : vector<1x256xf32>
    %232 = tpu.matmul %231, %31, %cst_31 {dimension_numbers = #tpu.dot_dimension_numbers<[1], [0], [0], [1], [0, 0, 1, 1], [], []>} : vector<1x64xbf16>, vector<64x256xbf16>, vector<1x256xf32> -> vector<1x256xf32>
    %233 = arith.addf %60, %232 : vector<1x256xf32>
    %234 = vector.extract_strided_slice %233 {offsets = [0, 0], sizes = [1, 128], strides = [1, 1]} : vector<1x256xf32> to vector<1x128xf32>
    %235 = arith.negf %234 : vector<1x128xf32>
    %236 = math.exp %235 : vector<1x128xf32>
    %cst_32 = arith.constant 1.000000e+00 : f32
    %237 = vector.broadcast %cst_32 : f32 to vector<1x128xf32>
    %238 = arith.addf %237, %236 : vector<1x128xf32>
    %239 = arith.divf %237, %238 : vector<1x128xf32>
    %240 = vector.extract_strided_slice %239 {offsets = [0, 0], sizes = [1, 64], strides = [1, 1]} : vector<1x128xf32> to vector<1x64xf32>
    %241 = vector.extract_strided_slice %239 {offsets = [0, 64], sizes = [1, 64], strides = [1, 1]} : vector<1x128xf32> to vector<1x64xf32>
    %242 = vector.extract_strided_slice %233 {offsets = [0, 128], sizes = [1, 64], strides = [1, 1]} : vector<1x256xf32> to vector<1x64xf32>
    %243 = math.tanh %242 : vector<1x64xf32>
    %244 = vector.extract_strided_slice %233 {offsets = [0, 192], sizes = [1, 64], strides = [1, 1]} : vector<1x256xf32> to vector<1x64xf32>
    %245 = arith.negf %244 : vector<1x64xf32>
    %246 = math.exp %245 : vector<1x64xf32>
    %cst_33 = arith.constant 1.000000e+00 : f32
    %247 = vector.broadcast %cst_33 : f32 to vector<1x64xf32>
    %248 = arith.addf %247, %246 : vector<1x64xf32>
    %249 = arith.divf %247, %248 : vector<1x64xf32>
    %250 = arith.mulf %241, %228 : vector<1x64xf32>
    %251 = arith.mulf %240, %243 : vector<1x64xf32>
    %252 = arith.addf %250, %251 : vector<1x64xf32>
    %253 = math.tanh %252 : vector<1x64xf32>
    %254 = arith.mulf %249, %253 : vector<1x64xf32>
    %255 = tpu.concatenate %86, %110, %134, %158, %182, %206, %230, %254 in 0 : vector<1x64xf32>, vector<1x64xf32>, vector<1x64xf32>, vector<1x64xf32>, vector<1x64xf32>, vector<1x64xf32>, vector<1x64xf32>, vector<1x64xf32> -> vector<8x64xf32>
    %256 = tpu.concatenate %254, %230, %206, %182, %158, %134, %110, %86 in 0 : vector<1x64xf32>, vector<1x64xf32>, vector<1x64xf32>, vector<1x64xf32>, vector<1x64xf32>, vector<1x64xf32>, vector<1x64xf32>, vector<1x64xf32> -> vector<8x64xf32>
    %257 = vector.shape_cast %28 : vector<1x64xi1> to vector<1x64xi1>
    %258 = vector.broadcast %257 : vector<1x64xi1> to vector<8x64xi1>
    %259 = arith.select %258, %255, %256 : vector<8x64xi1>, vector<8x64xf32>
    %c0_34 = arith.constant 0 : index
    %c0_35 = arith.constant 0 : index
    %260 = vector.load %arg5[%c0_34, %c0_35] : memref<64x256xbf16, #tpu.memory_space<vmem>>, vector<64x256xbf16>
    %c0_36 = arith.constant 0 : index
    %c0_37 = arith.constant 0 : index
    %261 = vector.load %arg6[%c0_36, %c0_37] : memref<64x256xbf16, #tpu.memory_space<vmem>>, vector<64x256xbf16>
    %c0_38 = arith.constant 0 : index
    %c0_39 = arith.constant 0 : index
    %262 = vector.load %arg7[%c0_38, %c0_39] : memref<1x256xf32, #tpu.memory_space<vmem>>, vector<1x256xf32>
    %263 = arith.truncf %259 : vector<8x64xf32> to vector<8x64xbf16>
    %cst_40 = arith.constant dense<0.000000e+00> : vector<8x256xf32>
    %264 = tpu.matmul %263, %260, %cst_40 {dimension_numbers = #tpu.dot_dimension_numbers<[1], [0], [0], [1], [0, 0, 1, 1], [], []>} : vector<8x64xbf16>, vector<64x256xbf16>, vector<8x256xf32> -> vector<8x256xf32>
    %265 = vector.broadcast %262 : vector<1x256xf32> to vector<8x256xf32>
    %266 = arith.addf %264, %265 : vector<8x256xf32>
    %267 = vector.extract_strided_slice %266 {offsets = [0, 0], sizes = [1, 256], strides = [1, 1]} : vector<8x256xf32> to vector<1x256xf32>
    %268 = vector.extract_strided_slice %266 {offsets = [7, 0], sizes = [1, 256], strides = [1, 1]} : vector<8x256xf32> to vector<1x256xf32>
    %269 = arith.select %25, %267, %268 : vector<1x256xi1>, vector<1x256xf32>
    %270 = vector.extract_strided_slice %266 {offsets = [1, 0], sizes = [1, 256], strides = [1, 1]} : vector<8x256xf32> to vector<1x256xf32>
    %271 = vector.extract_strided_slice %266 {offsets = [6, 0], sizes = [1, 256], strides = [1, 1]} : vector<8x256xf32> to vector<1x256xf32>
    %272 = arith.select %25, %270, %271 : vector<1x256xi1>, vector<1x256xf32>
    %273 = vector.extract_strided_slice %266 {offsets = [2, 0], sizes = [1, 256], strides = [1, 1]} : vector<8x256xf32> to vector<1x256xf32>
    %274 = vector.extract_strided_slice %266 {offsets = [5, 0], sizes = [1, 256], strides = [1, 1]} : vector<8x256xf32> to vector<1x256xf32>
    %275 = arith.select %25, %273, %274 : vector<1x256xi1>, vector<1x256xf32>
    %276 = vector.extract_strided_slice %266 {offsets = [3, 0], sizes = [1, 256], strides = [1, 1]} : vector<8x256xf32> to vector<1x256xf32>
    %277 = vector.extract_strided_slice %266 {offsets = [4, 0], sizes = [1, 256], strides = [1, 1]} : vector<8x256xf32> to vector<1x256xf32>
    %278 = arith.select %25, %276, %277 : vector<1x256xi1>, vector<1x256xf32>
    %279 = vector.extract_strided_slice %266 {offsets = [4, 0], sizes = [1, 256], strides = [1, 1]} : vector<8x256xf32> to vector<1x256xf32>
    %280 = vector.extract_strided_slice %266 {offsets = [3, 0], sizes = [1, 256], strides = [1, 1]} : vector<8x256xf32> to vector<1x256xf32>
    %281 = arith.select %25, %279, %280 : vector<1x256xi1>, vector<1x256xf32>
    %282 = vector.extract_strided_slice %266 {offsets = [5, 0], sizes = [1, 256], strides = [1, 1]} : vector<8x256xf32> to vector<1x256xf32>
    %283 = vector.extract_strided_slice %266 {offsets = [2, 0], sizes = [1, 256], strides = [1, 1]} : vector<8x256xf32> to vector<1x256xf32>
    %284 = arith.select %25, %282, %283 : vector<1x256xi1>, vector<1x256xf32>
    %285 = vector.extract_strided_slice %266 {offsets = [6, 0], sizes = [1, 256], strides = [1, 1]} : vector<8x256xf32> to vector<1x256xf32>
    %286 = vector.extract_strided_slice %266 {offsets = [1, 0], sizes = [1, 256], strides = [1, 1]} : vector<8x256xf32> to vector<1x256xf32>
    %287 = arith.select %25, %285, %286 : vector<1x256xi1>, vector<1x256xf32>
    %288 = vector.extract_strided_slice %266 {offsets = [7, 0], sizes = [1, 256], strides = [1, 1]} : vector<8x256xf32> to vector<1x256xf32>
    %289 = vector.extract_strided_slice %266 {offsets = [0, 0], sizes = [1, 256], strides = [1, 1]} : vector<8x256xf32> to vector<1x256xf32>
    %290 = arith.select %25, %288, %289 : vector<1x256xi1>, vector<1x256xf32>
    %cst_41 = arith.constant 0.000000e+00 : f32
    %291 = vector.broadcast %cst_41 : f32 to vector<1x64xf32>
    %cst_42 = arith.constant 0.000000e+00 : f32
    %292 = vector.broadcast %cst_42 : f32 to vector<1x64xf32>
    %293 = arith.truncf %291 : vector<1x64xf32> to vector<1x64xbf16>
    %cst_43 = arith.constant dense<0.000000e+00> : vector<1x256xf32>
    %294 = tpu.matmul %293, %261, %cst_43 {dimension_numbers = #tpu.dot_dimension_numbers<[1], [0], [0], [1], [0, 0, 1, 1], [], []>} : vector<1x64xbf16>, vector<64x256xbf16>, vector<1x256xf32> -> vector<1x256xf32>
    %295 = arith.addf %269, %294 : vector<1x256xf32>
    %296 = vector.extract_strided_slice %295 {offsets = [0, 0], sizes = [1, 128], strides = [1, 1]} : vector<1x256xf32> to vector<1x128xf32>
    %297 = arith.negf %296 : vector<1x128xf32>
    %298 = math.exp %297 : vector<1x128xf32>
    %cst_44 = arith.constant 1.000000e+00 : f32
    %299 = vector.broadcast %cst_44 : f32 to vector<1x128xf32>
    %300 = arith.addf %299, %298 : vector<1x128xf32>
    %301 = arith.divf %299, %300 : vector<1x128xf32>
    %302 = vector.extract_strided_slice %301 {offsets = [0, 0], sizes = [1, 64], strides = [1, 1]} : vector<1x128xf32> to vector<1x64xf32>
    %303 = vector.extract_strided_slice %301 {offsets = [0, 64], sizes = [1, 64], strides = [1, 1]} : vector<1x128xf32> to vector<1x64xf32>
    %304 = vector.extract_strided_slice %295 {offsets = [0, 128], sizes = [1, 64], strides = [1, 1]} : vector<1x256xf32> to vector<1x64xf32>
    %305 = math.tanh %304 : vector<1x64xf32>
    %306 = vector.extract_strided_slice %295 {offsets = [0, 192], sizes = [1, 64], strides = [1, 1]} : vector<1x256xf32> to vector<1x64xf32>
    %307 = arith.negf %306 : vector<1x64xf32>
    %308 = math.exp %307 : vector<1x64xf32>
    %cst_45 = arith.constant 1.000000e+00 : f32
    %309 = vector.broadcast %cst_45 : f32 to vector<1x64xf32>
    %310 = arith.addf %309, %308 : vector<1x64xf32>
    %311 = arith.divf %309, %310 : vector<1x64xf32>
    %312 = arith.mulf %303, %292 : vector<1x64xf32>
    %313 = arith.mulf %302, %305 : vector<1x64xf32>
    %314 = arith.addf %312, %313 : vector<1x64xf32>
    %315 = math.tanh %314 : vector<1x64xf32>
    %316 = arith.mulf %311, %315 : vector<1x64xf32>
    %317 = arith.truncf %316 : vector<1x64xf32> to vector<1x64xbf16>
    %cst_46 = arith.constant dense<0.000000e+00> : vector<1x256xf32>
    %318 = tpu.matmul %317, %261, %cst_46 {dimension_numbers = #tpu.dot_dimension_numbers<[1], [0], [0], [1], [0, 0, 1, 1], [], []>} : vector<1x64xbf16>, vector<64x256xbf16>, vector<1x256xf32> -> vector<1x256xf32>
    %319 = arith.addf %272, %318 : vector<1x256xf32>
    %320 = vector.extract_strided_slice %319 {offsets = [0, 0], sizes = [1, 128], strides = [1, 1]} : vector<1x256xf32> to vector<1x128xf32>
    %321 = arith.negf %320 : vector<1x128xf32>
    %322 = math.exp %321 : vector<1x128xf32>
    %cst_47 = arith.constant 1.000000e+00 : f32
    %323 = vector.broadcast %cst_47 : f32 to vector<1x128xf32>
    %324 = arith.addf %323, %322 : vector<1x128xf32>
    %325 = arith.divf %323, %324 : vector<1x128xf32>
    %326 = vector.extract_strided_slice %325 {offsets = [0, 0], sizes = [1, 64], strides = [1, 1]} : vector<1x128xf32> to vector<1x64xf32>
    %327 = vector.extract_strided_slice %325 {offsets = [0, 64], sizes = [1, 64], strides = [1, 1]} : vector<1x128xf32> to vector<1x64xf32>
    %328 = vector.extract_strided_slice %319 {offsets = [0, 128], sizes = [1, 64], strides = [1, 1]} : vector<1x256xf32> to vector<1x64xf32>
    %329 = math.tanh %328 : vector<1x64xf32>
    %330 = vector.extract_strided_slice %319 {offsets = [0, 192], sizes = [1, 64], strides = [1, 1]} : vector<1x256xf32> to vector<1x64xf32>
    %331 = arith.negf %330 : vector<1x64xf32>
    %332 = math.exp %331 : vector<1x64xf32>
    %cst_48 = arith.constant 1.000000e+00 : f32
    %333 = vector.broadcast %cst_48 : f32 to vector<1x64xf32>
    %334 = arith.addf %333, %332 : vector<1x64xf32>
    %335 = arith.divf %333, %334 : vector<1x64xf32>
    %336 = arith.mulf %327, %314 : vector<1x64xf32>
    %337 = arith.mulf %326, %329 : vector<1x64xf32>
    %338 = arith.addf %336, %337 : vector<1x64xf32>
    %339 = math.tanh %338 : vector<1x64xf32>
    %340 = arith.mulf %335, %339 : vector<1x64xf32>
    %341 = arith.truncf %340 : vector<1x64xf32> to vector<1x64xbf16>
    %cst_49 = arith.constant dense<0.000000e+00> : vector<1x256xf32>
    %342 = tpu.matmul %341, %261, %cst_49 {dimension_numbers = #tpu.dot_dimension_numbers<[1], [0], [0], [1], [0, 0, 1, 1], [], []>} : vector<1x64xbf16>, vector<64x256xbf16>, vector<1x256xf32> -> vector<1x256xf32>
    %343 = arith.addf %275, %342 : vector<1x256xf32>
    %344 = vector.extract_strided_slice %343 {offsets = [0, 0], sizes = [1, 128], strides = [1, 1]} : vector<1x256xf32> to vector<1x128xf32>
    %345 = arith.negf %344 : vector<1x128xf32>
    %346 = math.exp %345 : vector<1x128xf32>
    %cst_50 = arith.constant 1.000000e+00 : f32
    %347 = vector.broadcast %cst_50 : f32 to vector<1x128xf32>
    %348 = arith.addf %347, %346 : vector<1x128xf32>
    %349 = arith.divf %347, %348 : vector<1x128xf32>
    %350 = vector.extract_strided_slice %349 {offsets = [0, 0], sizes = [1, 64], strides = [1, 1]} : vector<1x128xf32> to vector<1x64xf32>
    %351 = vector.extract_strided_slice %349 {offsets = [0, 64], sizes = [1, 64], strides = [1, 1]} : vector<1x128xf32> to vector<1x64xf32>
    %352 = vector.extract_strided_slice %343 {offsets = [0, 128], sizes = [1, 64], strides = [1, 1]} : vector<1x256xf32> to vector<1x64xf32>
    %353 = math.tanh %352 : vector<1x64xf32>
    %354 = vector.extract_strided_slice %343 {offsets = [0, 192], sizes = [1, 64], strides = [1, 1]} : vector<1x256xf32> to vector<1x64xf32>
    %355 = arith.negf %354 : vector<1x64xf32>
    %356 = math.exp %355 : vector<1x64xf32>
    %cst_51 = arith.constant 1.000000e+00 : f32
    %357 = vector.broadcast %cst_51 : f32 to vector<1x64xf32>
    %358 = arith.addf %357, %356 : vector<1x64xf32>
    %359 = arith.divf %357, %358 : vector<1x64xf32>
    %360 = arith.mulf %351, %338 : vector<1x64xf32>
    %361 = arith.mulf %350, %353 : vector<1x64xf32>
    %362 = arith.addf %360, %361 : vector<1x64xf32>
    %363 = math.tanh %362 : vector<1x64xf32>
    %364 = arith.mulf %359, %363 : vector<1x64xf32>
    %365 = arith.truncf %364 : vector<1x64xf32> to vector<1x64xbf16>
    %cst_52 = arith.constant dense<0.000000e+00> : vector<1x256xf32>
    %366 = tpu.matmul %365, %261, %cst_52 {dimension_numbers = #tpu.dot_dimension_numbers<[1], [0], [0], [1], [0, 0, 1, 1], [], []>} : vector<1x64xbf16>, vector<64x256xbf16>, vector<1x256xf32> -> vector<1x256xf32>
    %367 = arith.addf %278, %366 : vector<1x256xf32>
    %368 = vector.extract_strided_slice %367 {offsets = [0, 0], sizes = [1, 128], strides = [1, 1]} : vector<1x256xf32> to vector<1x128xf32>
    %369 = arith.negf %368 : vector<1x128xf32>
    %370 = math.exp %369 : vector<1x128xf32>
    %cst_53 = arith.constant 1.000000e+00 : f32
    %371 = vector.broadcast %cst_53 : f32 to vector<1x128xf32>
    %372 = arith.addf %371, %370 : vector<1x128xf32>
    %373 = arith.divf %371, %372 : vector<1x128xf32>
    %374 = vector.extract_strided_slice %373 {offsets = [0, 0], sizes = [1, 64], strides = [1, 1]} : vector<1x128xf32> to vector<1x64xf32>
    %375 = vector.extract_strided_slice %373 {offsets = [0, 64], sizes = [1, 64], strides = [1, 1]} : vector<1x128xf32> to vector<1x64xf32>
    %376 = vector.extract_strided_slice %367 {offsets = [0, 128], sizes = [1, 64], strides = [1, 1]} : vector<1x256xf32> to vector<1x64xf32>
    %377 = math.tanh %376 : vector<1x64xf32>
    %378 = vector.extract_strided_slice %367 {offsets = [0, 192], sizes = [1, 64], strides = [1, 1]} : vector<1x256xf32> to vector<1x64xf32>
    %379 = arith.negf %378 : vector<1x64xf32>
    %380 = math.exp %379 : vector<1x64xf32>
    %cst_54 = arith.constant 1.000000e+00 : f32
    %381 = vector.broadcast %cst_54 : f32 to vector<1x64xf32>
    %382 = arith.addf %381, %380 : vector<1x64xf32>
    %383 = arith.divf %381, %382 : vector<1x64xf32>
    %384 = arith.mulf %375, %362 : vector<1x64xf32>
    %385 = arith.mulf %374, %377 : vector<1x64xf32>
    %386 = arith.addf %384, %385 : vector<1x64xf32>
    %387 = math.tanh %386 : vector<1x64xf32>
    %388 = arith.mulf %383, %387 : vector<1x64xf32>
    %389 = arith.truncf %388 : vector<1x64xf32> to vector<1x64xbf16>
    %cst_55 = arith.constant dense<0.000000e+00> : vector<1x256xf32>
    %390 = tpu.matmul %389, %261, %cst_55 {dimension_numbers = #tpu.dot_dimension_numbers<[1], [0], [0], [1], [0, 0, 1, 1], [], []>} : vector<1x64xbf16>, vector<64x256xbf16>, vector<1x256xf32> -> vector<1x256xf32>
    %391 = arith.addf %281, %390 : vector<1x256xf32>
    %392 = vector.extract_strided_slice %391 {offsets = [0, 0], sizes = [1, 128], strides = [1, 1]} : vector<1x256xf32> to vector<1x128xf32>
    %393 = arith.negf %392 : vector<1x128xf32>
    %394 = math.exp %393 : vector<1x128xf32>
    %cst_56 = arith.constant 1.000000e+00 : f32
    %395 = vector.broadcast %cst_56 : f32 to vector<1x128xf32>
    %396 = arith.addf %395, %394 : vector<1x128xf32>
    %397 = arith.divf %395, %396 : vector<1x128xf32>
    %398 = vector.extract_strided_slice %397 {offsets = [0, 0], sizes = [1, 64], strides = [1, 1]} : vector<1x128xf32> to vector<1x64xf32>
    %399 = vector.extract_strided_slice %397 {offsets = [0, 64], sizes = [1, 64], strides = [1, 1]} : vector<1x128xf32> to vector<1x64xf32>
    %400 = vector.extract_strided_slice %391 {offsets = [0, 128], sizes = [1, 64], strides = [1, 1]} : vector<1x256xf32> to vector<1x64xf32>
    %401 = math.tanh %400 : vector<1x64xf32>
    %402 = vector.extract_strided_slice %391 {offsets = [0, 192], sizes = [1, 64], strides = [1, 1]} : vector<1x256xf32> to vector<1x64xf32>
    %403 = arith.negf %402 : vector<1x64xf32>
    %404 = math.exp %403 : vector<1x64xf32>
    %cst_57 = arith.constant 1.000000e+00 : f32
    %405 = vector.broadcast %cst_57 : f32 to vector<1x64xf32>
    %406 = arith.addf %405, %404 : vector<1x64xf32>
    %407 = arith.divf %405, %406 : vector<1x64xf32>
    %408 = arith.mulf %399, %386 : vector<1x64xf32>
    %409 = arith.mulf %398, %401 : vector<1x64xf32>
    %410 = arith.addf %408, %409 : vector<1x64xf32>
    %411 = math.tanh %410 : vector<1x64xf32>
    %412 = arith.mulf %407, %411 : vector<1x64xf32>
    %413 = arith.truncf %412 : vector<1x64xf32> to vector<1x64xbf16>
    %cst_58 = arith.constant dense<0.000000e+00> : vector<1x256xf32>
    %414 = tpu.matmul %413, %261, %cst_58 {dimension_numbers = #tpu.dot_dimension_numbers<[1], [0], [0], [1], [0, 0, 1, 1], [], []>} : vector<1x64xbf16>, vector<64x256xbf16>, vector<1x256xf32> -> vector<1x256xf32>
    %415 = arith.addf %284, %414 : vector<1x256xf32>
    %416 = vector.extract_strided_slice %415 {offsets = [0, 0], sizes = [1, 128], strides = [1, 1]} : vector<1x256xf32> to vector<1x128xf32>
    %417 = arith.negf %416 : vector<1x128xf32>
    %418 = math.exp %417 : vector<1x128xf32>
    %cst_59 = arith.constant 1.000000e+00 : f32
    %419 = vector.broadcast %cst_59 : f32 to vector<1x128xf32>
    %420 = arith.addf %419, %418 : vector<1x128xf32>
    %421 = arith.divf %419, %420 : vector<1x128xf32>
    %422 = vector.extract_strided_slice %421 {offsets = [0, 0], sizes = [1, 64], strides = [1, 1]} : vector<1x128xf32> to vector<1x64xf32>
    %423 = vector.extract_strided_slice %421 {offsets = [0, 64], sizes = [1, 64], strides = [1, 1]} : vector<1x128xf32> to vector<1x64xf32>
    %424 = vector.extract_strided_slice %415 {offsets = [0, 128], sizes = [1, 64], strides = [1, 1]} : vector<1x256xf32> to vector<1x64xf32>
    %425 = math.tanh %424 : vector<1x64xf32>
    %426 = vector.extract_strided_slice %415 {offsets = [0, 192], sizes = [1, 64], strides = [1, 1]} : vector<1x256xf32> to vector<1x64xf32>
    %427 = arith.negf %426 : vector<1x64xf32>
    %428 = math.exp %427 : vector<1x64xf32>
    %cst_60 = arith.constant 1.000000e+00 : f32
    %429 = vector.broadcast %cst_60 : f32 to vector<1x64xf32>
    %430 = arith.addf %429, %428 : vector<1x64xf32>
    %431 = arith.divf %429, %430 : vector<1x64xf32>
    %432 = arith.mulf %423, %410 : vector<1x64xf32>
    %433 = arith.mulf %422, %425 : vector<1x64xf32>
    %434 = arith.addf %432, %433 : vector<1x64xf32>
    %435 = math.tanh %434 : vector<1x64xf32>
    %436 = arith.mulf %431, %435 : vector<1x64xf32>
    %437 = arith.truncf %436 : vector<1x64xf32> to vector<1x64xbf16>
    %cst_61 = arith.constant dense<0.000000e+00> : vector<1x256xf32>
    %438 = tpu.matmul %437, %261, %cst_61 {dimension_numbers = #tpu.dot_dimension_numbers<[1], [0], [0], [1], [0, 0, 1, 1], [], []>} : vector<1x64xbf16>, vector<64x256xbf16>, vector<1x256xf32> -> vector<1x256xf32>
    %439 = arith.addf %287, %438 : vector<1x256xf32>
    %440 = vector.extract_strided_slice %439 {offsets = [0, 0], sizes = [1, 128], strides = [1, 1]} : vector<1x256xf32> to vector<1x128xf32>
    %441 = arith.negf %440 : vector<1x128xf32>
    %442 = math.exp %441 : vector<1x128xf32>
    %cst_62 = arith.constant 1.000000e+00 : f32
    %443 = vector.broadcast %cst_62 : f32 to vector<1x128xf32>
    %444 = arith.addf %443, %442 : vector<1x128xf32>
    %445 = arith.divf %443, %444 : vector<1x128xf32>
    %446 = vector.extract_strided_slice %445 {offsets = [0, 0], sizes = [1, 64], strides = [1, 1]} : vector<1x128xf32> to vector<1x64xf32>
    %447 = vector.extract_strided_slice %445 {offsets = [0, 64], sizes = [1, 64], strides = [1, 1]} : vector<1x128xf32> to vector<1x64xf32>
    %448 = vector.extract_strided_slice %439 {offsets = [0, 128], sizes = [1, 64], strides = [1, 1]} : vector<1x256xf32> to vector<1x64xf32>
    %449 = math.tanh %448 : vector<1x64xf32>
    %450 = vector.extract_strided_slice %439 {offsets = [0, 192], sizes = [1, 64], strides = [1, 1]} : vector<1x256xf32> to vector<1x64xf32>
    %451 = arith.negf %450 : vector<1x64xf32>
    %452 = math.exp %451 : vector<1x64xf32>
    %cst_63 = arith.constant 1.000000e+00 : f32
    %453 = vector.broadcast %cst_63 : f32 to vector<1x64xf32>
    %454 = arith.addf %453, %452 : vector<1x64xf32>
    %455 = arith.divf %453, %454 : vector<1x64xf32>
    %456 = arith.mulf %447, %434 : vector<1x64xf32>
    %457 = arith.mulf %446, %449 : vector<1x64xf32>
    %458 = arith.addf %456, %457 : vector<1x64xf32>
    %459 = math.tanh %458 : vector<1x64xf32>
    %460 = arith.mulf %455, %459 : vector<1x64xf32>
    %461 = arith.truncf %460 : vector<1x64xf32> to vector<1x64xbf16>
    %cst_64 = arith.constant dense<0.000000e+00> : vector<1x256xf32>
    %462 = tpu.matmul %461, %261, %cst_64 {dimension_numbers = #tpu.dot_dimension_numbers<[1], [0], [0], [1], [0, 0, 1, 1], [], []>} : vector<1x64xbf16>, vector<64x256xbf16>, vector<1x256xf32> -> vector<1x256xf32>
    %463 = arith.addf %290, %462 : vector<1x256xf32>
    %464 = vector.extract_strided_slice %463 {offsets = [0, 0], sizes = [1, 128], strides = [1, 1]} : vector<1x256xf32> to vector<1x128xf32>
    %465 = arith.negf %464 : vector<1x128xf32>
    %466 = math.exp %465 : vector<1x128xf32>
    %cst_65 = arith.constant 1.000000e+00 : f32
    %467 = vector.broadcast %cst_65 : f32 to vector<1x128xf32>
    %468 = arith.addf %467, %466 : vector<1x128xf32>
    %469 = arith.divf %467, %468 : vector<1x128xf32>
    %470 = vector.extract_strided_slice %469 {offsets = [0, 0], sizes = [1, 64], strides = [1, 1]} : vector<1x128xf32> to vector<1x64xf32>
    %471 = vector.extract_strided_slice %469 {offsets = [0, 64], sizes = [1, 64], strides = [1, 1]} : vector<1x128xf32> to vector<1x64xf32>
    %472 = vector.extract_strided_slice %463 {offsets = [0, 128], sizes = [1, 64], strides = [1, 1]} : vector<1x256xf32> to vector<1x64xf32>
    %473 = math.tanh %472 : vector<1x64xf32>
    %474 = vector.extract_strided_slice %463 {offsets = [0, 192], sizes = [1, 64], strides = [1, 1]} : vector<1x256xf32> to vector<1x64xf32>
    %475 = arith.negf %474 : vector<1x64xf32>
    %476 = math.exp %475 : vector<1x64xf32>
    %cst_66 = arith.constant 1.000000e+00 : f32
    %477 = vector.broadcast %cst_66 : f32 to vector<1x64xf32>
    %478 = arith.addf %477, %476 : vector<1x64xf32>
    %479 = arith.divf %477, %478 : vector<1x64xf32>
    %480 = arith.mulf %471, %458 : vector<1x64xf32>
    %481 = arith.mulf %470, %473 : vector<1x64xf32>
    %482 = arith.addf %480, %481 : vector<1x64xf32>
    %483 = math.tanh %482 : vector<1x64xf32>
    %484 = arith.mulf %479, %483 : vector<1x64xf32>
    %485 = tpu.concatenate %316, %340, %364, %388, %412, %436, %460, %484 in 0 : vector<1x64xf32>, vector<1x64xf32>, vector<1x64xf32>, vector<1x64xf32>, vector<1x64xf32>, vector<1x64xf32>, vector<1x64xf32>, vector<1x64xf32> -> vector<8x64xf32>
    %486 = tpu.concatenate %484, %460, %436, %412, %388, %364, %340, %316 in 0 : vector<1x64xf32>, vector<1x64xf32>, vector<1x64xf32>, vector<1x64xf32>, vector<1x64xf32>, vector<1x64xf32>, vector<1x64xf32>, vector<1x64xf32> -> vector<8x64xf32>
    %487 = vector.shape_cast %28 : vector<1x64xi1> to vector<1x64xi1>
    %488 = vector.broadcast %487 : vector<1x64xi1> to vector<8x64xi1>
    %489 = arith.select %488, %485, %486 : vector<8x64xi1>, vector<8x64xf32>
    %490 = arith.truncf %489 : vector<8x64xf32> to vector<8x64xbf16>
    %c0_67 = arith.constant 0 : index
    %c0_68 = arith.constant 0 : index
    %491 = vector.load %arg8[%c0_67, %c0_68] : memref<64x128xbf16, #tpu.memory_space<vmem>>, vector<64x128xbf16>
    %cst_69 = arith.constant dense<0.000000e+00> : vector<8x128xf32>
    %492 = tpu.matmul %490, %491, %cst_69 {dimension_numbers = #tpu.dot_dimension_numbers<[1], [0], [0], [1], [0, 0, 1, 1], [], []>} : vector<8x64xbf16>, vector<64x128xbf16>, vector<8x128xf32> -> vector<8x128xf32>
    %c0_70 = arith.constant 0 : index
    %c0_71 = arith.constant 0 : index
    %493 = vector.load %arg9[%c0_70, %c0_71] : memref<64x128xbf16, #tpu.memory_space<vmem>>, vector<64x128xbf16>
    %cst_72 = arith.constant dense<0.000000e+00> : vector<8x128xf32>
    %494 = tpu.matmul %490, %493, %cst_72 {dimension_numbers = #tpu.dot_dimension_numbers<[1], [0], [0], [1], [0, 0, 1, 1], [], []>} : vector<8x64xbf16>, vector<64x128xbf16>, vector<8x128xf32> -> vector<8x128xf32>
    %c0_73 = arith.constant 0 : index
    %c0_74 = arith.constant 0 : index
    %495 = vector.load %arg10[%c0_73, %c0_74] : memref<1x128xf32, #tpu.memory_space<vmem>>, vector<1x128xf32>
    %496 = vector.broadcast %495 : vector<1x128xf32> to vector<8x128xf32>
    %497 = arith.addf %494, %496 : vector<8x128xf32>
    %498 = vector.extract_strided_slice %492 {offsets = [0, 0], sizes = [1, 128], strides = [1, 1]} : vector<8x128xf32> to vector<1x128xf32>
    %499 = vector.broadcast %498 : vector<1x128xf32> to vector<8x128xf32>
    %500 = arith.addf %499, %497 : vector<8x128xf32>
    %cst_75 = arith.constant 0.000000e+00 : f32
    %501 = vector.broadcast %cst_75 : f32 to vector<8x128xf32>
    %502 = arith.maximumf %500, %501 : vector<8x128xf32>
    %503 = vector.extract_strided_slice %492 {offsets = [1, 0], sizes = [1, 128], strides = [1, 1]} : vector<8x128xf32> to vector<1x128xf32>
    %504 = vector.broadcast %503 : vector<1x128xf32> to vector<8x128xf32>
    %505 = arith.addf %504, %497 : vector<8x128xf32>
    %cst_76 = arith.constant 0.000000e+00 : f32
    %506 = vector.broadcast %cst_76 : f32 to vector<8x128xf32>
    %507 = arith.maximumf %505, %506 : vector<8x128xf32>
    %508 = vector.extract_strided_slice %492 {offsets = [2, 0], sizes = [1, 128], strides = [1, 1]} : vector<8x128xf32> to vector<1x128xf32>
    %509 = vector.broadcast %508 : vector<1x128xf32> to vector<8x128xf32>
    %510 = arith.addf %509, %497 : vector<8x128xf32>
    %cst_77 = arith.constant 0.000000e+00 : f32
    %511 = vector.broadcast %cst_77 : f32 to vector<8x128xf32>
    %512 = arith.maximumf %510, %511 : vector<8x128xf32>
    %513 = vector.extract_strided_slice %492 {offsets = [3, 0], sizes = [1, 128], strides = [1, 1]} : vector<8x128xf32> to vector<1x128xf32>
    %514 = vector.broadcast %513 : vector<1x128xf32> to vector<8x128xf32>
    %515 = arith.addf %514, %497 : vector<8x128xf32>
    %cst_78 = arith.constant 0.000000e+00 : f32
    %516 = vector.broadcast %cst_78 : f32 to vector<8x128xf32>
    %517 = arith.maximumf %515, %516 : vector<8x128xf32>
    %518 = vector.extract_strided_slice %492 {offsets = [4, 0], sizes = [1, 128], strides = [1, 1]} : vector<8x128xf32> to vector<1x128xf32>
    %519 = vector.broadcast %518 : vector<1x128xf32> to vector<8x128xf32>
    %520 = arith.addf %519, %497 : vector<8x128xf32>
    %cst_79 = arith.constant 0.000000e+00 : f32
    %521 = vector.broadcast %cst_79 : f32 to vector<8x128xf32>
    %522 = arith.maximumf %520, %521 : vector<8x128xf32>
    %523 = vector.extract_strided_slice %492 {offsets = [5, 0], sizes = [1, 128], strides = [1, 1]} : vector<8x128xf32> to vector<1x128xf32>
    %524 = vector.broadcast %523 : vector<1x128xf32> to vector<8x128xf32>
    %525 = arith.addf %524, %497 : vector<8x128xf32>
    %cst_80 = arith.constant 0.000000e+00 : f32
    %526 = vector.broadcast %cst_80 : f32 to vector<8x128xf32>
    %527 = arith.maximumf %525, %526 : vector<8x128xf32>
    %528 = vector.extract_strided_slice %492 {offsets = [6, 0], sizes = [1, 128], strides = [1, 1]} : vector<8x128xf32> to vector<1x128xf32>
    %529 = vector.broadcast %528 : vector<1x128xf32> to vector<8x128xf32>
    %530 = arith.addf %529, %497 : vector<8x128xf32>
    %cst_81 = arith.constant 0.000000e+00 : f32
    %531 = vector.broadcast %cst_81 : f32 to vector<8x128xf32>
    %532 = arith.maximumf %530, %531 : vector<8x128xf32>
    %533 = vector.extract_strided_slice %492 {offsets = [7, 0], sizes = [1, 128], strides = [1, 1]} : vector<8x128xf32> to vector<1x128xf32>
    %534 = vector.broadcast %533 : vector<1x128xf32> to vector<8x128xf32>
    %535 = arith.addf %534, %497 : vector<8x128xf32>
    %cst_82 = arith.constant 0.000000e+00 : f32
    %536 = vector.broadcast %cst_82 : f32 to vector<8x128xf32>
    %537 = arith.maximumf %535, %536 : vector<8x128xf32>
    %538 = tpu.concatenate %502, %507, %512, %517, %522, %527, %532, %537 in 0 : vector<8x128xf32>, vector<8x128xf32>, vector<8x128xf32>, vector<8x128xf32>, vector<8x128xf32>, vector<8x128xf32>, vector<8x128xf32>, vector<8x128xf32> -> vector<64x128xf32>
    %539 = arith.truncf %538 : vector<64x128xf32> to vector<64x128xbf16>
    %c0_83 = arith.constant 0 : index
    %c0_84 = arith.constant 0 : index
    %540 = vector.load %arg11[%c0_83, %c0_84] : memref<128x64xbf16, #tpu.memory_space<vmem>>, vector<128x64xbf16>
    %cst_85 = arith.constant dense<0.000000e+00> : vector<64x64xf32>
    %541 = tpu.matmul %539, %540, %cst_85 {dimension_numbers = #tpu.dot_dimension_numbers<[1], [0], [0], [1], [0, 0, 1, 1], [], []>} : vector<64x128xbf16>, vector<128x64xbf16>, vector<64x64xf32> -> vector<64x64xf32>
    %c0_86 = arith.constant 0 : index
    %c0_87 = arith.constant 0 : index
    %542 = vector.load %arg12[%c0_86, %c0_87] : memref<1x64xf32, #tpu.memory_space<vmem>>, vector<1x64xf32>
    %543 = vector.broadcast %542 : vector<1x64xf32> to vector<64x64xf32>
    %544 = arith.addf %541, %543 : vector<64x64xf32>
    %cst_88 = arith.constant 0.000000e+00 : f32
    %545 = vector.broadcast %cst_88 : f32 to vector<64x64xf32>
    %546 = arith.maximumf %544, %545 : vector<64x64xf32>
    %c0_89 = arith.constant 0 : index
    %c0_90 = arith.constant 0 : index
    %547 = vector.load %arg13[%c0_89, %c0_90] : memref<1x64xf32, #tpu.memory_space<vmem>>, vector<1x64xf32>
    %cst_91 = arith.constant dense<0.000000e+00> : vector<1x64xf32>
    %548 = tpu.matmul %547, %546, %cst_91 {dimension_numbers = #tpu.dot_dimension_numbers<[1], [1], [0], [0], [0, 0, 1, 0], [], []>} : vector<1x64xf32>, vector<64x64xf32>, vector<1x64xf32> -> vector<1x64xf32>
    %c0_92 = arith.constant 0 : index
    %c0_93 = arith.constant 0 : index
    %549 = vector.load %arg14[%c0_92, %c0_93] : memref<1x1xf32, #tpu.memory_space<vmem>>, vector<1x1xf32>
    %550 = vector.broadcast %549 : vector<1x1xf32> to vector<1x64xf32>
    %551 = arith.addf %548, %550 : vector<1x64xf32>
    %c0_94 = arith.constant 0 : index
    %c0_95 = arith.constant 0 : index
    %552 = vector.load %arg15[%c0_94, %c0_95] : memref<1x64xf32, #tpu.memory_space<vmem>>, vector<1x64xf32>
    tpu.vector_store %arg15[%c0_94, %c0_95], %551 {strides = array<i32>} : memref<1x64xf32, #tpu.memory_space<vmem>>, vector<1x64xf32>,
    return
  }
  func.func @transform_0(%arg0: i32) -> (i32, i32) {
    %c0_i32 = arith.constant 0 : i32
    %c0_i32_0 = arith.constant 0 : i32
    %c0_i32_1 = arith.constant 0 : i32
    return %c0_i32, %c0_i32_0 : i32, i32
  }
  func.func @transform_1(%arg0: i32) -> (i32, i32) {
    %c0_i32 = arith.constant 0 : i32
    %c0_i32_0 = arith.constant 0 : i32
    %c0_i32_1 = arith.constant 0 : i32
    return %c0_i32, %c0_i32_0 : i32, i32
  }
  func.func @transform_2(%arg0: i32) -> (i32, i32) {
    %c0_i32 = arith.constant 0 : i32
    %c0_i32_0 = arith.constant 0 : i32
    %c0_i32_1 = arith.constant 0 : i32
    return %c0_i32, %c0_i32_0 : i32, i32
  }
  func.func @transform_3(%arg0: i32) -> (i32, i32) {
    %c0_i32 = arith.constant 0 : i32
    %c0_i32_0 = arith.constant 0 : i32
    %c0_i32_1 = arith.constant 0 : i32
    return %c0_i32, %c0_i32_0 : i32, i32
  }
  func.func @transform_4(%arg0: i32) -> (i32, i32) {
    %c0_i32 = arith.constant 0 : i32
    %c0_i32_0 = arith.constant 0 : i32
    %c0_i32_1 = arith.constant 0 : i32
    return %c0_i32, %c0_i32_0 : i32, i32
  }
  func.func @transform_5(%arg0: i32) -> (i32, i32) {
    %c0_i32 = arith.constant 0 : i32
    %c0_i32_0 = arith.constant 0 : i32
    %c0_i32_1 = arith.constant 0 : i32
    return %c0_i32, %c0_i32_0 : i32, i32
  }
  func.func @transform_6(%arg0: i32) -> (i32, i32) {
    %c0_i32 = arith.constant 0 : i32
    %c0_i32_0 = arith.constant 0 : i32
    %c0_i32_1 = arith.constant 0 : i32
    return %c0_i32, %c0_i32_0 : i32, i32
  }
  func.func @transform_7(%arg0: i32) -> (i32, i32) {
    %c0_i32 = arith.constant 0 : i32
    %c0_i32_0 = arith.constant 0 : i32
    %c0_i32_1 = arith.constant 0 : i32
    return %c0_i32, %c0_i32_0 : i32, i32
  }
  func.func @transform_8(%arg0: i32) -> (i32, i32) {
    %c0_i32 = arith.constant 0 : i32
    %c0_i32_0 = arith.constant 0 : i32
    %c0_i32_1 = arith.constant 0 : i32
    return %c0_i32, %c0_i32_0 : i32, i32
  }
  func.func @transform_9(%arg0: i32) -> (i32, i32) {
    %c0_i32 = arith.constant 0 : i32
    %c0_i32_0 = arith.constant 0 : i32
    %c0_i32_1 = arith.constant 0 : i32
    return %c0_i32, %c0_i32_0 : i32, i32
  }
  func.func @transform_10(%arg0: i32) -> (i32, i32) {
    %c0_i32 = arith.constant 0 : i32
    %c0_i32_0 = arith.constant 0 : i32
    %c0_i32_1 = arith.constant 0 : i32
    return %c0_i32, %c0_i32_0 : i32, i32
  }
  func.func @transform_11(%arg0: i32) -> (i32, i32) {
    %c0_i32 = arith.constant 0 : i32
    %c0_i32_0 = arith.constant 0 : i32
    %c0_i32_1 = arith.constant 0 : i32
    return %c0_i32, %c0_i32_0 : i32, i32
  }
  func.func @transform_12(%arg0: i32) -> (i32, i32) {
    %c0_i32 = arith.constant 0 : i32
    %c0_i32_0 = arith.constant 0 : i32
    %c0_i32_1 = arith.constant 0 : i32
    return %c0_i32, %c0_i32_0 : i32, i32
  }
  func.func @transform_13(%arg0: i32) -> (i32, i32) {
    %c0_i32 = arith.constant 0 : i32
    %c0_i32_0 = arith.constant 0 : i32
    %c0_i32_1 = arith.constant 0 : i32
    return %c0_i32, %c0_i32_0 : i32, i32
  }
  func.func @transform_14(%arg0: i32) -> (i32, i32) {
    %c0_i32 = arith.constant 0 : i32
    %c0_i32_0 = arith.constant 0 : i32
    %c0_i32_1 = arith.constant 0 : i32
    return %c0_i32, %c0_i32_0 : i32, i32
  }
}

</mosaic_0001>

<llo_original>
// kernel: model_forward.1
$region0: #{model_forward.1}
  #allocation0 [shape = 'u32[]', space=smem, size = 0x4, offset = 0x4, fixed_abs, tag = 'smem constant byte address 0x4 - core index']
  #allocation1 [shape = 'u32[144,128]{1,0:T(1,128)}', space=vmem, size = 0x12000, scoped, tag = 'internal scratch']
  #allocation2 [shape = 'f32[1,1]{1,0:T(1,128)S(1)}', space=vmem, size = 0x200, scoped, tag = 'scoped memory for model_forward.1']
  %s0 = inlined_call_operand.vmem [shape: f32[8,332], index: 0, kind: input, shape index: {}]
  %s1 = inlined_call_operand.vmem [shape: bf16[332,256], index: 1, kind: input, shape index: {}]
  %s2 = inlined_call_operand.vmem [shape: bf16[64,256], index: 2, kind: input, shape index: {}]
  %s3 = inlined_call_operand.hbm [shape: f32[1,256], index: 3, kind: input, shape index: {}]
  %s4 = inlined_call_operand.hbm [shape: bf16[64,256], index: 4, kind: input, shape index: {}]
  %s5 = inlined_call_operand.hbm [shape: bf16[64,256], index: 5, kind: input, shape index: {}]
  %s6 = inlined_call_operand.hbm [shape: f32[1,256], index: 6, kind: input, shape index: {}]
  %s7 = inlined_call_operand.hbm [shape: bf16[64,128], index: 7, kind: input, shape index: {}]
  %s8 = inlined_call_operand.hbm [shape: bf16[64,128], index: 8, kind: input, shape index: {}]
  %s9 = inlined_call_operand.hbm [shape: f32[1,128], index: 9, kind: input, shape index: {}]
  %s10 = inlined_call_operand.vmem [shape: bf16[128,64], index: 10, kind: input, shape index: {}]
  %s11 = inlined_call_operand.hbm [shape: f32[1,64], index: 11, kind: input, shape index: {}]
  %s12 = inlined_call_operand.hbm [shape: f32[1,64], index: 12, kind: input, shape index: {}]
  %s13 = inlined_call_operand.<no memory space> [shape: f32[1,1], index: 13, kind: input, shape index: {}]
  %s14 = inlined_call_operand.vmem [shape: f32[1,64], index: 14, kind: output, shape index: {}]
  %s15 = sld [smem:[#allocation0]]
  $region102: #{model_forward.1} parent=0
    _
  %s17 = ssub.s32 1, %s15
  %s18 = scalar_select 0, %s17, %s15
  %v19 = vstv %s13
  %20 = vst [vmem:[#allocation2] sm:$0x1] %v19
  $region1: #{model_forward.1} parent=0
    #allocation3 [shape = 'u8[1024]{0}', space=vmem, size = 0x400, scoped, tag = 'input window, operand 3, single buffered']
    #allocation4 [shape = 's32[1]{0}', space=sflag, size = 0x4, scoped, tag = 'scoped memory for model_forward.1']
    #allocation5 [shape = 'u8[32768]{0}', space=vmem, size = 0x8000, scoped, tag = 'input window, operand 4, single buffered']
    #allocation6 [shape = 's32[1]{0}', space=sflag, size = 0x4, scoped, tag = 'scoped memory for model_forward.1']
    #allocation7 [shape = 'u8[32768]{0}', space=vmem, size = 0x8000, scoped, tag = 'input window, operand 5, single buffered']
    #allocation8 [shape = 'u8[1024]{0}', space=vmem, size = 0x400, scoped, tag = 'input window, operand 6, single buffered']
    #allocation9 [shape = 's32[1]{0}', space=sflag, size = 0x4, scoped, tag = 'scoped memory for model_forward.1']
    #allocation10 [shape = 'u8[16384]{0}', space=vmem, size = 0x4000, scoped, tag = 'input window, operand 7, single buffered']
    #allocation11 [shape = 'u8[16384]{0}', space=vmem, size = 0x4000, scoped, tag = 'input window, operand 8, single buffered']
    #allocation12 [shape = 's32[1]{0}', space=sflag, size = 0x4, scoped, tag = 'scoped memory for model_forward.1']
    #allocation13 [shape = 'u8[512]{0}', space=vmem, size = 0x400, scoped, tag = 'input window, operand 9, single buffered']
    #allocation14 [shape = 'u8[512]{0}', space=vmem, size = 0x400, scoped, tag = 'input window, operand 11, single buffered']
    #allocation15 [shape = 's32[1]{0}', space=sflag, size = 0x4, scoped, tag = 'scoped memory for model_forward.1']
    #allocation16 [shape = 'u8[512]{0}', space=vmem, size = 0x400, scoped, tag = 'input window, operand 12, single buffered']
    %21 = vsyncpa [#allocation4], 0
    %22 = vsyncpa [#allocation6], 0
    %23 = vsyncpa [#allocation9], 0
    %24 = vsyncpa [#allocation12], 0
    %25 = vsyncpa [#allocation15], 0
    // Predicated region
    $region2: #{model_forward.1} parent=1 // pred_check
      _
    $region3: #{model_forward.1} parent=1 // pred_check_branch
      %27 = sbr.rel (0) target = $region5
    $region4: #{model_forward.1} parent=1 // pred_region
      _
    $region5: #{model_forward.1} parent=1 // pred_fallthru
      _
    // Predicated region
    $region6: #{model_forward.1} parent=1 // pred_check
      _
    $region7: #{model_forward.1} parent=1 // pred_check_branch
      %29 = sbr.rel (0) target = $region9
    $region8: #{model_forward.1} parent=1 // pred_region
      _
    $region9: #{model_forward.1} parent=1 // pred_fallthru
      _
    // Predicated region
    $region10: #{model_forward.1} parent=1 // pred_check
      _
    $region11: #{model_forward.1} parent=1 // pred_check_branch
      %31 = sbr.rel (0) target = $region13
    $region12: #{model_forward.1} parent=1 // pred_region
      _
    $region13: #{model_forward.1} parent=1 // pred_fallthru
      _
    // Predicated region
    $region14: #{model_forward.1} parent=1 // pred_check
      _
    $region15: #{model_forward.1} parent=1 // pred_check_branch
      %33 = sbr.rel (0) target = $region17
    $region16: #{model_forward.1} parent=1 // pred_region
      %s35 = ssub.s32 32, 32
      %36 = vsyncadd [#allocation4], %s35
      %s38 = sshll.u32 [#allocation3], 4
      %s39 = int_to_ptr.vmem [resolvable:$true] %s38
      %41 = dma.hbm_to_vmem [thread:$0]  %s3, 32, %s39, [#allocation4]
    $region17: #{model_forward.1} parent=1 // pred_fallthru
      _
    // Predicated region
    $region18: #{model_forward.1} parent=1 // pred_check
      _
    $region19: #{model_forward.1} parent=1 // pred_check_branch
      %43 = sbr.rel (0) target = $region21
    $region20: #{model_forward.1} parent=1 // pred_region
      %s45 = ssub.s32 1024, 1024
      %46 = vsyncadd [#allocation6], %s45
      %s47 = sshll.u32 [#allocation5], 4
      %s48 = int_to_ptr.vmem [resolvable:$true] %s47
      %53 = dma.hbm_to_vmem [thread:$0]  %s4, 1024, %s48, [#allocation6], 128, 128, 8
    $region21: #{model_forward.1} parent=1 // pred_fallthru
      _
    // Predicated region
    $region22: #{model_forward.1} parent=1 // pred_check
      _
    $region23: #{model_forward.1} parent=1 // pred_check_branch
      %55 = sbr.rel (0) target = $region25
    $region24: #{model_forward.1} parent=1 // pred_region
      %s57 = ssub.s32 1024, 1024
      %58 = vsyncadd [#allocation6], %s57
      %s59 = sshll.u32 [#allocation7], 4
      %s60 = int_to_ptr.vmem [resolvable:$true] %s59
      %65 = dma.hbm_to_vmem [thread:$0]  %s5, 1024, %s60, [#allocation6], 128, 128, 8
    $region25: #{model_forward.1} parent=1 // pred_fallthru
      _
    // Predicated region
    $region26: #{model_forward.1} parent=1 // pred_check
      _
    $region27: #{model_forward.1} parent=1 // pred_check_branch
      %67 = sbr.rel (0) target = $region29
    $region28: #{model_forward.1} parent=1 // pred_region
      %s69 = ssub.s32 32, 32
      %70 = vsyncadd [#allocation9], %s69
      %s72 = sshll.u32 [#allocation8], 4
      %s73 = int_to_ptr.vmem [resolvable:$true] %s72
      %75 = dma.hbm_to_vmem [thread:$0]  %s6, 32, %s73, [#allocation9]
    $region29: #{model_forward.1} parent=1 // pred_fallthru
      _
    // Predicated region
    $region30: #{model_forward.1} parent=1 // pred_check
      _
    $region31: #{model_forward.1} parent=1 // pred_check_branch
      %77 = sbr.rel (0) target = $region33
    $region32: #{model_forward.1} parent=1 // pred_region
      %s79 = ssub.s32 512, 512
      %80 = vsyncadd [#allocation9], %s79
      %s81 = sshll.u32 [#allocation10], 4
      %s82 = int_to_ptr.vmem [resolvable:$true] %s81
      %87 = dma.hbm_to_vmem [thread:$0]  %s7, 512, %s82, [#allocation9], 64, 64, 4
    $region33: #{model_forward.1} parent=1 // pred_fallthru
      _
    // Predicated region
    $region34: #{model_forward.1} parent=1 // pred_check
      _
    $region35: #{model_forward.1} parent=1 // pred_check_branch
      %89 = sbr.rel (0) target = $region37
    $region36: #{model_forward.1} parent=1 // pred_region
      %s91 = ssub.s32 512, 512
      %92 = vsyncadd [#allocation12], %s91
      %s93 = sshll.u32 [#allocation11], 4
      %s94 = int_to_ptr.vmem [resolvable:$true] %s93
      %99 = dma.hbm_to_vmem [thread:$0]  %s8, 512, %s94, [#allocation12], 64, 64, 4
    $region37: #{model_forward.1} parent=1 // pred_fallthru
      _
    // Predicated region
    $region38: #{model_forward.1} parent=1 // pred_check
      _
    $region39: #{model_forward.1} parent=1 // pred_check_branch
      %101 = sbr.rel (0) target = $region41
    $region40: #{model_forward.1} parent=1 // pred_region
      %s103 = ssub.s32 16, 16
      %104 = vsyncadd [#allocation12], %s103
      %s106 = sshll.u32 [#allocation13], 4
      %s107 = int_to_ptr.vmem [resolvable:$true] %s106
      %109 = dma.hbm_to_vmem [thread:$0]  %s9, 16, %s107, [#allocation12]
    $region41: #{model_forward.1} parent=1 // pred_fallthru
      _
    // Predicated region
    $region42: #{model_forward.1} parent=1 // pred_check
      _
    $region43: #{model_forward.1} parent=1 // pred_check_branch
      %111 = sbr.rel (0) target = $region45
    $region44: #{model_forward.1} parent=1 // pred_region
      _
    $region45: #{model_forward.1} parent=1 // pred_fallthru
      _
    // Predicated region
    $region46: #{model_forward.1} parent=1 // pred_check
      _
    $region47: #{model_forward.1} parent=1 // pred_check_branch
      %113 = sbr.rel (0) target = $region49
    $region48: #{model_forward.1} parent=1 // pred_region
      %s115 = ssub.s32 16, 16
      %116 = vsyncadd [#allocation15], %s115
      %s118 = sshll.u32 [#allocation14], 4
      %s119 = int_to_ptr.vmem [resolvable:$true] %s118
      %121 = dma.hbm_to_vmem [thread:$0]  %s11, 16, %s119, [#allocation15]
    $region49: #{model_forward.1} parent=1 // pred_fallthru
      _
    // Predicated region
    $region50: #{model_forward.1} parent=1 // pred_check
      _
    $region51: #{model_forward.1} parent=1 // pred_check_branch
      %123 = sbr.rel (0) target = $region53
    $region52: #{model_forward.1} parent=1 // pred_region
      %s125 = ssub.s32 16, 16
      %126 = vsyncadd [#allocation15], %s125
      %s128 = sshll.u32 [#allocation16], 4
      %s129 = int_to_ptr.vmem [resolvable:$true] %s128
      %131 = dma.hbm_to_vmem [thread:$0]  %s12, 16, %s129, [#allocation15]
    $region53: #{model_forward.1} parent=1 // pred_fallthru
      _
    // Predicated region
    $region54: #{model_forward.1} parent=1 // pred_check
      _
    $region55: #{model_forward.1} parent=1 // pred_check_branch
      %133 = sbr.rel (0) target = $region57
    $region56: #{model_forward.1} parent=1 // pred_region
      _
    $region57: #{model_forward.1} parent=1 // pred_fallthru
      _
    // Predicated region
    $region58: #{model_forward.1} parent=1 // pred_check
      _
    $region59: #{model_forward.1} parent=1 // pred_check_branch
      %135 = sbr.rel (0) target = $region61
    $region60: #{model_forward.1} parent=1 // pred_region
      %136 = dma.done [#allocation4], 32
    $region61: #{model_forward.1} parent=1 // pred_fallthru
      _
    // Predicated region
    $region62: #{model_forward.1} parent=1 // pred_check
      _
    $region63: #{model_forward.1} parent=1 // pred_check_branch
      %138 = sbr.rel (0) target = $region65
    $region64: #{model_forward.1} parent=1 // pred_region
      %139 = dma.done [#allocation6], 1024
    $region65: #{model_forward.1} parent=1 // pred_fallthru
      _
    // Predicated region
    $region66: #{model_forward.1} parent=1 // pred_check
      _
    $region67: #{model_forward.1} parent=1 // pred_check_branch
      %141 = sbr.rel (0) target = $region69
    $region68: #{model_forward.1} parent=1 // pred_region
      %142 = dma.done [#allocation6], 1024
    $region69: #{model_forward.1} parent=1 // pred_fallthru
      _
    // Predicated region
    $region70: #{model_forward.1} parent=1 // pred_check
      _
    $region71: #{model_forward.1} parent=1 // pred_check_branch
      %144 = sbr.rel (0) target = $region73
    $region72: #{model_forward.1} parent=1 // pred_region
      %145 = dma.done [#allocation9], 32
    $region73: #{model_forward.1} parent=1 // pred_fallthru
      _
    // Predicated region
    $region74: #{model_forward.1} parent=1 // pred_check
      _
    $region75: #{model_forward.1} parent=1 // pred_check_branch
      %147 = sbr.rel (0) target = $region77
    $region76: #{model_forward.1} parent=1 // pred_region
      %148 = dma.done [#allocation9], 512
    $region77: #{model_forward.1} parent=1 // pred_fallthru
      _
    // Predicated region
    $region78: #{model_forward.1} parent=1 // pred_check
      _
    $region79: #{model_forward.1} parent=1 // pred_check_branch
      %150 = sbr.rel (0) target = $region81
    $region80: #{model_forward.1} parent=1 // pred_region
      %151 = dma.done [#allocation12], 512
    $region81: #{model_forward.1} parent=1 // pred_fallthru
      _
    // Predicated region
    $region82: #{model_forward.1} parent=1 // pred_check
      _
    $region83: #{model_forward.1} parent=1 // pred_check_branch
      %153 = sbr.rel (0) target = $region85
    $region84: #{model_forward.1} parent=1 // pred_region
      %154 = dma.done [#allocation12], 16
    $region85: #{model_forward.1} parent=1 // pred_fallthru
      _
    // Predicated region
    $region86: #{model_forward.1} parent=1 // pred_check
      _
    $region87: #{model_forward.1} parent=1 // pred_check_branch
      %156 = sbr.rel (0) target = $region89
    $region88: #{model_forward.1} parent=1 // pred_region
      %157 = dma.done [#allocation15], 16
    $region89: #{model_forward.1} parent=1 // pred_fallthru
      _
    // Predicated region
    $region90: #{model_forward.1} parent=1 // pred_check
      _
    $region91: #{model_forward.1} parent=1 // pred_check_branch
      %159 = sbr.rel (0) target = $region93
    $region92: #{model_forward.1} parent=1 // pred_region
      %160 = dma.done [#allocation15], 16
    $region93: #{model_forward.1} parent=1 // pred_fallthru
      _
    %v162 = vlaneseq
    %v163 = vand.u32 %v162, 127
    %v164 = vadd.s32 %v163, 128
    %vm165 = vcmp.ge.s32.totalorder %v163, 0
    %vm166 = vcmp.ge.s32.totalorder %v164, 0
    %vm167 = vcmp.lt.s32.totalorder %v163, 32
    %vm168 = vcmp.lt.s32.totalorder %v164, 32
    %vm169 = vmand %vm165, %vm167
    %vm170 = vmand %vm166, %vm168
    %vm171 = vcmp.ge.s32.totalorder %v163, 64
    %vm172 = vcmp.ge.s32.totalorder %v164, 64
    %vm173 = vcmp.lt.s32.totalorder %v163, 96
    %vm174 = vcmp.lt.s32.totalorder %v164, 96
    %vm175 = vmand %vm171, %vm173
    %vm176 = vmand %vm172, %vm174
    %vm177 = vmor %vm169, %vm175
    %vm178 = vmor %vm170, %vm176
    %vm179 = vcmp.ge.s32.totalorder %v163, 128
    %vm180 = vcmp.ge.s32.totalorder %v164, 128
    %vm181 = vcmp.lt.s32.totalorder %v163, 160
    %vm182 = vcmp.lt.s32.totalorder %v164, 160
    %vm183 = vmand %vm179, %vm181
    %vm184 = vmand %vm180, %vm182
    %vm185 = vmor %vm177, %vm183
    %vm186 = vmor %vm178, %vm184
    %vm187 = vcmp.ge.s32.totalorder %v163, 192
    %vm188 = vcmp.ge.s32.totalorder %v164, 192
    %vm189 = vcmp.lt.s32.totalorder %v163, 224
    %vm190 = vcmp.lt.s32.totalorder %v164, 224
    %vm191 = vmand %vm187, %vm189
    %vm192 = vmand %vm188, %vm190
    %vm193 = vmor %vm185, %vm191
    %vm194 = vmor %vm186, %vm192
    %v195 = vld [vmem:[%s0] sm:$0xff]
    %v196 = vld [vmem:[%s0 + $0x8] sm:$0xff]
    %v197 = vld [vmem:[%s0 + $0x10] sm:$0xff]
    %v198 = vld [vmem:[%s1] sm:$0xff]
    %v199 = vld [vmem:[%s1 + $0x8] sm:$0xff]
    %v200 = vld [vmem:[%s1 + $0x10] sm:$0xff]
    %v201 = vld [vmem:[%s1 + $0x18] sm:$0xff]
    %v202 = vld [vmem:[%s1 + $0x20] sm:$0xff]
    %v203 = vld [vmem:[%s1 + $0x28] sm:$0xff]
    %v204 = vld [vmem:[%s1 + $0x30] sm:$0xff]
    %v205 = vld [vmem:[%s1 + $0x38] sm:$0xff]
    %v206 = vld [vmem:[%s1 + $0x40] sm:$0xff]
    %v207 = vld [vmem:[%s1 + $0x48] sm:$0xff]
    %v208 = vld [vmem:[%s1 + $0x50] sm:$0xff]
    %v209 = vld [vmem:[%s1 + $0x58] sm:$0xff]
    %v210 = vld [vmem:[%s1 + $0x60] sm:$0xff]
    %v211 = vld [vmem:[%s1 + $0x68] sm:$0xff]
    %v212 = vld [vmem:[%s1 + $0x70] sm:$0xff]
    %v213 = vld [vmem:[%s1 + $0x78] sm:$0xff]
    %v214 = vld [vmem:[%s1 + $0x80] sm:$0xff]
    %v215 = vld [vmem:[%s1 + $0x88] sm:$0xff]
    %v216 = vld [vmem:[%s1 + $0x90] sm:$0xff]
    %v217 = vld [vmem:[%s1 + $0x98] sm:$0xff]
    %v218 = vld [vmem:[%s1 + $0xa0] sm:$0xff]
    %v219 = vld [vmem:[%s1 + $0xa8] sm:$0xff]
    %v220 = vld [vmem:[%s1 + $0xb0] sm:$0xff]
    %v221 = vld [vmem:[%s1 + $0xb8] sm:$0xff]
    %v222 = vld [vmem:[%s1 + $0xc0] sm:$0xff]
    %v223 = vld [vmem:[%s1 + $0xc8] sm:$0xff]
    %v224 = vld [vmem:[%s1 + $0xd0] sm:$0xff]
    %v225 = vld [vmem:[%s1 + $0xd8] sm:$0xff]
    %v226 = vld [vmem:[%s1 + $0xe0] sm:$0xff]
    %v227 = vld [vmem:[%s1 + $0xe8] sm:$0xff]
    %v228 = vld [vmem:[%s1 + $0xf0] sm:$0xff]
    %v229 = vld [vmem:[%s1 + $0xf8] sm:$0xff]
    %v230 = vld [vmem:[%s1 + $0x100] sm:$0xff]
    %v231 = vld [vmem:[%s1 + $0x108] sm:$0xff]
    %v232 = vld [vmem:[%s1 + $0x110] sm:$0xff]
    %v233 = vld [vmem:[%s1 + $0x118] sm:$0xff]
    %v234 = vld [vmem:[%s1 + $0x120] sm:$0xff]
    %v235 = vld [vmem:[%s1 + $0x128] sm:$0xff]
    %v236 = vld [vmem:[%s1 + $0x130] sm:$0xff]
    %v237 = vld [vmem:[%s1 + $0x138] sm:$0xff]
    %v238 = vld [vmem:[%s1 + $0x140] sm:$0xff]
    %v239 = vld [vmem:[%s1 + $0x148] sm:$0x33]
    %v240 = vld [vmem:[%s2] sm:$0xff]
    %v241 = vld [vmem:[%s2 + $0x8] sm:$0xff]
    %v242 = vld [vmem:[%s2 + $0x10] sm:$0xff]
    %v243 = vld [vmem:[%s2 + $0x18] sm:$0xff]
    %v244 = vld [vmem:[%s2 + $0x20] sm:$0xff]
    %v245 = vld [vmem:[%s2 + $0x28] sm:$0xff]
    %v246 = vld [vmem:[%s2 + $0x30] sm:$0xff]
    %v247 = vld [vmem:[%s2 + $0x38] sm:$0xff]
    %v248 = vld [vmem:[#allocation3] sm:$0x3]
    %v249 = vpack.c.bf16 %v195, %v195
    %v250 = vpack.c.bf16 %v196, %v196
    %v251 = vpack.c.bf16 %v197, %v197
    %v253 = vlaneseq
    %v254 = vshrl.u32 %v253, 7
    %v255 = vsub.s32 0, %v254
    %v256 = vrot.slane %v248, %v255
    %v257 = vlaneseq
    %v258 = vshrl.u32 %v257, 7
    %v259 = vsub.s32 1, %v258
    %v260 = vrot.slane %v248, %v259
    %v305 = vunpack.c.l.b16 %v198
    %v306 = vunpack.c.h.b16 %v198
    %v307 = vunpack.c.l.b16 %v199
    %v308 = vunpack.c.h.b16 %v199
    %v309 = vunpack.c.l.b16 %v200
    %v310 = vunpack.c.h.b16 %v200
    %v311 = vunpack.c.l.b16 %v201
    %v312 = vunpack.c.h.b16 %v201
    %v313 = vunpack.c.l.b16 %v202
    %v314 = vunpack.c.h.b16 %v202
    %v315 = vunpack.c.l.b16 %v203
    %v316 = vunpack.c.h.b16 %v203
    %v317 = vunpack.c.l.b16 %v204
    %v318 = vunpack.c.h.b16 %v204
    %v319 = vunpack.c.l.b16 %v205
    %v320 = vunpack.c.h.b16 %v205
    %v321 = vunpack.c.l.b16 %v206
    %v322 = vunpack.c.h.b16 %v206
    %v323 = vunpack.c.l.b16 %v207
    %v324 = vunpack.c.h.b16 %v207
    %v325 = vunpack.c.l.b16 %v208
    %v326 = vunpack.c.h.b16 %v208
    %v327 = vunpack.c.l.b16 %v209
    %v328 = vunpack.c.h.b16 %v209
    %v329 = vunpack.c.l.b16 %v210
    %v330 = vunpack.c.h.b16 %v210
    %v331 = vunpack.c.l.b16 %v211
    %v332 = vunpack.c.h.b16 %v211
    %v333 = vunpack.c.l.b16 %v212
    %v334 = vunpack.c.h.b16 %v212
    %v335 = vunpack.c.l.b16 %v213
    %v336 = vunpack.c.h.b16 %v213
    %v337 = vunpack.c.l.b16 %v214
    %v338 = vunpack.c.h.b16 %v214
    %v339 = vunpack.c.l.b16 %v215
    %v340 = vunpack.c.h.b16 %v215
    %v341 = vunpack.c.l.b16 %v216
    %v342 = vunpack.c.h.b16 %v216
    %v343 = vunpack.c.l.b16 %v217
    %v344 = vunpack.c.h.b16 %v217
    %v345 = vunpack.c.l.b16 %v218
    %v346 = vunpack.c.h.b16 %v218
    %v347 = vunpack.c.l.b16 %v219
    %v348 = vunpack.c.h.b16 %v219
    %v349 = vunpack.c.l.b16 %v220
    %v350 = vunpack.c.h.b16 %v220
    %v351 = vunpack.c.l.b16 %v221
    %v352 = vunpack.c.h.b16 %v221
    %v353 = vunpack.c.l.b16 %v222
    %v354 = vunpack.c.h.b16 %v222
    %v355 = vunpack.c.l.b16 %v223
    %v356 = vunpack.c.h.b16 %v223
    %v357 = vunpack.c.l.b16 %v224
    %v358 = vunpack.c.h.b16 %v224
    %v359 = vunpack.c.l.b16 %v225
    %v360 = vunpack.c.h.b16 %v225
    %v361 = vunpack.c.l.b16 %v226
    %v362 = vunpack.c.h.b16 %v226
    %v363 = vunpack.c.l.b16 %v227
    %v364 = vunpack.c.h.b16 %v227
    %v365 = vunpack.c.l.b16 %v228
    %v366 = vunpack.c.h.b16 %v228
    %v367 = vunpack.c.l.b16 %v229
    %v368 = vunpack.c.h.b16 %v229
    %v369 = vunpack.c.l.b16 %v230
    %v370 = vunpack.c.h.b16 %v230
    %v371 = vunpack.c.l.b16 %v231
    %v372 = vunpack.c.h.b16 %v231
    %v373 = vunpack.c.l.b16 %v232
    %v374 = vunpack.c.h.b16 %v232
    %v375 = vunpack.c.l.b16 %v233
    %v376 = vunpack.c.h.b16 %v233
    %v377 = vunpack.c.l.b16 %v234
    %v378 = vunpack.c.h.b16 %v234
    %v379 = vunpack.c.l.b16 %v235
    %v380 = vunpack.c.h.b16 %v235
    %v381 = vunpack.c.l.b16 %v236
    %v382 = vunpack.c.h.b16 %v236
    %v383 = vunpack.c.l.b16 %v237
    %v384 = vunpack.c.h.b16 %v237
    %v385 = vunpack.c.l.b16 %v238
    %v386 = vunpack.c.h.b16 %v238
    %v387 = vunpack.c.l.b16 %v239
    %v388 = vunpack.c.h.b16 %v239
    %v389 = vpack.c.b16 %v307, %v305
    %v390 = vpack.c.b16 %v308, %v306
    %v391 = vpack.c.b16 %v311, %v309
    %v392 = vpack.c.b16 %v312, %v310
    %v393 = vpack.c.b16 %v315, %v313
    %v394 = vpack.c.b16 %v316, %v314
    %v395 = vpack.c.b16 %v319, %v317
    %v396 = vpack.c.b16 %v320, %v318
    %v397 = vpack.c.b16 %v323, %v321
    %v398 = vpack.c.b16 %v324, %v322
    %v399 = vpack.c.b16 %v327, %v325
    %v400 = vpack.c.b16 %v328, %v326
    %v401 = vpack.c.b16 %v331, %v329
    %v402 = vpack.c.b16 %v332, %v330
    %v403 = vpack.c.b16 %v335, %v333
    %v404 = vpack.c.b16 %v336, %v334
    %v405 = vpack.c.b16 %v339, %v337
    %v406 = vpack.c.b16 %v340, %v338
    %v407 = vpack.c.b16 %v343, %v341
    %v408 = vpack.c.b16 %v344, %v342
    %v409 = vpack.c.b16 %v347, %v345
    %v410 = vpack.c.b16 %v348, %v346
    %v411 = vpack.c.b16 %v351, %v349
    %v412 = vpack.c.b16 %v352, %v350
    %v413 = vpack.c.b16 %v355, %v353
    %v414 = vpack.c.b16 %v356, %v354
    %v415 = vpack.c.b16 %v359, %v357
    %v416 = vpack.c.b16 %v360, %v358
    %v417 = vpack.c.b16 %v363, %v361
    %v418 = vpack.c.b16 %v364, %v362
    %v419 = vpack.c.b16 %v367, %v365
    %v420 = vpack.c.b16 %v368, %v366
    %v421 = vpack.c.b16 %v371, %v369
    %v422 = vpack.c.b16 %v372, %v370
    %v423 = vpack.c.b16 %v375, %v373
    %v424 = vpack.c.b16 %v376, %v374
    %v425 = vpack.c.b16 %v379, %v377
    %v426 = vpack.c.b16 %v380, %v378
    %v427 = vpack.c.b16 %v383, %v381
    %v428 = vpack.c.b16 %v384, %v382
    %v429 = vpack.c.b16 %v387, %v385
    %v430 = vpack.c.b16 %v388, %v386
    %vm471 = vcmask 621568
    %v473 = vsel %vm471, %v251, 0
    %vm475 = vcmask 1045504
    %v477 = vsel %vm475, %v429, 0
    %v480 = vsel %vm475, %v430, 0
    %482 = vmatprep.subr.bf16.mxu0 %v404
    %483 = vmatpush1.bf16.msra.mxu0 %v403
    %484 = vmatprep.subr.bf16.mxu0 %v402
    %485 = vmatpush1.bf16.msra.mxu0 %v401
    %486 = vmatprep.subr.bf16.mxu0 %v400
    %487 = vmatpush1.bf16.msra.mxu0 %v399
    %488 = vmatprep.subr.bf16.mxu0 %v398
    %489 = vmatpush1.bf16.msra.mxu0 %v397
    %490 = vmatprep.subr.bf16.mxu0 %v396
    %491 = vmatpush1.bf16.msra.mxu0 %v395
    %492 = vmatprep.subr.bf16.mxu0 %v394
    %493 = vmatpush1.bf16.msra.mxu0 %v393
    %494 = vmatprep.subr.bf16.mxu0 %v392
    %495 = vmatpush1.bf16.msra.mxu0 %v391
    %496 = vmatprep.subr.bf16.mxu0 %v390
    %497 = vmatpush1.bf16.msra.mxu0 %v389
    %498 = vmatprep.subr.bf16.mxu0 %v420
    %499 = vmatpush2.bf16.msra.mxu0 %v419
    %500 = vmatprep.subr.bf16.mxu0 %v418
    %501 = vmatpush2.bf16.msra.mxu0 %v417
    %502 = vmatprep.subr.bf16.mxu0 %v416
    %503 = vmatpush2.bf16.msra.mxu0 %v415
    %504 = vmatprep.subr.bf16.mxu0 %v414
    %505 = vmatpush2.bf16.msra.mxu0 %v413
    %506 = vmatprep.subr.bf16.mxu0 %v412
    %507 = vmatpush2.bf16.msra.mxu0 %v411
    %508 = vmatprep.subr.bf16.mxu0 %v410
    %509 = vmatpush2.bf16.msra.mxu0 %v409
    %510 = vmatprep.subr.bf16.mxu0 %v408
    %511 = vmatpush2.bf16.msra.mxu0 %v407
    %512 = vmatprep.subr.bf16.mxu0 %v406
    %513 = vmatpush2.bf16.msra.mxu0 %v405
    %514 = vmatprep.mubr.bf16.mxu0 %v250
    %515 = vmatmul.mubr.bf16.gmra.mxu0 %v249
    %v516 = vpop.f32.mrf.mxu0
    %v517 = vadd.f32 %v256, %v516
    %v518 = vpop.f32.mrf.mxu0
    %v519 = vadd.f32 %v260, %v518
    %v520 = vpop.f32.mrf.mxu0
    %v521 = vpop.f32.mrf.mxu0
    %522 = vdwg.mxu0
    %523 = vmatprep.subr.bf16.mxu0 0
    %524 = vmatpush1.bf16.msra.mxu0 0
    %525 = vmatprep.subr.bf16.mxu0 0
    %526 = vmatpush1.bf16.msra.mxu0 0
    %527 = vmatprep.subr.bf16.mxu0 0
    %528 = vmatpush1.bf16.msra.mxu0 0
    %529 = vmatprep.subr.bf16.mxu0 %v480
    %530 = vmatpush1.bf16.msra.mxu0 %v477
    %531 = vmatprep.subr.bf16.mxu0 %v428
    %532 = vmatpush1.bf16.msra.mxu0 %v427
    %533 = vmatprep.subr.bf16.mxu0 %v426
    %534 = vmatpush1.bf16.msra.mxu0 %v425
    %535 = vmatprep.subr.bf16.mxu0 %v424
    %536 = vmatpush1.bf16.msra.mxu0 %v423
    %537 = vmatprep.subr.bf16.mxu0 %v422
    %538 = vmatpush1.bf16.msra.mxu0 %v421
    %539 = vmatprep.subr.bf16.mxu0 0
    %540 = vmatpush2.bf16.msra.mxu0 0
    %541 = vmatprep.subr.bf16.mxu0 0
    %542 = vmatpush2.bf16.msra.mxu0 0
    %543 = vmatprep.subr.bf16.mxu0 0
    %544 = vmatpush2.bf16.msra.mxu0 0
    %545 = vmatprep.subr.bf16.mxu0 0
    %546 = vmatpush2.bf16.msra.mxu0 0
    %547 = vmatprep.subr.bf16.mxu0 0
    %548 = vmatpush2.bf16.msra.mxu0 0
    %549 = vmatprep.subr.bf16.mxu0 0
    %550 = vmatpush2.bf16.msra.mxu0 0
    %551 = vmatprep.subr.bf16.mxu0 0
    %552 = vmatpush2.bf16.msra.mxu0 0
    %553 = vmatprep.subr.bf16.mxu0 0
    %554 = vmatpush2.bf16.msra.mxu0 0
    %555 = vmatprep.mubr.bf16.mxu0 0
    %556 = vmatmul.mubr.bf16.gmra.mxu0 %v473
    %v557 = vpop.f32.mrf.mxu0
    %v558 = vadd.f32 %v517, %v557
    %v559 = vpop.f32.mrf.mxu0
    %v560 = vadd.f32 %v519, %v559
    %v561 = vpop.f32.mrf.mxu0
    %v562 = vpop.f32.mrf.mxu0
    %563 = vdwg.mxu0
    %v566 = vrot.slane %v558, 7
    %v567 = vrot.slane %v560, 7
    %v570 = vsel %vm193, %v558, %v566
    %v571 = vsel %vm194, %v560, %v567
    %v572 = vrot.slane %v558, 5
    %v573 = vrot.slane %v560, 5
    %v576 = vsel %vm193, %v558, %v572
    %v577 = vsel %vm194, %v560, %v573
    %v578 = vrot.slane %v558, 3
    %v579 = vrot.slane %v560, 3
    %v582 = vsel %vm193, %v558, %v578
    %v583 = vsel %vm194, %v560, %v579
    %v584 = vrot.slane %v558, 1
    %v585 = vrot.slane %v560, 1
    %v588 = vsel %vm193, %v558, %v584
    %v589 = vsel %vm194, %v560, %v585
    %v598 = vunpack.c.l.b16 %v240
    %v599 = vunpack.c.h.b16 %v240
    %v600 = vunpack.c.l.b16 %v241
    %v601 = vunpack.c.h.b16 %v241
    %v602 = vunpack.c.l.b16 %v242
    %v603 = vunpack.c.h.b16 %v242
    %v604 = vunpack.c.l.b16 %v243
    %v605 = vunpack.c.h.b16 %v243
    %v606 = vunpack.c.l.b16 %v244
    %v607 = vunpack.c.h.b16 %v244
    %v608 = vunpack.c.l.b16 %v245
    %v609 = vunpack.c.h.b16 %v245
    %v610 = vunpack.c.l.b16 %v246
    %v611 = vunpack.c.h.b16 %v246
    %v612 = vunpack.c.l.b16 %v247
    %v613 = vunpack.c.h.b16 %v247
    %v614 = vpack.c.b16 %v600, %v598
    %v615 = vpack.c.b16 %v601, %v599
    %v616 = vpack.c.b16 %v604, %v602
    %v617 = vpack.c.b16 %v605, %v603
    %v618 = vpack.c.b16 %v608, %v606
    %v619 = vpack.c.b16 %v609, %v607
    %v620 = vpack.c.b16 %v612, %v610
    %v621 = vpack.c.b16 %v613, %v611
    %vm630 = vcmask 523264
    %v632 = vsel %vm630, 0, 0
    %634 = vmatprep.subr.bf16.mxu0 0
    %635 = vmatpush1.bf16.msra.mxu0 0
    %636 = vmatprep.subr.bf16.mxu0 0
    %637 = vmatpush1.bf16.msra.mxu0 0
    %638 = vmatprep.subr.bf16.mxu0 0
    %639 = vmatpush1.bf16.msra.mxu0 0
    %640 = vmatprep.subr.bf16.mxu0 0
    %641 = vmatpush1.bf16.msra.mxu0 0
    %642 = vmatprep.subr.bf16.mxu0 %v621
    %643 = vmatpush1.bf16.msra.mxu0 %v620
    %644 = vmatprep.subr.bf16.mxu0 %v619
    %645 = vmatpush1.bf16.msra.mxu0 %v618
    %646 = vmatprep.subr.bf16.mxu0 %v617
    %647 = vmatpush1.bf16.msra.mxu0 %v616
    %648 = vmatprep.subr.bf16.mxu0 %v615
    %649 = vmatpush1.bf16.msra.mxu0 %v614
    %650 = vmatprep.subr.bf16.mxu0 0
    %651 = vmatpush2.bf16.msra.mxu0 0
    %652 = vmatprep.subr.bf16.mxu0 0
    %653 = vmatpush2.bf16.msra.mxu0 0
    %654 = vmatprep.subr.bf16.mxu0 0
    %655 = vmatpush2.bf16.msra.mxu0 0
    %656 = vmatprep.subr.bf16.mxu0 0
    %657 = vmatpush2.bf16.msra.mxu0 0
    %658 = vmatprep.subr.bf16.mxu0 0
    %659 = vmatpush2.bf16.msra.mxu0 0
    %660 = vmatprep.subr.bf16.mxu0 0
    %661 = vmatpush2.bf16.msra.mxu0 0
    %662 = vmatprep.subr.bf16.mxu0 0
    %663 = vmatpush2.bf16.msra.mxu0 0
    %664 = vmatprep.subr.bf16.mxu0 0
    %665 = vmatpush2.bf16.msra.mxu0 0
    %666 = vmatprep.mubr.bf16.mxu0 0
    %667 = vmatmul.mubr.bf16.gmra.mxu0 %v632
    %v668 = vpop.f32.mrf.mxu0
    %v669 = vadd.f32 0.0, %v668
    %v670 = vpop.f32.mrf.mxu0
    %v671 = vadd.f32 0.0, %v670
    %v672 = vpop.f32.mrf.mxu0
    %v673 = vpop.f32.mrf.mxu0
    %674 = vdwg.mxu0
    %v675 = vadd.f32 %v570, %v669
    %v676 = vadd.f32 %v571, %v671
    %v677 = vxor.u32 %v675, 2147483648
    %v678 = vmul.f32 %v677, 1.442695
    %v679 = vpow.pop %v678
    %v680 = vadd.f32 %v679, 1.0
    %v681 = vrcp.pop %v680
    %v682 = vmul.f32 1.0, %v681
    %v683 = vtanh.pop %v676
    %v684 = vxor.u32 %v676, 2147483648
    %v685 = vmul.f32 %v684, 1.442695
    %v686 = vpow.pop %v685
    %v687 = vadd.f32 %v686, 1.0
    %v688 = vrcp.pop %v687
    %v689 = vmul.f32 1.0, %v688
    %v690 = vmul.f32 %v682, 0.0
    %v691 = vmul.f32 %v682, %v683
    %693 = vrot.lane.b32.xlu0 %v691, 64
    %v694 = vpop.permute.xlu0 %693
    %v696 = vadd.f32 %v690, %v694
    %v697 = vtanh.pop %v696
    %v698 = vmul.f32 %v689, %v697
    %v699 = vpack.c.bf16 %v698, %v698
    %701 = vrot.lane.b32.xlu0 %v699, 64
    %v702 = vpop.permute.xlu0 %701
    %v704 = vsel %vm630, %v702, 0
    %706 = vmatprep.subr.bf16.mxu0 0
    %707 = vmatpush1.bf16.msra.mxu0 0
    %708 = vmatprep.subr.bf16.mxu0 0
    %709 = vmatpush1.bf16.msra.mxu0 0
    %710 = vmatprep.subr.bf16.mxu0 0
    %711 = vmatpush1.bf16.msra.mxu0 0
    %712 = vmatprep.subr.bf16.mxu0 0
    %713 = vmatpush1.bf16.msra.mxu0 0
    %714 = vmatprep.subr.bf16.mxu0 %v621
    %715 = vmatpush1.bf16.msra.mxu0 %v620
    %716 = vmatprep.subr.bf16.mxu0 %v619
    %717 = vmatpush1.bf16.msra.mxu0 %v618
    %718 = vmatprep.subr.bf16.mxu0 %v617
    %719 = vmatpush1.bf16.msra.mxu0 %v616
    %720 = vmatprep.subr.bf16.mxu0 %v615
    %721 = vmatpush1.bf16.msra.mxu0 %v614
    %722 = vmatprep.subr.bf16.mxu0 0
    %723 = vmatpush2.bf16.msra.mxu0 0
    %724 = vmatprep.subr.bf16.mxu0 0
    %725 = vmatpush2.bf16.msra.mxu0 0
    %726 = vmatprep.subr.bf16.mxu0 0
    %727 = vmatpush2.bf16.msra.mxu0 0
    %728 = vmatprep.subr.bf16.mxu0 0
    %729 = vmatpush2.bf16.msra.mxu0 0
    %730 = vmatprep.subr.bf16.mxu0 0
    %731 = vmatpush2.bf16.msra.mxu0 0
    %732 = vmatprep.subr.bf16.mxu0 0
    %733 = vmatpush2.bf16.msra.mxu0 0
    %734 = vmatprep.subr.bf16.mxu0 0
    %735 = vmatpush2.bf16.msra.mxu0 0
    %736 = vmatprep.subr.bf16.mxu0 0
    %737 = vmatpush2.bf16.msra.mxu0 0
    %738 = vmatprep.mubr.bf16.mxu0 0
    %739 = vmatmul.mubr.bf16.gmra.mxu0 %v704
    %v740 = vpop.f32.mrf.mxu0
    %v741 = vadd.f32 0.0, %v740
    %v742 = vpop.f32.mrf.mxu0
    %v743 = vadd.f32 0.0, %v742
    %v744 = vpop.f32.mrf.mxu0
    %v745 = vpop.f32.mrf.mxu0
    %746 = vdwg.mxu0
    %v749 = vrot.slane %v741, 7
    %v750 = vrot.slane %v743, 7
    %v753 = vadd.f32 %v576, %v749
    %v754 = vadd.f32 %v577, %v750
    %v755 = vxor.u32 %v753, 2147483648
    %v756 = vmul.f32 %v755, 1.442695
    %v757 = vpow.pop %v756
    %v758 = vadd.f32 %v757, 1.0
    %v759 = vrcp.pop %v758
    %v760 = vmul.f32 1.0, %v759
    %v761 = vtanh.pop %v754
    %v762 = vxor.u32 %v754, 2147483648
    %v763 = vmul.f32 %v762, 1.442695
    %v764 = vpow.pop %v763
    %v765 = vadd.f32 %v764, 1.0
    %v766 = vrcp.pop %v765
    %v767 = vmul.f32 1.0, %v766
    %v769 = vrot.slane %v696, 7
    %v771 = vmul.f32 %v760, %v769
    %v772 = vmul.f32 %v760, %v761
    %774 = vrot.lane.b32.xlu0 %v772, 64
    %v775 = vpop.permute.xlu0 %774
    %v777 = vadd.f32 %v771, %v775
    %v778 = vtanh.pop %v777
    %v779 = vmul.f32 %v767, %v778
    %v780 = vpack.c.bf16 %v779, %v779
    %v782 = vshrl.u32 %v780, 16
    %784 = vrot.lane.b32.xlu0 %v782, 64
    %v785 = vpop.permute.xlu0 %784
    %v787 = vsel %vm630, %v785, 0
    %789 = vmatprep.subr.bf16.mxu0 0
    %790 = vmatpush1.bf16.msra.mxu0 0
    %791 = vmatprep.subr.bf16.mxu0 0
    %792 = vmatpush1.bf16.msra.mxu0 0
    %793 = vmatprep.subr.bf16.mxu0 0
    %794 = vmatpush1.bf16.msra.mxu0 0
    %795 = vmatprep.subr.bf16.mxu0 0
    %796 = vmatpush1.bf16.msra.mxu0 0
    %797 = vmatprep.subr.bf16.mxu0 %v621
    %798 = vmatpush1.bf16.msra.mxu0 %v620
    %799 = vmatprep.subr.bf16.mxu0 %v619
    %800 = vmatpush1.bf16.msra.mxu0 %v618
    %801 = vmatprep.subr.bf16.mxu0 %v617
    %802 = vmatpush1.bf16.msra.mxu0 %v616
    %803 = vmatprep.subr.bf16.mxu0 %v615
    %804 = vmatpush1.bf16.msra.mxu0 %v614
    %805 = vmatprep.subr.bf16.mxu0 0
    %806 = vmatpush2.bf16.msra.mxu0 0
    %807 = vmatprep.subr.bf16.mxu0 0
    %808 = vmatpush2.bf16.msra.mxu0 0
    %809 = vmatprep.subr.bf16.mxu0 0
    %810 = vmatpush2.bf16.msra.mxu0 0
    %811 = vmatprep.subr.bf16.mxu0 0
    %812 = vmatpush2.bf16.msra.mxu0 0
    %813 = vmatprep.subr.bf16.mxu0 0
    %814 = vmatpush2.bf16.msra.mxu0 0
    %815 = vmatprep.subr.bf16.mxu0 0
    %816 = vmatpush2.bf16.msra.mxu0 0
    %817 = vmatprep.subr.bf16.mxu0 0
    %818 = vmatpush2.bf16.msra.mxu0 0
    %819 = vmatprep.subr.bf16.mxu0 0
    %820 = vmatpush2.bf16.msra.mxu0 0
    %821 = vmatprep.mubr.bf16.mxu0 0
    %822 = vmatmul.mubr.bf16.gmra.mxu0 %v787
    %v823 = vpop.f32.mrf.mxu0
    %v824 = vadd.f32 0.0, %v823
    %v825 = vpop.f32.mrf.mxu0
    %v826 = vadd.f32 0.0, %v825
    %v827 = vpop.f32.mrf.mxu0
    %v828 = vpop.f32.mrf.mxu0
    %829 = vdwg.mxu0
    %v832 = vrot.slane %v824, 6
    %v833 = vrot.slane %v826, 6
    %v836 = vadd.f32 %v582, %v832
    %v837 = vadd.f32 %v583, %v833
    %v838 = vxor.u32 %v836, 2147483648
    %v839 = vmul.f32 %v838, 1.442695
    %v840 = vpow.pop %v839
    %v841 = vadd.f32 %v840, 1.0
    %v842 = vrcp.pop %v841
    %v843 = vmul.f32 1.0, %v842
    %v844 = vtanh.pop %v837
    %v845 = vxor.u32 %v837, 2147483648
    %v846 = vmul.f32 %v845, 1.442695
    %v847 = vpow.pop %v846
    %v848 = vadd.f32 %v847, 1.0
    %v849 = vrcp.pop %v848
    %v850 = vmul.f32 1.0, %v849
    %v852 = vrot.slane %v777, 7
    %v854 = vmul.f32 %v843, %v852
    %v855 = vmul.f32 %v843, %v844
    %857 = vrot.lane.b32.xlu0 %v855, 64
    %v858 = vpop.permute.xlu0 %857
    %v860 = vadd.f32 %v854, %v858
    %v861 = vtanh.pop %v860
    %v862 = vmul.f32 %v850, %v861
    %v863 = vpack.c.bf16 %v862, %v862
    %v865 = vrot.slane %v863, 1
    %866 = vrot.lane.b32.xlu0 %v865, 64
    %v867 = vpop.permute.xlu0 %866
    %v869 = vsel %vm630, %v867, 0
    %871 = vmatprep.subr.bf16.mxu0 0
    %872 = vmatpush1.bf16.msra.mxu0 0
    %873 = vmatprep.subr.bf16.mxu0 0
    %874 = vmatpush1.bf16.msra.mxu0 0
    %875 = vmatprep.subr.bf16.mxu0 0
    %876 = vmatpush1.bf16.msra.mxu0 0
    %877 = vmatprep.subr.bf16.mxu0 0
    %878 = vmatpush1.bf16.msra.mxu0 0
    %879 = vmatprep.subr.bf16.mxu0 %v621
    %880 = vmatpush1.bf16.msra.mxu0 %v620
    %881 = vmatprep.subr.bf16.mxu0 %v619
    %882 = vmatpush1.bf16.msra.mxu0 %v618
    %883 = vmatprep.subr.bf16.mxu0 %v617
    %884 = vmatpush1.bf16.msra.mxu0 %v616
    %885 = vmatprep.subr.bf16.mxu0 %v615
    %886 = vmatpush1.bf16.msra.mxu0 %v614
    %887 = vmatprep.subr.bf16.mxu0 0
    %888 = vmatpush2.bf16.msra.mxu0 0
    %889 = vmatprep.subr.bf16.mxu0 0
    %890 = vmatpush2.bf16.msra.mxu0 0
    %891 = vmatprep.subr.bf16.mxu0 0
    %892 = vmatpush2.bf16.msra.mxu0 0
    %893 = vmatprep.subr.bf16.mxu0 0
    %894 = vmatpush2.bf16.msra.mxu0 0
    %895 = vmatprep.subr.bf16.mxu0 0
    %896 = vmatpush2.bf16.msra.mxu0 0
    %897 = vmatprep.subr.bf16.mxu0 0
    %898 = vmatpush2.bf16.msra.mxu0 0
    %899 = vmatprep.subr.bf16.mxu0 0
    %900 = vmatpush2.bf16.msra.mxu0 0
    %901 = vmatprep.subr.bf16.mxu0 0
    %902 = vmatpush2.bf16.msra.mxu0 0
    %903 = vmatprep.mubr.bf16.mxu0 0
    %904 = vmatmul.mubr.bf16.gmra.mxu0 %v869
    %v905 = vpop.f32.mrf.mxu0
    %v906 = vadd.f32 0.0, %v905
    %v907 = vpop.f32.mrf.mxu0
    %v908 = vadd.f32 0.0, %v907
    %v909 = vpop.f32.mrf.mxu0
    %v910 = vpop.f32.mrf.mxu0
    %911 = vdwg.mxu0
    %v914 = vrot.slane %v906, 5
    %v915 = vrot.slane %v908, 5
    %v918 = vadd.f32 %v588, %v914
    %v919 = vadd.f32 %v589, %v915
    %v920 = vxor.u32 %v918, 2147483648
    %v921 = vmul.f32 %v920, 1.442695
    %v922 = vpow.pop %v921
    %v923 = vadd.f32 %v922, 1.0
    %v924 = vrcp.pop %v923
    %v925 = vmul.f32 1.0, %v924
    %v926 = vtanh.pop %v919
    %v927 = vxor.u32 %v919, 2147483648
    %v928 = vmul.f32 %v927, 1.442695
    %v929 = vpow.pop %v928
    %v930 = vadd.f32 %v929, 1.0
    %v931 = vrcp.pop %v930
    %v932 = vmul.f32 1.0, %v931
    %v934 = vrot.slane %v860, 7
    %v936 = vmul.f32 %v925, %v934
    %v937 = vmul.f32 %v925, %v926
    %939 = vrot.lane.b32.xlu0 %v937, 64
    %v940 = vpop.permute.xlu0 %939
    %v942 = vadd.f32 %v936, %v940
    %v943 = vtanh.pop %v942
    %v944 = vmul.f32 %v932, %v943
    %v945 = vpack.c.bf16 %v944, %v944
    %v947 = vshrl.u32 %v945, 16
    %v949 = vrot.slane %v947, 1
    %950 = vrot.lane.b32.xlu0 %v949, 64
    %v951 = vpop.permute.xlu0 %950
    %v953 = vsel %vm630, %v951, 0
    %955 = vmatprep.subr.bf16.mxu0 0
    %956 = vmatpush1.bf16.msra.mxu0 0
    %957 = vmatprep.subr.bf16.mxu0 0
    %958 = vmatpush1.bf16.msra.mxu0 0
    %959 = vmatprep.subr.bf16.mxu0 0
    %960 = vmatpush1.bf16.msra.mxu0 0
    %961 = vmatprep.subr.bf16.mxu0 0
    %962 = vmatpush1.bf16.msra.mxu0 0
    %963 = vmatprep.subr.bf16.mxu0 %v621
    %964 = vmatpush1.bf16.msra.mxu0 %v620
    %965 = vmatprep.subr.bf16.mxu0 %v619
    %966 = vmatpush1.bf16.msra.mxu0 %v618
    %967 = vmatprep.subr.bf16.mxu0 %v617
    %968 = vmatpush1.bf16.msra.mxu0 %v616
    %969 = vmatprep.subr.bf16.mxu0 %v615
    %970 = vmatpush1.bf16.msra.mxu0 %v614
    %971 = vmatprep.subr.bf16.mxu0 0
    %972 = vmatpush2.bf16.msra.mxu0 0
    %973 = vmatprep.subr.bf16.mxu0 0
    %974 = vmatpush2.bf16.msra.mxu0 0
    %975 = vmatprep.subr.bf16.mxu0 0
    %976 = vmatpush2.bf16.msra.mxu0 0
    %977 = vmatprep.subr.bf16.mxu0 0
    %978 = vmatpush2.bf16.msra.mxu0 0
    %979 = vmatprep.subr.bf16.mxu0 0
    %980 = vmatpush2.bf16.msra.mxu0 0
    %981 = vmatprep.subr.bf16.mxu0 0
    %982 = vmatpush2.bf16.msra.mxu0 0
    %983 = vmatprep.subr.bf16.mxu0 0
    %984 = vmatpush2.bf16.msra.mxu0 0
    %985 = vmatprep.subr.bf16.mxu0 0
    %986 = vmatpush2.bf16.msra.mxu0 0
    %987 = vmatprep.mubr.bf16.mxu0 0
    %988 = vmatmul.mubr.bf16.gmra.mxu0 %v953
    %v989 = vpop.f32.mrf.mxu0
    %v990 = vadd.f32 0.0, %v989
    %v991 = vpop.f32.mrf.mxu0
    %v992 = vadd.f32 0.0, %v991
    %v993 = vpop.f32.mrf.mxu0
    %v994 = vpop.f32.mrf.mxu0
    %995 = vdwg.mxu0
    %v998 = vrot.slane %v990, 4
    %v999 = vrot.slane %v992, 4
    %v1002 = vadd.f32 %v570, %v998
    %v1003 = vadd.f32 %v571, %v999
    %v1004 = vxor.u32 %v1002, 2147483648
    %v1005 = vmul.f32 %v1004, 1.442695
    %v1006 = vpow.pop %v1005
    %v1007 = vadd.f32 %v1006, 1.0
    %v1008 = vrcp.pop %v1007
    %v1009 = vmul.f32 1.0, %v1008
    %v1010 = vtanh.pop %v1003
    %v1011 = vxor.u32 %v1003, 2147483648
    %v1012 = vmul.f32 %v1011, 1.442695
    %v1013 = vpow.pop %v1012
    %v1014 = vadd.f32 %v1013, 1.0
    %v1015 = vrcp.pop %v1014
    %v1016 = vmul.f32 1.0, %v1015
    %v1018 = vrot.slane %v942, 7
    %v1020 = vmul.f32 %v1009, %v1018
    %v1021 = vmul.f32 %v1009, %v1010
    %1023 = vrot.lane.b32.xlu0 %v1021, 64
    %v1024 = vpop.permute.xlu0 %1023
    %v1026 = vadd.f32 %v1020, %v1024
    %v1027 = vtanh.pop %v1026
    %v1028 = vmul.f32 %v1016, %v1027
    %v1029 = vpack.c.bf16 %v1028, %v1028
    %v1031 = vrot.slane %v1029, 2
    %1032 = vrot.lane.b32.xlu0 %v1031, 64
    %v1033 = vpop.permute.xlu0 %1032
    %v1035 = vsel %vm630, %v1033, 0
    %1037 = vmatprep.subr.bf16.mxu0 0
    %1038 = vmatpush1.bf16.msra.mxu0 0
    %1039 = vmatprep.subr.bf16.mxu0 0
    %1040 = vmatpush1.bf16.msra.mxu0 0
    %1041 = vmatprep.subr.bf16.mxu0 0
    %1042 = vmatpush1.bf16.msra.mxu0 0
    %1043 = vmatprep.subr.bf16.mxu0 0
    %1044 = vmatpush1.bf16.msra.mxu0 0
    %1045 = vmatprep.subr.bf16.mxu0 %v621
    %1046 = vmatpush1.bf16.msra.mxu0 %v620
    %1047 = vmatprep.subr.bf16.mxu0 %v619
    %1048 = vmatpush1.bf16.msra.mxu0 %v618
    %1049 = vmatprep.subr.bf16.mxu0 %v617
    %1050 = vmatpush1.bf16.msra.mxu0 %v616
    %1051 = vmatprep.subr.bf16.mxu0 %v615
    %1052 = vmatpush1.bf16.msra.mxu0 %v614
    %1053 = vmatprep.subr.bf16.mxu0 0
    %1054 = vmatpush2.bf16.msra.mxu0 0
    %1055 = vmatprep.subr.bf16.mxu0 0
    %1056 = vmatpush2.bf16.msra.mxu0 0
    %1057 = vmatprep.subr.bf16.mxu0 0
    %1058 = vmatpush2.bf16.msra.mxu0 0
    %1059 = vmatprep.subr.bf16.mxu0 0
    %1060 = vmatpush2.bf16.msra.mxu0 0
    %1061 = vmatprep.subr.bf16.mxu0 0
    %1062 = vmatpush2.bf16.msra.mxu0 0
    %1063 = vmatprep.subr.bf16.mxu0 0
    %1064 = vmatpush2.bf16.msra.mxu0 0
    %1065 = vmatprep.subr.bf16.mxu0 0
    %1066 = vmatpush2.bf16.msra.mxu0 0
    %1067 = vmatprep.subr.bf16.mxu0 0
    %1068 = vmatpush2.bf16.msra.mxu0 0
    %1069 = vmatprep.mubr.bf16.mxu0 0
    %1070 = vmatmul.mubr.bf16.gmra.mxu0 %v1035
    %v1071 = vpop.f32.mrf.mxu0
    %v1072 = vadd.f32 0.0, %v1071
    %v1073 = vpop.f32.mrf.mxu0
    %v1074 = vadd.f32 0.0, %v1073
    %v1075 = vpop.f32.mrf.mxu0
    %v1076 = vpop.f32.mrf.mxu0
    %1077 = vdwg.mxu0
    %v1080 = vrot.slane %v1072, 3
    %v1081 = vrot.slane %v1074, 3
    %v1084 = vadd.f32 %v576, %v1080
    %v1085 = vadd.f32 %v577, %v1081
    %v1086 = vxor.u32 %v1084, 2147483648
    %v1087 = vmul.f32 %v1086, 1.442695
    %v1088 = vpow.pop %v1087
    %v1089 = vadd.f32 %v1088, 1.0
    %v1090 = vrcp.pop %v1089
    %v1091 = vmul.f32 1.0, %v1090
    %v1092 = vtanh.pop %v1085
    %v1093 = vxor.u32 %v1085, 2147483648
    %v1094 = vmul.f32 %v1093, 1.442695
    %v1095 = vpow.pop %v1094
    %v1096 = vadd.f32 %v1095, 1.0
    %v1097 = vrcp.pop %v1096
    %v1098 = vmul.f32 1.0, %v1097
    %v1100 = vrot.slane %v1026, 7
    %v1102 = vmul.f32 %v1091, %v1100
    %v1103 = vmul.f32 %v1091, %v1092
    %1105 = vrot.lane.b32.xlu0 %v1103, 64
    %v1106 = vpop.permute.xlu0 %1105
    %v1108 = vadd.f32 %v1102, %v1106
    %v1109 = vtanh.pop %v1108
    %v1110 = vmul.f32 %v1098, %v1109
    %v1111 = vpack.c.bf16 %v1110, %v1110
    %v1113 = vshrl.u32 %v1111, 16
    %v1115 = vrot.slane %v1113, 2
    %1116 = vrot.lane.b32.xlu0 %v1115, 64
    %v1117 = vpop.permute.xlu0 %1116
    %v1119 = vsel %vm630, %v1117, 0
    %1121 = vmatprep.subr.bf16.mxu0 0
    %1122 = vmatpush1.bf16.msra.mxu0 0
    %1123 = vmatprep.subr.bf16.mxu0 0
    %1124 = vmatpush1.bf16.msra.mxu0 0
    %1125 = vmatprep.subr.bf16.mxu0 0
    %1126 = vmatpush1.bf16.msra.mxu0 0
    %1127 = vmatprep.subr.bf16.mxu0 0
    %1128 = vmatpush1.bf16.msra.mxu0 0
    %1129 = vmatprep.subr.bf16.mxu0 %v621
    %1130 = vmatpush1.bf16.msra.mxu0 %v620
    %1131 = vmatprep.subr.bf16.mxu0 %v619
    %1132 = vmatpush1.bf16.msra.mxu0 %v618
    %1133 = vmatprep.subr.bf16.mxu0 %v617
    %1134 = vmatpush1.bf16.msra.mxu0 %v616
    %1135 = vmatprep.subr.bf16.mxu0 %v615
    %1136 = vmatpush1.bf16.msra.mxu0 %v614
    %1137 = vmatprep.subr.bf16.mxu0 0
    %1138 = vmatpush2.bf16.msra.mxu0 0
    %1139 = vmatprep.subr.bf16.mxu0 0
    %1140 = vmatpush2.bf16.msra.mxu0 0
    %1141 = vmatprep.subr.bf16.mxu0 0
    %1142 = vmatpush2.bf16.msra.mxu0 0
    %1143 = vmatprep.subr.bf16.mxu0 0
    %1144 = vmatpush2.bf16.msra.mxu0 0
    %1145 = vmatprep.subr.bf16.mxu0 0
    %1146 = vmatpush2.bf16.msra.mxu0 0
    %1147 = vmatprep.subr.bf16.mxu0 0
    %1148 = vmatpush2.bf16.msra.mxu0 0
    %1149 = vmatprep.subr.bf16.mxu0 0
    %1150 = vmatpush2.bf16.msra.mxu0 0
    %1151 = vmatprep.subr.bf16.mxu0 0
    %1152 = vmatpush2.bf16.msra.mxu0 0
    %1153 = vmatprep.mubr.bf16.mxu0 0
    %1154 = vmatmul.mubr.bf16.gmra.mxu0 %v1119
    %v1155 = vpop.f32.mrf.mxu0
    %v1156 = vadd.f32 0.0, %v1155
    %v1157 = vpop.f32.mrf.mxu0
    %v1158 = vadd.f32 0.0, %v1157
    %v1159 = vpop.f32.mrf.mxu0
    %v1160 = vpop.f32.mrf.mxu0
    %1161 = vdwg.mxu0
    %v1164 = vrot.slane %v1156, 2
    %v1165 = vrot.slane %v1158, 2
    %v1168 = vadd.f32 %v582, %v1164
    %v1169 = vadd.f32 %v583, %v1165
    %v1170 = vxor.u32 %v1168, 2147483648
    %v1171 = vmul.f32 %v1170, 1.442695
    %v1172 = vpow.pop %v1171
    %v1173 = vadd.f32 %v1172, 1.0
    %v1174 = vrcp.pop %v1173
    %v1175 = vmul.f32 1.0, %v1174
    %v1176 = vtanh.pop %v1169
    %v1177 = vxor.u32 %v1169, 2147483648
    %v1178 = vmul.f32 %v1177, 1.442695
    %v1179 = vpow.pop %v1178
    %v1180 = vadd.f32 %v1179, 1.0
    %v1181 = vrcp.pop %v1180
    %v1182 = vmul.f32 1.0, %v1181
    %v1184 = vrot.slane %v1108, 7
    %v1186 = vmul.f32 %v1175, %v1184
    %v1187 = vmul.f32 %v1175, %v1176
    %1189 = vrot.lane.b32.xlu0 %v1187, 64
    %v1190 = vpop.permute.xlu0 %1189
    %v1192 = vadd.f32 %v1186, %v1190
    %v1193 = vtanh.pop %v1192
    %v1194 = vmul.f32 %v1182, %v1193
    %v1195 = vpack.c.bf16 %v1194, %v1194
    %v1197 = vrot.slane %v1195, 3
    %1198 = vrot.lane.b32.xlu0 %v1197, 64
    %v1199 = vpop.permute.xlu0 %1198
    %v1201 = vsel %vm630, %v1199, 0
    %1203 = vmatprep.subr.bf16.mxu0 0
    %1204 = vmatpush1.bf16.msra.mxu0 0
    %1205 = vmatprep.subr.bf16.mxu0 0
    %1206 = vmatpush1.bf16.msra.mxu0 0
    %1207 = vmatprep.subr.bf16.mxu0 0
    %1208 = vmatpush1.bf16.msra.mxu0 0
    %1209 = vmatprep.subr.bf16.mxu0 0
    %1210 = vmatpush1.bf16.msra.mxu0 0
    %1211 = vmatprep.subr.bf16.mxu0 %v621
    %1212 = vmatpush1.bf16.msra.mxu0 %v620
    %1213 = vmatprep.subr.bf16.mxu0 %v619
    %1214 = vmatpush1.bf16.msra.mxu0 %v618
    %1215 = vmatprep.subr.bf16.mxu0 %v617
    %1216 = vmatpush1.bf16.msra.mxu0 %v616
    %1217 = vmatprep.subr.bf16.mxu0 %v615
    %1218 = vmatpush1.bf16.msra.mxu0 %v614
    %1219 = vmatprep.subr.bf16.mxu0 0
    %1220 = vmatpush2.bf16.msra.mxu0 0
    %1221 = vmatprep.subr.bf16.mxu0 0
    %1222 = vmatpush2.bf16.msra.mxu0 0
    %1223 = vmatprep.subr.bf16.mxu0 0
    %1224 = vmatpush2.bf16.msra.mxu0 0
    %1225 = vmatprep.subr.bf16.mxu0 0
    %1226 = vmatpush2.bf16.msra.mxu0 0
    %1227 = vmatprep.subr.bf16.mxu0 0
    %1228 = vmatpush2.bf16.msra.mxu0 0
    %1229 = vmatprep.subr.bf16.mxu0 0
    %1230 = vmatpush2.bf16.msra.mxu0 0
    %1231 = vmatprep.subr.bf16.mxu0 0
    %1232 = vmatpush2.bf16.msra.mxu0 0
    %1233 = vmatprep.subr.bf16.mxu0 0
    %1234 = vmatpush2.bf16.msra.mxu0 0
    %1235 = vmatprep.mubr.bf16.mxu0 0
    %1236 = vmatmul.mubr.bf16.gmra.mxu0 %v1201
    %v1237 = vpop.f32.mrf.mxu0
    %v1238 = vadd.f32 0.0, %v1237
    %v1239 = vpop.f32.mrf.mxu0
    %v1240 = vadd.f32 0.0, %v1239
    %v1241 = vpop.f32.mrf.mxu0
    %v1242 = vpop.f32.mrf.mxu0
    %1243 = vdwg.mxu0
    %v1246 = vrot.slane %v1238, 1
    %v1247 = vrot.slane %v1240, 1
    %v1250 = vadd.f32 %v588, %v1246
    %v1251 = vadd.f32 %v589, %v1247
    %v1252 = vxor.u32 %v1250, 2147483648
    %v1253 = vmul.f32 %v1252, 1.442695
    %v1254 = vpow.pop %v1253
    %v1255 = vadd.f32 %v1254, 1.0
    %v1256 = vrcp.pop %v1255
    %v1257 = vmul.f32 1.0, %v1256
    %v1258 = vtanh.pop %v1251
    %v1259 = vxor.u32 %v1251, 2147483648
    %v1260 = vmul.f32 %v1259, 1.442695
    %v1261 = vpow.pop %v1260
    %v1262 = vadd.f32 %v1261, 1.0
    %v1263 = vrcp.pop %v1262
    %v1264 = vmul.f32 1.0, %v1263
    %v1266 = vrot.slane %v1192, 7
    %v1268 = vmul.f32 %v1257, %v1266
    %v1269 = vmul.f32 %v1257, %v1258
    %1271 = vrot.lane.b32.xlu0 %v1269, 64
    %v1272 = vpop.permute.xlu0 %1271
    %v1274 = vadd.f32 %v1268, %v1272
    %v1275 = vtanh.pop %v1274
    %v1276 = vmul.f32 %v1264, %v1275
    %vm1277 = vcmask 1040384
    %v1278 = vsel %vm1277, %v698, %v779
    %vm1279 = vcmask 1041408
    %v1280 = vsel %vm1279, %v1278, %v862
    %vm1281 = vcmask 1042432
    %v1282 = vsel %vm1281, %v1280, %v944
    %vm1283 = vcmask 1043456
    %v1284 = vsel %vm1283, %v1282, %v1028
    %vm1285 = vcmask 1044480
    %v1286 = vsel %vm1285, %v1284, %v1110
    %v1287 = vsel %vm475, %v1286, %v1194
    %vm1288 = vcmask 1046528
    %v1289 = vsel %vm1288, %v1287, %v1276
    %v1291 = vrot.slane %v1276, 7
    %v1294 = vrot.slane %v1194, 5
    %v1297 = vrot.slane %v1110, 3
    %v1300 = vrot.slane %v1028, 1
    %v1303 = vrot.slane %v944, 7
    %v1306 = vrot.slane %v862, 5
    %v1309 = vrot.slane %v779, 3
    %v1312 = vrot.slane %v698, 1
    %v1314 = vsel %vm1277, %v1291, %v1294
    %v1315 = vsel %vm1279, %v1314, %v1297
    %v1316 = vsel %vm1281, %v1315, %v1300
    %v1317 = vsel %vm1283, %v1316, %v1303
    %v1318 = vsel %vm1285, %v1317, %v1306
    %v1319 = vsel %vm475, %v1318, %v1309
    %v1320 = vsel %vm1288, %v1319, %v1312
    %v1321 = vsel %vm167, 1, 0
    %vm1322 = vcmp.eq.s32.totalorder %v1321, 1
    %1324 = vrot.lane.b32.xlu0 %v1289, 64
    %v1325 = vpop.permute.xlu0 %1324
    %1328 = vrot.lane.b32.xlu0 %v1320, 64
    %v1329 = vpop.permute.xlu0 %1328
    %v1331 = vsel %vm1322, %v1325, %v1329
    %v1332 = vld [vmem:[#allocation5] sm:$0xff]
    %v1333 = vld [vmem:[#allocation5 + $0x8] sm:$0xff]
    %v1334 = vld [vmem:[#allocation5 + $0x10] sm:$0xff]
    %v1335 = vld [vmem:[#allocation5 + $0x18] sm:$0xff]
    %v1336 = vld [vmem:[#allocation5 + $0x20] sm:$0xff]
    %v1337 = vld [vmem:[#allocation5 + $0x28] sm:$0xff]
    %v1338 = vld [vmem:[#allocation5 + $0x30] sm:$0xff]
    %v1339 = vld [vmem:[#allocation5 + $0x38] sm:$0xff]
    %v1340 = vld [vmem:[#allocation7] sm:$0xff]
    %v1341 = vld [vmem:[#allocation7 + $0x8] sm:$0xff]
    %v1342 = vld [vmem:[#allocation7 + $0x10] sm:$0xff]
    %v1343 = vld [vmem:[#allocation7 + $0x18] sm:$0xff]
    %v1344 = vld [vmem:[#allocation7 + $0x20] sm:$0xff]
    %v1345 = vld [vmem:[#allocation7 + $0x28] sm:$0xff]
    %v1346 = vld [vmem:[#allocation7 + $0x30] sm:$0xff]
    %v1347 = vld [vmem:[#allocation7 + $0x38] sm:$0xff]
    %v1348 = vld [vmem:[#allocation8] sm:$0x3]
    %v1349 = vpack.c.bf16 %v1331, %v1331
    %v1351 = vlaneseq
    %v1352 = vshrl.u32 %v1351, 7
    %v1353 = vsub.s32 0, %v1352
    %v1354 = vrot.slane %v1348, %v1353
    %v1355 = vlaneseq
    %v1356 = vshrl.u32 %v1355, 7
    %v1357 = vsub.s32 1, %v1356
    %v1358 = vrot.slane %v1348, %v1357
    %v1369 = vunpack.c.l.b16 %v1332
    %v1370 = vunpack.c.h.b16 %v1332
    %v1371 = vunpack.c.l.b16 %v1333
    %v1372 = vunpack.c.h.b16 %v1333
    %v1373 = vunpack.c.l.b16 %v1334
    %v1374 = vunpack.c.h.b16 %v1334
    %v1375 = vunpack.c.l.b16 %v1335
    %v1376 = vunpack.c.h.b16 %v1335
    %v1377 = vunpack.c.l.b16 %v1336
    %v1378 = vunpack.c.h.b16 %v1336
    %v1379 = vunpack.c.l.b16 %v1337
    %v1380 = vunpack.c.h.b16 %v1337
    %v1381 = vunpack.c.l.b16 %v1338
    %v1382 = vunpack.c.h.b16 %v1338
    %v1383 = vunpack.c.l.b16 %v1339
    %v1384 = vunpack.c.h.b16 %v1339
    %v1385 = vpack.c.b16 %v1371, %v1369
    %v1386 = vpack.c.b16 %v1372, %v1370
    %v1387 = vpack.c.b16 %v1375, %v1373
    %v1388 = vpack.c.b16 %v1376, %v1374
    %v1389 = vpack.c.b16 %v1379, %v1377
    %v1390 = vpack.c.b16 %v1380, %v1378
    %v1391 = vpack.c.b16 %v1383, %v1381
    %v1392 = vpack.c.b16 %v1384, %v1382
    %v1402 = vsel %vm630, %v1349, 0
    %1404 = vmatprep.subr.bf16.mxu0 0
    %1405 = vmatpush1.bf16.msra.mxu0 0
    %1406 = vmatprep.subr.bf16.mxu0 0
    %1407 = vmatpush1.bf16.msra.mxu0 0
    %1408 = vmatprep.subr.bf16.mxu0 0
    %1409 = vmatpush1.bf16.msra.mxu0 0
    %1410 = vmatprep.subr.bf16.mxu0 0
    %1411 = vmatpush1.bf16.msra.mxu0 0
    %1412 = vmatprep.subr.bf16.mxu0 %v1392
    %1413 = vmatpush1.bf16.msra.mxu0 %v1391
    %1414 = vmatprep.subr.bf16.mxu0 %v1390
    %1415 = vmatpush1.bf16.msra.mxu0 %v1389
    %1416 = vmatprep.subr.bf16.mxu0 %v1388
    %1417 = vmatpush1.bf16.msra.mxu0 %v1387
    %1418 = vmatprep.subr.bf16.mxu0 %v1386
    %1419 = vmatpush1.bf16.msra.mxu0 %v1385
    %1420 = vmatprep.subr.bf16.mxu0 0
    %1421 = vmatpush2.bf16.msra.mxu0 0
    %1422 = vmatprep.subr.bf16.mxu0 0
    %1423 = vmatpush2.bf16.msra.mxu0 0
    %1424 = vmatprep.subr.bf16.mxu0 0
    %1425 = vmatpush2.bf16.msra.mxu0 0
    %1426 = vmatprep.subr.bf16.mxu0 0
    %1427 = vmatpush2.bf16.msra.mxu0 0
    %1428 = vmatprep.subr.bf16.mxu0 0
    %1429 = vmatpush2.bf16.msra.mxu0 0
    %1430 = vmatprep.subr.bf16.mxu0 0
    %1431 = vmatpush2.bf16.msra.mxu0 0
    %1432 = vmatprep.subr.bf16.mxu0 0
    %1433 = vmatpush2.bf16.msra.mxu0 0
    %1434 = vmatprep.subr.bf16.mxu0 0
    %1435 = vmatpush2.bf16.msra.mxu0 0
    %1436 = vmatprep.mubr.bf16.mxu0 0
    %1437 = vmatmul.mubr.bf16.gmra.mxu0 %v1402
    %v1438 = vpop.f32.mrf.mxu0
    %v1439 = vadd.f32 %v1354, %v1438
    %v1440 = vpop.f32.mrf.mxu0
    %v1441 = vadd.f32 %v1358, %v1440
    %v1442 = vpop.f32.mrf.mxu0
    %v1443 = vpop.f32.mrf.mxu0
    %1444 = vdwg.mxu0
    %v1447 = vrot.slane %v1439, 7
    %v1448 = vrot.slane %v1441, 7
    %v1451 = vsel %vm193, %v1439, %v1447
    %v1452 = vsel %vm194, %v1441, %v1448
    %v1453 = vrot.slane %v1439, 5
    %v1454 = vrot.slane %v1441, 5
    %v1457 = vsel %vm193, %v1439, %v1453
    %v1458 = vsel %vm194, %v1441, %v1454
    %v1459 = vrot.slane %v1439, 3
    %v1460 = vrot.slane %v1441, 3
    %v1463 = vsel %vm193, %v1439, %v1459
    %v1464 = vsel %vm194, %v1441, %v1460
    %v1465 = vrot.slane %v1439, 1
    %v1466 = vrot.slane %v1441, 1
    %v1469 = vsel %vm193, %v1439, %v1465
    %v1470 = vsel %vm194, %v1441, %v1466
    %v1479 = vunpack.c.l.b16 %v1340
    %v1480 = vunpack.c.h.b16 %v1340
    %v1481 = vunpack.c.l.b16 %v1341
    %v1482 = vunpack.c.h.b16 %v1341
    %v1483 = vunpack.c.l.b16 %v1342
    %v1484 = vunpack.c.h.b16 %v1342
    %v1485 = vunpack.c.l.b16 %v1343
    %v1486 = vunpack.c.h.b16 %v1343
    %v1487 = vunpack.c.l.b16 %v1344
    %v1488 = vunpack.c.h.b16 %v1344
    %v1489 = vunpack.c.l.b16 %v1345
    %v1490 = vunpack.c.h.b16 %v1345
    %v1491 = vunpack.c.l.b16 %v1346
    %v1492 = vunpack.c.h.b16 %v1346
    %v1493 = vunpack.c.l.b16 %v1347
    %v1494 = vunpack.c.h.b16 %v1347
    %v1495 = vpack.c.b16 %v1481, %v1479
    %v1496 = vpack.c.b16 %v1482, %v1480
    %v1497 = vpack.c.b16 %v1485, %v1483
    %v1498 = vpack.c.b16 %v1486, %v1484
    %v1499 = vpack.c.b16 %v1489, %v1487
    %v1500 = vpack.c.b16 %v1490, %v1488
    %v1501 = vpack.c.b16 %v1493, %v1491
    %v1502 = vpack.c.b16 %v1494, %v1492
    %1511 = vmatprep.subr.bf16.mxu0 0
    %1512 = vmatpush1.bf16.msra.mxu0 0
    %1513 = vmatprep.subr.bf16.mxu0 0
    %1514 = vmatpush1.bf16.msra.mxu0 0
    %1515 = vmatprep.subr.bf16.mxu0 0
    %1516 = vmatpush1.bf16.msra.mxu0 0
    %1517 = vmatprep.subr.bf16.mxu0 0
    %1518 = vmatpush1.bf16.msra.mxu0 0
    %1519 = vmatprep.subr.bf16.mxu0 %v1502
    %1520 = vmatpush1.bf16.msra.mxu0 %v1501
    %1521 = vmatprep.subr.bf16.mxu0 %v1500
    %1522 = vmatpush1.bf16.msra.mxu0 %v1499
    %1523 = vmatprep.subr.bf16.mxu0 %v1498
    %1524 = vmatpush1.bf16.msra.mxu0 %v1497
    %1525 = vmatprep.subr.bf16.mxu0 %v1496
    %1526 = vmatpush1.bf16.msra.mxu0 %v1495
    %1527 = vmatprep.subr.bf16.mxu0 0
    %1528 = vmatpush2.bf16.msra.mxu0 0
    %1529 = vmatprep.subr.bf16.mxu0 0
    %1530 = vmatpush2.bf16.msra.mxu0 0
    %1531 = vmatprep.subr.bf16.mxu0 0
    %1532 = vmatpush2.bf16.msra.mxu0 0
    %1533 = vmatprep.subr.bf16.mxu0 0
    %1534 = vmatpush2.bf16.msra.mxu0 0
    %1535 = vmatprep.subr.bf16.mxu0 0
    %1536 = vmatpush2.bf16.msra.mxu0 0
    %1537 = vmatprep.subr.bf16.mxu0 0
    %1538 = vmatpush2.bf16.msra.mxu0 0
    %1539 = vmatprep.subr.bf16.mxu0 0
    %1540 = vmatpush2.bf16.msra.mxu0 0
    %1541 = vmatprep.subr.bf16.mxu0 0
    %1542 = vmatpush2.bf16.msra.mxu0 0
    %1543 = vmatprep.mubr.bf16.mxu0 0
    %1544 = vmatmul.mubr.bf16.gmra.mxu0 %v632
    %v1545 = vpop.f32.mrf.mxu0
    %v1546 = vadd.f32 0.0, %v1545
    %v1547 = vpop.f32.mrf.mxu0
    %v1548 = vadd.f32 0.0, %v1547
    %v1549 = vpop.f32.mrf.mxu0
    %v1550 = vpop.f32.mrf.mxu0
    %1551 = vdwg.mxu0
    %v1552 = vadd.f32 %v1451, %v1546
    %v1553 = vadd.f32 %v1452, %v1548
    %v1554 = vxor.u32 %v1552, 2147483648
    %v1555 = vmul.f32 %v1554, 1.442695
    %v1556 = vpow.pop %v1555
    %v1557 = vadd.f32 %v1556, 1.0
    %v1558 = vrcp.pop %v1557
    %v1559 = vmul.f32 1.0, %v1558
    %v1560 = vtanh.pop %v1553
    %v1561 = vxor.u32 %v1553, 2147483648
    %v1562 = vmul.f32 %v1561, 1.442695
    %v1563 = vpow.pop %v1562
    %v1564 = vadd.f32 %v1563, 1.0
    %v1565 = vrcp.pop %v1564
    %v1566 = vmul.f32 1.0, %v1565
    %v1567 = vmul.f32 %v1559, 0.0
    %v1568 = vmul.f32 %v1559, %v1560
    %1570 = vrot.lane.b32.xlu0 %v1568, 64
    %v1571 = vpop.permute.xlu0 %1570
    %v1573 = vadd.f32 %v1567, %v1571
    %v1574 = vtanh.pop %v1573
    %v1575 = vmul.f32 %v1566, %v1574
    %v1576 = vpack.c.bf16 %v1575, %v1575
    %1578 = vrot.lane.b32.xlu0 %v1576, 64
    %v1579 = vpop.permute.xlu0 %1578
    %v1581 = vsel %vm630, %v1579, 0
    %1583 = vmatprep.subr.bf16.mxu0 0
    %1584 = vmatpush1.bf16.msra.mxu0 0
    %1585 = vmatprep.subr.bf16.mxu0 0
    %1586 = vmatpush1.bf16.msra.mxu0 0
    %1587 = vmatprep.subr.bf16.mxu0 0
    %1588 = vmatpush1.bf16.msra.mxu0 0
    %1589 = vmatprep.subr.bf16.mxu0 0
    %1590 = vmatpush1.bf16.msra.mxu0 0
    %1591 = vmatprep.subr.bf16.mxu0 %v1502
    %1592 = vmatpush1.bf16.msra.mxu0 %v1501
    %1593 = vmatprep.subr.bf16.mxu0 %v1500
    %1594 = vmatpush1.bf16.msra.mxu0 %v1499
    %1595 = vmatprep.subr.bf16.mxu0 %v1498
    %1596 = vmatpush1.bf16.msra.mxu0 %v1497
    %1597 = vmatprep.subr.bf16.mxu0 %v1496
    %1598 = vmatpush1.bf16.msra.mxu0 %v1495
    %1599 = vmatprep.subr.bf16.mxu0 0
    %1600 = vmatpush2.bf16.msra.mxu0 0
    %1601 = vmatprep.subr.bf16.mxu0 0
    %1602 = vmatpush2.bf16.msra.mxu0 0
    %1603 = vmatprep.subr.bf16.mxu0 0
    %1604 = vmatpush2.bf16.msra.mxu0 0
    %1605 = vmatprep.subr.bf16.mxu0 0
    %1606 = vmatpush2.bf16.msra.mxu0 0
    %1607 = vmatprep.subr.bf16.mxu0 0
    %1608 = vmatpush2.bf16.msra.mxu0 0
    %1609 = vmatprep.subr.bf16.mxu0 0
    %1610 = vmatpush2.bf16.msra.mxu0 0
    %1611 = vmatprep.subr.bf16.mxu0 0
    %1612 = vmatpush2.bf16.msra.mxu0 0
    %1613 = vmatprep.subr.bf16.mxu0 0
    %1614 = vmatpush2.bf16.msra.mxu0 0
    %1615 = vmatprep.mubr.bf16.mxu0 0
    %1616 = vmatmul.mubr.bf16.gmra.mxu0 %v1581
    %v1617 = vpop.f32.mrf.mxu0
    %v1618 = vadd.f32 0.0, %v1617
    %v1619 = vpop.f32.mrf.mxu0
    %v1620 = vadd.f32 0.0, %v1619
    %v1621 = vpop.f32.mrf.mxu0
    %v1622 = vpop.f32.mrf.mxu0
    %1623 = vdwg.mxu0
    %v1626 = vrot.slane %v1618, 7
    %v1627 = vrot.slane %v1620, 7
    %v1630 = vadd.f32 %v1457, %v1626
    %v1631 = vadd.f32 %v1458, %v1627
    %v1632 = vxor.u32 %v1630, 2147483648
    %v1633 = vmul.f32 %v1632, 1.442695
    %v1634 = vpow.pop %v1633
    %v1635 = vadd.f32 %v1634, 1.0
    %v1636 = vrcp.pop %v1635
    %v1637 = vmul.f32 1.0, %v1636
    %v1638 = vtanh.pop %v1631
    %v1639 = vxor.u32 %v1631, 2147483648
    %v1640 = vmul.f32 %v1639, 1.442695
    %v1641 = vpow.pop %v1640
    %v1642 = vadd.f32 %v1641, 1.0
    %v1643 = vrcp.pop %v1642
    %v1644 = vmul.f32 1.0, %v1643
    %v1646 = vrot.slane %v1573, 7
    %v1648 = vmul.f32 %v1637, %v1646
    %v1649 = vmul.f32 %v1637, %v1638
    %1651 = vrot.lane.b32.xlu0 %v1649, 64
    %v1652 = vpop.permute.xlu0 %1651
    %v1654 = vadd.f32 %v1648, %v1652
    %v1655 = vtanh.pop %v1654
    %v1656 = vmul.f32 %v1644, %v1655
    %v1657 = vpack.c.bf16 %v1656, %v1656
    %v1659 = vshrl.u32 %v1657, 16
    %1661 = vrot.lane.b32.xlu0 %v1659, 64
    %v1662 = vpop.permute.xlu0 %1661
    %v1664 = vsel %vm630, %v1662, 0
    %1666 = vmatprep.subr.bf16.mxu0 0
    %1667 = vmatpush1.bf16.msra.mxu0 0
    %1668 = vmatprep.subr.bf16.mxu0 0
    %1669 = vmatpush1.bf16.msra.mxu0 0
    %1670 = vmatprep.subr.bf16.mxu0 0
    %1671 = vmatpush1.bf16.msra.mxu0 0
    %1672 = vmatprep.subr.bf16.mxu0 0
    %1673 = vmatpush1.bf16.msra.mxu0 0
    %1674 = vmatprep.subr.bf16.mxu0 %v1502
    %1675 = vmatpush1.bf16.msra.mxu0 %v1501
    %1676 = vmatprep.subr.bf16.mxu0 %v1500
    %1677 = vmatpush1.bf16.msra.mxu0 %v1499
    %1678 = vmatprep.subr.bf16.mxu0 %v1498
    %1679 = vmatpush1.bf16.msra.mxu0 %v1497
    %1680 = vmatprep.subr.bf16.mxu0 %v1496
    %1681 = vmatpush1.bf16.msra.mxu0 %v1495
    %1682 = vmatprep.subr.bf16.mxu0 0
    %1683 = vmatpush2.bf16.msra.mxu0 0
    %1684 = vmatprep.subr.bf16.mxu0 0
    %1685 = vmatpush2.bf16.msra.mxu0 0
    %1686 = vmatprep.subr.bf16.mxu0 0
    %1687 = vmatpush2.bf16.msra.mxu0 0
    %1688 = vmatprep.subr.bf16.mxu0 0
    %1689 = vmatpush2.bf16.msra.mxu0 0
    %1690 = vmatprep.subr.bf16.mxu0 0
    %1691 = vmatpush2.bf16.msra.mxu0 0
    %1692 = vmatprep.subr.bf16.mxu0 0
    %1693 = vmatpush2.bf16.msra.mxu0 0
    %1694 = vmatprep.subr.bf16.mxu0 0
    %1695 = vmatpush2.bf16.msra.mxu0 0
    %1696 = vmatprep.subr.bf16.mxu0 0
    %1697 = vmatpush2.bf16.msra.mxu0 0
    %1698 = vmatprep.mubr.bf16.mxu0 0
    %1699 = vmatmul.mubr.bf16.gmra.mxu0 %v1664
    %v1700 = vpop.f32.mrf.mxu0
    %v1701 = vadd.f32 0.0, %v1700
    %v1702 = vpop.f32.mrf.mxu0
    %v1703 = vadd.f32 0.0, %v1702
    %v1704 = vpop.f32.mrf.mxu0
    %v1705 = vpop.f32.mrf.mxu0
    %1706 = vdwg.mxu0
    %v1709 = vrot.slane %v1701, 6
    %v1710 = vrot.slane %v1703, 6
    %v1713 = vadd.f32 %v1463, %v1709
    %v1714 = vadd.f32 %v1464, %v1710
    %v1715 = vxor.u32 %v1713, 2147483648
    %v1716 = vmul.f32 %v1715, 1.442695
    %v1717 = vpow.pop %v1716
    %v1718 = vadd.f32 %v1717, 1.0
    %v1719 = vrcp.pop %v1718
    %v1720 = vmul.f32 1.0, %v1719
    %v1721 = vtanh.pop %v1714
    %v1722 = vxor.u32 %v1714, 2147483648
    %v1723 = vmul.f32 %v1722, 1.442695
    %v1724 = vpow.pop %v1723
    %v1725 = vadd.f32 %v1724, 1.0
    %v1726 = vrcp.pop %v1725
    %v1727 = vmul.f32 1.0, %v1726
    %v1729 = vrot.slane %v1654, 7
    %v1731 = vmul.f32 %v1720, %v1729
    %v1732 = vmul.f32 %v1720, %v1721
    %1734 = vrot.lane.b32.xlu0 %v1732, 64
    %v1735 = vpop.permute.xlu0 %1734
    %v1737 = vadd.f32 %v1731, %v1735
    %v1738 = vtanh.pop %v1737
    %v1739 = vmul.f32 %v1727, %v1738
    %v1740 = vpack.c.bf16 %v1739, %v1739
    %v1742 = vrot.slane %v1740, 1
    %1743 = vrot.lane.b32.xlu0 %v1742, 64
    %v1744 = vpop.permute.xlu0 %1743
    %v1746 = vsel %vm630, %v1744, 0
    %1748 = vmatprep.subr.bf16.mxu0 0
    %1749 = vmatpush1.bf16.msra.mxu0 0
    %1750 = vmatprep.subr.bf16.mxu0 0
    %1751 = vmatpush1.bf16.msra.mxu0 0
    %1752 = vmatprep.subr.bf16.mxu0 0
    %1753 = vmatpush1.bf16.msra.mxu0 0
    %1754 = vmatprep.subr.bf16.mxu0 0
    %1755 = vmatpush1.bf16.msra.mxu0 0
    %1756 = vmatprep.subr.bf16.mxu0 %v1502
    %1757 = vmatpush1.bf16.msra.mxu0 %v1501
    %1758 = vmatprep.subr.bf16.mxu0 %v1500
    %1759 = vmatpush1.bf16.msra.mxu0 %v1499
    %1760 = vmatprep.subr.bf16.mxu0 %v1498
    %1761 = vmatpush1.bf16.msra.mxu0 %v1497
    %1762 = vmatprep.subr.bf16.mxu0 %v1496
    %1763 = vmatpush1.bf16.msra.mxu0 %v1495
    %1764 = vmatprep.subr.bf16.mxu0 0
    %1765 = vmatpush2.bf16.msra.mxu0 0
    %1766 = vmatprep.subr.bf16.mxu0 0
    %1767 = vmatpush2.bf16.msra.mxu0 0
    %1768 = vmatprep.subr.bf16.mxu0 0
    %1769 = vmatpush2.bf16.msra.mxu0 0
    %1770 = vmatprep.subr.bf16.mxu0 0
    %1771 = vmatpush2.bf16.msra.mxu0 0
    %1772 = vmatprep.subr.bf16.mxu0 0
    %1773 = vmatpush2.bf16.msra.mxu0 0
    %1774 = vmatprep.subr.bf16.mxu0 0
    %1775 = vmatpush2.bf16.msra.mxu0 0
    %1776 = vmatprep.subr.bf16.mxu0 0
    %1777 = vmatpush2.bf16.msra.mxu0 0
    %1778 = vmatprep.subr.bf16.mxu0 0
    %1779 = vmatpush2.bf16.msra.mxu0 0
    %1780 = vmatprep.mubr.bf16.mxu0 0
    %1781 = vmatmul.mubr.bf16.gmra.mxu0 %v1746
    %v1782 = vpop.f32.mrf.mxu0
    %v1783 = vadd.f32 0.0, %v1782
    %v1784 = vpop.f32.mrf.mxu0
    %v1785 = vadd.f32 0.0, %v1784
    %v1786 = vpop.f32.mrf.mxu0
    %v1787 = vpop.f32.mrf.mxu0
    %1788 = vdwg.mxu0
    %v1791 = vrot.slane %v1783, 5
    %v1792 = vrot.slane %v1785, 5
    %v1795 = vadd.f32 %v1469, %v1791
    %v1796 = vadd.f32 %v1470, %v1792
    %v1797 = vxor.u32 %v1795, 2147483648
    %v1798 = vmul.f32 %v1797, 1.442695
    %v1799 = vpow.pop %v1798
    %v1800 = vadd.f32 %v1799, 1.0
    %v1801 = vrcp.pop %v1800
    %v1802 = vmul.f32 1.0, %v1801
    %v1803 = vtanh.pop %v1796
    %v1804 = vxor.u32 %v1796, 2147483648
    %v1805 = vmul.f32 %v1804, 1.442695
    %v1806 = vpow.pop %v1805
    %v1807 = vadd.f32 %v1806, 1.0
    %v1808 = vrcp.pop %v1807
    %v1809 = vmul.f32 1.0, %v1808
    %v1811 = vrot.slane %v1737, 7
    %v1813 = vmul.f32 %v1802, %v1811
    %v1814 = vmul.f32 %v1802, %v1803
    %1816 = vrot.lane.b32.xlu0 %v1814, 64
    %v1817 = vpop.permute.xlu0 %1816
    %v1819 = vadd.f32 %v1813, %v1817
    %v1820 = vtanh.pop %v1819
    %v1821 = vmul.f32 %v1809, %v1820
    %v1822 = vpack.c.bf16 %v1821, %v1821
    %v1824 = vshrl.u32 %v1822, 16
    %v1826 = vrot.slane %v1824, 1
    %1827 = vrot.lane.b32.xlu0 %v1826, 64
    %v1828 = vpop.permute.xlu0 %1827
    %v1830 = vsel %vm630, %v1828, 0
    %1832 = vmatprep.subr.bf16.mxu0 0
    %1833 = vmatpush1.bf16.msra.mxu0 0
    %1834 = vmatprep.subr.bf16.mxu0 0
    %1835 = vmatpush1.bf16.msra.mxu0 0
    %1836 = vmatprep.subr.bf16.mxu0 0
    %1837 = vmatpush1.bf16.msra.mxu0 0
    %1838 = vmatprep.subr.bf16.mxu0 0
    %1839 = vmatpush1.bf16.msra.mxu0 0
    %1840 = vmatprep.subr.bf16.mxu0 %v1502
    %1841 = vmatpush1.bf16.msra.mxu0 %v1501
    %1842 = vmatprep.subr.bf16.mxu0 %v1500
    %1843 = vmatpush1.bf16.msra.mxu0 %v1499
    %1844 = vmatprep.subr.bf16.mxu0 %v1498
    %1845 = vmatpush1.bf16.msra.mxu0 %v1497
    %1846 = vmatprep.subr.bf16.mxu0 %v1496
    %1847 = vmatpush1.bf16.msra.mxu0 %v1495
    %1848 = vmatprep.subr.bf16.mxu0 0
    %1849 = vmatpush2.bf16.msra.mxu0 0
    %1850 = vmatprep.subr.bf16.mxu0 0
    %1851 = vmatpush2.bf16.msra.mxu0 0
    %1852 = vmatprep.subr.bf16.mxu0 0
    %1853 = vmatpush2.bf16.msra.mxu0 0
    %1854 = vmatprep.subr.bf16.mxu0 0
    %1855 = vmatpush2.bf16.msra.mxu0 0
    %1856 = vmatprep.subr.bf16.mxu0 0
    %1857 = vmatpush2.bf16.msra.mxu0 0
    %1858 = vmatprep.subr.bf16.mxu0 0
    %1859 = vmatpush2.bf16.msra.mxu0 0
    %1860 = vmatprep.subr.bf16.mxu0 0
    %1861 = vmatpush2.bf16.msra.mxu0 0
    %1862 = vmatprep.subr.bf16.mxu0 0
    %1863 = vmatpush2.bf16.msra.mxu0 0
    %1864 = vmatprep.mubr.bf16.mxu0 0
    %1865 = vmatmul.mubr.bf16.gmra.mxu0 %v1830
    %v1866 = vpop.f32.mrf.mxu0
    %v1867 = vadd.f32 0.0, %v1866
    %v1868 = vpop.f32.mrf.mxu0
    %v1869 = vadd.f32 0.0, %v1868
    %v1870 = vpop.f32.mrf.mxu0
    %v1871 = vpop.f32.mrf.mxu0
    %1872 = vdwg.mxu0
    %v1875 = vrot.slane %v1867, 4
    %v1876 = vrot.slane %v1869, 4
    %v1879 = vadd.f32 %v1451, %v1875
    %v1880 = vadd.f32 %v1452, %v1876
    %v1881 = vxor.u32 %v1879, 2147483648
    %v1882 = vmul.f32 %v1881, 1.442695
    %v1883 = vpow.pop %v1882
    %v1884 = vadd.f32 %v1883, 1.0
    %v1885 = vrcp.pop %v1884
    %v1886 = vmul.f32 1.0, %v1885
    %v1887 = vtanh.pop %v1880
    %v1888 = vxor.u32 %v1880, 2147483648
    %v1889 = vmul.f32 %v1888, 1.442695
    %v1890 = vpow.pop %v1889
    %v1891 = vadd.f32 %v1890, 1.0
    %v1892 = vrcp.pop %v1891
    %v1893 = vmul.f32 1.0, %v1892
    %v1895 = vrot.slane %v1819, 7
    %v1897 = vmul.f32 %v1886, %v1895
    %v1898 = vmul.f32 %v1886, %v1887
    %1900 = vrot.lane.b32.xlu0 %v1898, 64
    %v1901 = vpop.permute.xlu0 %1900
    %v1903 = vadd.f32 %v1897, %v1901
    %v1904 = vtanh.pop %v1903
    %v1905 = vmul.f32 %v1893, %v1904
    %v1906 = vpack.c.bf16 %v1905, %v1905
    %v1908 = vrot.slane %v1906, 2
    %1909 = vrot.lane.b32.xlu0 %v1908, 64
    %v1910 = vpop.permute.xlu0 %1909
    %v1912 = vsel %vm630, %v1910, 0
    %1914 = vmatprep.subr.bf16.mxu0 0
    %1915 = vmatpush1.bf16.msra.mxu0 0
    %1916 = vmatprep.subr.bf16.mxu0 0
    %1917 = vmatpush1.bf16.msra.mxu0 0
    %1918 = vmatprep.subr.bf16.mxu0 0
    %1919 = vmatpush1.bf16.msra.mxu0 0
    %1920 = vmatprep.subr.bf16.mxu0 0
    %1921 = vmatpush1.bf16.msra.mxu0 0
    %1922 = vmatprep.subr.bf16.mxu0 %v1502
    %1923 = vmatpush1.bf16.msra.mxu0 %v1501
    %1924 = vmatprep.subr.bf16.mxu0 %v1500
    %1925 = vmatpush1.bf16.msra.mxu0 %v1499
    %1926 = vmatprep.subr.bf16.mxu0 %v1498
    %1927 = vmatpush1.bf16.msra.mxu0 %v1497
    %1928 = vmatprep.subr.bf16.mxu0 %v1496
    %1929 = vmatpush1.bf16.msra.mxu0 %v1495
    %1930 = vmatprep.subr.bf16.mxu0 0
    %1931 = vmatpush2.bf16.msra.mxu0 0
    %1932 = vmatprep.subr.bf16.mxu0 0
    %1933 = vmatpush2.bf16.msra.mxu0 0
    %1934 = vmatprep.subr.bf16.mxu0 0
    %1935 = vmatpush2.bf16.msra.mxu0 0
    %1936 = vmatprep.subr.bf16.mxu0 0
    %1937 = vmatpush2.bf16.msra.mxu0 0
    %1938 = vmatprep.subr.bf16.mxu0 0
    %1939 = vmatpush2.bf16.msra.mxu0 0
    %1940 = vmatprep.subr.bf16.mxu0 0
    %1941 = vmatpush2.bf16.msra.mxu0 0
    %1942 = vmatprep.subr.bf16.mxu0 0
    %1943 = vmatpush2.bf16.msra.mxu0 0
    %1944 = vmatprep.subr.bf16.mxu0 0
    %1945 = vmatpush2.bf16.msra.mxu0 0
    %1946 = vmatprep.mubr.bf16.mxu0 0
    %1947 = vmatmul.mubr.bf16.gmra.mxu0 %v1912
    %v1948 = vpop.f32.mrf.mxu0
    %v1949 = vadd.f32 0.0, %v1948
    %v1950 = vpop.f32.mrf.mxu0
    %v1951 = vadd.f32 0.0, %v1950
    %v1952 = vpop.f32.mrf.mxu0
    %v1953 = vpop.f32.mrf.mxu0
    %1954 = vdwg.mxu0
    %v1957 = vrot.slane %v1949, 3
    %v1958 = vrot.slane %v1951, 3
    %v1961 = vadd.f32 %v1457, %v1957
    %v1962 = vadd.f32 %v1458, %v1958
    %v1963 = vxor.u32 %v1961, 2147483648
    %v1964 = vmul.f32 %v1963, 1.442695
    %v1965 = vpow.pop %v1964
    %v1966 = vadd.f32 %v1965, 1.0
    %v1967 = vrcp.pop %v1966
    %v1968 = vmul.f32 1.0, %v1967
    %v1969 = vtanh.pop %v1962
    %v1970 = vxor.u32 %v1962, 2147483648
    %v1971 = vmul.f32 %v1970, 1.442695
    %v1972 = vpow.pop %v1971
    %v1973 = vadd.f32 %v1972, 1.0
    %v1974 = vrcp.pop %v1973
    %v1975 = vmul.f32 1.0, %v1974
    %v1977 = vrot.slane %v1903, 7
    %v1979 = vmul.f32 %v1968, %v1977
    %v1980 = vmul.f32 %v1968, %v1969
    %1982 = vrot.lane.b32.xlu0 %v1980, 64
    %v1983 = vpop.permute.xlu0 %1982
    %v1985 = vadd.f32 %v1979, %v1983
    %v1986 = vtanh.pop %v1985
    %v1987 = vmul.f32 %v1975, %v1986
    %v1988 = vpack.c.bf16 %v1987, %v1987
    %v1990 = vshrl.u32 %v1988, 16
    %v1992 = vrot.slane %v1990, 2
    %1993 = vrot.lane.b32.xlu0 %v1992, 64
    %v1994 = vpop.permute.xlu0 %1993
    %v1996 = vsel %vm630, %v1994, 0
    %1998 = vmatprep.subr.bf16.mxu0 0
    %1999 = vmatpush1.bf16.msra.mxu0 0
    %2000 = vmatprep.subr.bf16.mxu0 0
    %2001 = vmatpush1.bf16.msra.mxu0 0
    %2002 = vmatprep.subr.bf16.mxu0 0
    %2003 = vmatpush1.bf16.msra.mxu0 0
    %2004 = vmatprep.subr.bf16.mxu0 0
    %2005 = vmatpush1.bf16.msra.mxu0 0
    %2006 = vmatprep.subr.bf16.mxu0 %v1502
    %2007 = vmatpush1.bf16.msra.mxu0 %v1501
    %2008 = vmatprep.subr.bf16.mxu0 %v1500
    %2009 = vmatpush1.bf16.msra.mxu0 %v1499
    %2010 = vmatprep.subr.bf16.mxu0 %v1498
    %2011 = vmatpush1.bf16.msra.mxu0 %v1497
    %2012 = vmatprep.subr.bf16.mxu0 %v1496
    %2013 = vmatpush1.bf16.msra.mxu0 %v1495
    %2014 = vmatprep.subr.bf16.mxu0 0
    %2015 = vmatpush2.bf16.msra.mxu0 0
    %2016 = vmatprep.subr.bf16.mxu0 0
    %2017 = vmatpush2.bf16.msra.mxu0 0
    %2018 = vmatprep.subr.bf16.mxu0 0
    %2019 = vmatpush2.bf16.msra.mxu0 0
    %2020 = vmatprep.subr.bf16.mxu0 0
    %2021 = vmatpush2.bf16.msra.mxu0 0
    %2022 = vmatprep.subr.bf16.mxu0 0
    %2023 = vmatpush2.bf16.msra.mxu0 0
    %2024 = vmatprep.subr.bf16.mxu0 0
    %2025 = vmatpush2.bf16.msra.mxu0 0
    %2026 = vmatprep.subr.bf16.mxu0 0
    %2027 = vmatpush2.bf16.msra.mxu0 0
    %2028 = vmatprep.subr.bf16.mxu0 0
    %2029 = vmatpush2.bf16.msra.mxu0 0
    %2030 = vmatprep.mubr.bf16.mxu0 0
    %2031 = vmatmul.mubr.bf16.gmra.mxu0 %v1996
    %v2032 = vpop.f32.mrf.mxu0
    %v2033 = vadd.f32 0.0, %v2032
    %v2034 = vpop.f32.mrf.mxu0
    %v2035 = vadd.f32 0.0, %v2034
    %v2036 = vpop.f32.mrf.mxu0
    %v2037 = vpop.f32.mrf.mxu0
    %2038 = vdwg.mxu0
    %v2041 = vrot.slane %v2033, 2
    %v2042 = vrot.slane %v2035, 2
    %v2045 = vadd.f32 %v1463, %v2041
    %v2046 = vadd.f32 %v1464, %v2042
    %v2047 = vxor.u32 %v2045, 2147483648
    %v2048 = vmul.f32 %v2047, 1.442695
    %v2049 = vpow.pop %v2048
    %v2050 = vadd.f32 %v2049, 1.0
    %v2051 = vrcp.pop %v2050
    %v2052 = vmul.f32 1.0, %v2051
    %v2053 = vtanh.pop %v2046
    %v2054 = vxor.u32 %v2046, 2147483648
    %v2055 = vmul.f32 %v2054, 1.442695
    %v2056 = vpow.pop %v2055
    %v2057 = vadd.f32 %v2056, 1.0
    %v2058 = vrcp.pop %v2057
    %v2059 = vmul.f32 1.0, %v2058
    %v2061 = vrot.slane %v1985, 7
    %v2063 = vmul.f32 %v2052, %v2061
    %v2064 = vmul.f32 %v2052, %v2053
    %2066 = vrot.lane.b32.xlu0 %v2064, 64
    %v2067 = vpop.permute.xlu0 %2066
    %v2069 = vadd.f32 %v2063, %v2067
    %v2070 = vtanh.pop %v2069
    %v2071 = vmul.f32 %v2059, %v2070
    %v2072 = vpack.c.bf16 %v2071, %v2071
    %v2074 = vrot.slane %v2072, 3
    %2075 = vrot.lane.b32.xlu0 %v2074, 64
    %v2076 = vpop.permute.xlu0 %2075
    %v2078 = vsel %vm630, %v2076, 0
    %2080 = vmatprep.subr.bf16.mxu0 0
    %2081 = vmatpush1.bf16.msra.mxu0 0
    %2082 = vmatprep.subr.bf16.mxu0 0
    %2083 = vmatpush1.bf16.msra.mxu0 0
    %2084 = vmatprep.subr.bf16.mxu0 0
    %2085 = vmatpush1.bf16.msra.mxu0 0
    %2086 = vmatprep.subr.bf16.mxu0 0
    %2087 = vmatpush1.bf16.msra.mxu0 0
    %2088 = vmatprep.subr.bf16.mxu0 %v1502
    %2089 = vmatpush1.bf16.msra.mxu0 %v1501
    %2090 = vmatprep.subr.bf16.mxu0 %v1500
    %2091 = vmatpush1.bf16.msra.mxu0 %v1499
    %2092 = vmatprep.subr.bf16.mxu0 %v1498
    %2093 = vmatpush1.bf16.msra.mxu0 %v1497
    %2094 = vmatprep.subr.bf16.mxu0 %v1496
    %2095 = vmatpush1.bf16.msra.mxu0 %v1495
    %2096 = vmatprep.subr.bf16.mxu0 0
    %2097 = vmatpush2.bf16.msra.mxu0 0
    %2098 = vmatprep.subr.bf16.mxu0 0
    %2099 = vmatpush2.bf16.msra.mxu0 0
    %2100 = vmatprep.subr.bf16.mxu0 0
    %2101 = vmatpush2.bf16.msra.mxu0 0
    %2102 = vmatprep.subr.bf16.mxu0 0
    %2103 = vmatpush2.bf16.msra.mxu0 0
    %2104 = vmatprep.subr.bf16.mxu0 0
    %2105 = vmatpush2.bf16.msra.mxu0 0
    %2106 = vmatprep.subr.bf16.mxu0 0
    %2107 = vmatpush2.bf16.msra.mxu0 0
    %2108 = vmatprep.subr.bf16.mxu0 0
    %2109 = vmatpush2.bf16.msra.mxu0 0
    %2110 = vmatprep.subr.bf16.mxu0 0
    %2111 = vmatpush2.bf16.msra.mxu0 0
    %2112 = vmatprep.mubr.bf16.mxu0 0
    %2113 = vmatmul.mubr.bf16.gmra.mxu0 %v2078
    %v2114 = vpop.f32.mrf.mxu0
    %v2115 = vadd.f32 0.0, %v2114
    %v2116 = vpop.f32.mrf.mxu0
    %v2117 = vadd.f32 0.0, %v2116
    %v2118 = vpop.f32.mrf.mxu0
    %v2119 = vpop.f32.mrf.mxu0
    %2120 = vdwg.mxu0
    %v2123 = vrot.slane %v2115, 1
    %v2124 = vrot.slane %v2117, 1
    %v2127 = vadd.f32 %v1469, %v2123
    %v2128 = vadd.f32 %v1470, %v2124
    %v2129 = vxor.u32 %v2127, 2147483648
    %v2130 = vmul.f32 %v2129, 1.442695
    %v2131 = vpow.pop %v2130
    %v2132 = vadd.f32 %v2131, 1.0
    %v2133 = vrcp.pop %v2132
    %v2134 = vmul.f32 1.0, %v2133
    %v2135 = vtanh.pop %v2128
    %v2136 = vxor.u32 %v2128, 2147483648
    %v2137 = vmul.f32 %v2136, 1.442695
    %v2138 = vpow.pop %v2137
    %v2139 = vadd.f32 %v2138, 1.0
    %v2140 = vrcp.pop %v2139
    %v2141 = vmul.f32 1.0, %v2140
    %v2143 = vrot.slane %v2069, 7
    %v2145 = vmul.f32 %v2134, %v2143
    %v2146 = vmul.f32 %v2134, %v2135
    %2148 = vrot.lane.b32.xlu0 %v2146, 64
    %v2149 = vpop.permute.xlu0 %2148
    %v2151 = vadd.f32 %v2145, %v2149
    %v2152 = vtanh.pop %v2151
    %v2153 = vmul.f32 %v2141, %v2152
    %v2154 = vsel %vm1277, %v1575, %v1656
    %v2155 = vsel %vm1279, %v2154, %v1739
    %v2156 = vsel %vm1281, %v2155, %v1821
    %v2157 = vsel %vm1283, %v2156, %v1905
    %v2158 = vsel %vm1285, %v2157, %v1987
    %v2159 = vsel %vm475, %v2158, %v2071
    %v2160 = vsel %vm1288, %v2159, %v2153
    %v2162 = vrot.slane %v2153, 7
    %v2165 = vrot.slane %v2071, 5
    %v2168 = vrot.slane %v1987, 3
    %v2171 = vrot.slane %v1905, 1
    %v2174 = vrot.slane %v1821, 7
    %v2177 = vrot.slane %v1739, 5
    %v2180 = vrot.slane %v1656, 3
    %v2183 = vrot.slane %v1575, 1
    %v2185 = vsel %vm1277, %v2162, %v2165
    %v2186 = vsel %vm1279, %v2185, %v2168
    %v2187 = vsel %vm1281, %v2186, %v2171
    %v2188 = vsel %vm1283, %v2187, %v2174
    %v2189 = vsel %vm1285, %v2188, %v2177
    %v2190 = vsel %vm475, %v2189, %v2180
    %v2191 = vsel %vm1288, %v2190, %v2183
    %2193 = vrot.lane.b32.xlu0 %v2160, 64
    %v2194 = vpop.permute.xlu0 %2193
    %2197 = vrot.lane.b32.xlu0 %v2191, 64
    %v2198 = vpop.permute.xlu0 %2197
    %v2200 = vsel %vm1322, %v2194, %v2198
    %v2201 = vpack.c.bf16 %v2200, %v2200
    %v2202 = vld [vmem:[#allocation10] sm:$0xf]
    %v2203 = vld [vmem:[#allocation10 + $0x4] sm:$0xf]
    %v2204 = vld [vmem:[#allocation10 + $0x8] sm:$0xf]
    %v2205 = vld [vmem:[#allocation10 + $0xc] sm:$0xf]
    %v2206 = vld [vmem:[#allocation10 + $0x10] sm:$0xf]
    %v2207 = vld [vmem:[#allocation10 + $0x14] sm:$0xf]
    %v2208 = vld [vmem:[#allocation10 + $0x18] sm:$0xf]
    %v2209 = vld [vmem:[#allocation10 + $0x1c] sm:$0xf]
    %v2218 = vunpack.c.l.b16 %v2202
    %v2219 = vunpack.c.l.b16 %v2203
    %v2220 = vunpack.c.l.b16 %v2204
    %v2221 = vunpack.c.l.b16 %v2205
    %v2222 = vunpack.c.l.b16 %v2206
    %v2223 = vunpack.c.l.b16 %v2207
    %v2224 = vunpack.c.l.b16 %v2208
    %v2225 = vunpack.c.l.b16 %v2209
    %v2226 = vpack.c.b16 %v2219, %v2218
    %v2227 = vpack.c.b16 %v2221, %v2220
    %v2228 = vpack.c.b16 %v2223, %v2222
    %v2229 = vpack.c.b16 %v2225, %v2224
    %v2235 = vsel %vm630, %v2201, 0
    %2237 = vmatprep.subr.bf16.mxu0 0
    %2238 = vmatpush1.bf16.msra.mxu0 0
    %2239 = vmatprep.subr.bf16.mxu0 0
    %2240 = vmatpush1.bf16.msra.mxu0 0
    %2241 = vmatprep.subr.bf16.mxu0 0
    %2242 = vmatpush1.bf16.msra.mxu0 0
    %2243 = vmatprep.subr.bf16.mxu0 0
    %2244 = vmatpush1.bf16.msra.mxu0 0
    %2245 = vmatprep.subr.bf16.mxu0 0
    %2246 = vmatpush1.bf16.msra.mxu0 %v2229
    %2247 = vmatprep.subr.bf16.mxu0 0
    %2248 = vmatpush1.bf16.msra.mxu0 %v2228
    %2249 = vmatprep.subr.bf16.mxu0 0
    %2250 = vmatpush1.bf16.msra.mxu0 %v2227
    %2251 = vmatprep.subr.bf16.mxu0 0
    %2252 = vmatpush1.bf16.msra.mxu0 %v2226
    %2253 = vmatprep.subr.bf16.mxu0 0
    %2254 = vmatpush2.bf16.msra.mxu0 0
    %2255 = vmatprep.subr.bf16.mxu0 0
    %2256 = vmatpush2.bf16.msra.mxu0 0
    %2257 = vmatprep.subr.bf16.mxu0 0
    %2258 = vmatpush2.bf16.msra.mxu0 0
    %2259 = vmatprep.subr.bf16.mxu0 0
    %2260 = vmatpush2.bf16.msra.mxu0 0
    %2261 = vmatprep.subr.bf16.mxu0 0
    %2262 = vmatpush2.bf16.msra.mxu0 0
    %2263 = vmatprep.subr.bf16.mxu0 0
    %2264 = vmatpush2.bf16.msra.mxu0 0
    %2265 = vmatprep.subr.bf16.mxu0 0
    %2266 = vmatpush2.bf16.msra.mxu0 0
    %2267 = vmatprep.subr.bf16.mxu0 0
    %2268 = vmatpush2.bf16.msra.mxu0 0
    %2269 = vmatprep.mubr.bf16.mxu0 0
    %2270 = vmatmul.mubr.bf16.gmra.mxu0 %v2235
    %v2271 = vpop.f32.mrf.mxu0
    %v2272 = vadd.f32 0.0, %v2271
    %v2273 = vpop.f32.mrf.mxu0
    %v2274 = vpop.f32.mrf.mxu0
    %v2275 = vpop.f32.mrf.mxu0
    %2276 = vdwg.mxu0
    %v2277 = vld [vmem:[#allocation11] sm:$0xf]
    %v2278 = vld [vmem:[#allocation11 + $0x4] sm:$0xf]
    %v2279 = vld [vmem:[#allocation11 + $0x8] sm:$0xf]
    %v2280 = vld [vmem:[#allocation11 + $0xc] sm:$0xf]
    %v2281 = vld [vmem:[#allocation11 + $0x10] sm:$0xf]
    %v2282 = vld [vmem:[#allocation11 + $0x14] sm:$0xf]
    %v2283 = vld [vmem:[#allocation11 + $0x18] sm:$0xf]
    %v2284 = vld [vmem:[#allocation11 + $0x1c] sm:$0xf]
    %v2285 = vld [vmem:[#allocation13] sm:$0x1]
    %v2287 = vlaneseq
    %v2288 = vshrl.u32 %v2287, 7
    %v2289 = vsub.s32 0, %v2288
    %v2290 = vrot.slane %v2285, %v2289
    %v2300 = vunpack.c.l.b16 %v2277
    %v2301 = vunpack.c.l.b16 %v2278
    %v2302 = vunpack.c.l.b16 %v2279
    %v2303 = vunpack.c.l.b16 %v2280
    %v2304 = vunpack.c.l.b16 %v2281
    %v2305 = vunpack.c.l.b16 %v2282
    %v2306 = vunpack.c.l.b16 %v2283
    %v2307 = vunpack.c.l.b16 %v2284
    %v2308 = vpack.c.b16 %v2301, %v2300
    %v2309 = vpack.c.b16 %v2303, %v2302
    %v2310 = vpack.c.b16 %v2305, %v2304
    %v2311 = vpack.c.b16 %v2307, %v2306
    %2316 = vmatprep.subr.bf16.mxu0 0
    %2317 = vmatpush1.bf16.msra.mxu0 0
    %2318 = vmatprep.subr.bf16.mxu0 0
    %2319 = vmatpush1.bf16.msra.mxu0 0
    %2320 = vmatprep.subr.bf16.mxu0 0
    %2321 = vmatpush1.bf16.msra.mxu0 0
    %2322 = vmatprep.subr.bf16.mxu0 0
    %2323 = vmatpush1.bf16.msra.mxu0 0
    %2324 = vmatprep.subr.bf16.mxu0 0
    %2325 = vmatpush1.bf16.msra.mxu0 %v2311
    %2326 = vmatprep.subr.bf16.mxu0 0
    %2327 = vmatpush1.bf16.msra.mxu0 %v2310
    %2328 = vmatprep.subr.bf16.mxu0 0
    %2329 = vmatpush1.bf16.msra.mxu0 %v2309
    %2330 = vmatprep.subr.bf16.mxu0 0
    %2331 = vmatpush1.bf16.msra.mxu0 %v2308
    %2332 = vmatprep.subr.bf16.mxu0 0
    %2333 = vmatpush2.bf16.msra.mxu0 0
    %2334 = vmatprep.subr.bf16.mxu0 0
    %2335 = vmatpush2.bf16.msra.mxu0 0
    %2336 = vmatprep.subr.bf16.mxu0 0
    %2337 = vmatpush2.bf16.msra.mxu0 0
    %2338 = vmatprep.subr.bf16.mxu0 0
    %2339 = vmatpush2.bf16.msra.mxu0 0
    %2340 = vmatprep.subr.bf16.mxu0 0
    %2341 = vmatpush2.bf16.msra.mxu0 0
    %2342 = vmatprep.subr.bf16.mxu0 0
    %2343 = vmatpush2.bf16.msra.mxu0 0
    %2344 = vmatprep.subr.bf16.mxu0 0
    %2345 = vmatpush2.bf16.msra.mxu0 0
    %2346 = vmatprep.subr.bf16.mxu0 0
    %2347 = vmatpush2.bf16.msra.mxu0 0
    %2348 = vmatprep.mubr.bf16.mxu0 0
    %2349 = vmatmul.mubr.bf16.gmra.mxu0 %v2235
    %v2350 = vpop.f32.mrf.mxu0
    %v2351 = vadd.f32 %v2290, %v2350
    %v2352 = vpop.f32.mrf.mxu0
    %v2353 = vpop.f32.mrf.mxu0
    %v2354 = vpop.f32.mrf.mxu0
    %2355 = vdwg.mxu0
    %v2356 = vlaneseq
    %v2357 = vshrl.u32 %v2356, 7
    %v2358 = vsub.s32 0, %v2357
    %v2359 = vrot.slane %v2272, %v2358
    %v2360 = vadd.f32 %v2359, %v2351
    %v2361 = vmax.f32 %v2360, 0.0
    %v2362 = vlaneseq
    %v2363 = vshrl.u32 %v2362, 7
    %v2364 = vsub.s32 1, %v2363
    %v2365 = vrot.slane %v2272, %v2364
    %v2366 = vadd.f32 %v2365, %v2351
    %v2367 = vmax.f32 %v2366, 0.0
    %v2368 = vlaneseq
    %v2369 = vshrl.u32 %v2368, 7
    %v2370 = vsub.s32 2, %v2369
    %v2371 = vrot.slane %v2272, %v2370
    %v2372 = vadd.f32 %v2371, %v2351
    %v2373 = vmax.f32 %v2372, 0.0
    %v2374 = vlaneseq
    %v2375 = vshrl.u32 %v2374, 7
    %v2376 = vsub.s32 3, %v2375
    %v2377 = vrot.slane %v2272, %v2376
    %v2378 = vadd.f32 %v2377, %v2351
    %v2379 = vmax.f32 %v2378, 0.0
    %v2380 = vlaneseq
    %v2381 = vshrl.u32 %v2380, 7
    %v2382 = vsub.s32 4, %v2381
    %v2383 = vrot.slane %v2272, %v2382
    %v2384 = vadd.f32 %v2383, %v2351
    %v2385 = vmax.f32 %v2384, 0.0
    %v2386 = vlaneseq
    %v2387 = vshrl.u32 %v2386, 7
    %v2388 = vsub.s32 5, %v2387
    %v2389 = vrot.slane %v2272, %v2388
    %v2390 = vadd.f32 %v2389, %v2351
    %v2391 = vmax.f32 %v2390, 0.0
    %v2392 = vlaneseq
    %v2393 = vshrl.u32 %v2392, 7
    %v2394 = vsub.s32 6, %v2393
    %v2395 = vrot.slane %v2272, %v2394
    %v2396 = vadd.f32 %v2395, %v2351
    %v2397 = vmax.f32 %v2396, 0.0
    %v2398 = vlaneseq
    %v2399 = vshrl.u32 %v2398, 7
    %v2400 = vsub.s32 7, %v2399
    %v2401 = vrot.slane %v2272, %v2400
    %v2402 = vadd.f32 %v2401, %v2351
    %v2403 = vmax.f32 %v2402, 0.0
    %v2404 = vpack.c.bf16 %v2367, %v2361
    %v2405 = vpack.c.bf16 %v2379, %v2373
    %v2406 = vpack.c.bf16 %v2391, %v2385
    %v2407 = vpack.c.bf16 %v2403, %v2397
    %v2408 = vld [vmem:[%s10] sm:$0xf]
    %v2409 = vld [vmem:[%s10 + $0x4] sm:$0xf]
    %v2410 = vld [vmem:[%s10 + $0x8] sm:$0xf]
    %v2411 = vld [vmem:[%s10 + $0xc] sm:$0xf]
    %v2412 = vld [vmem:[%s10 + $0x10] sm:$0xf]
    %v2413 = vld [vmem:[%s10 + $0x14] sm:$0xf]
    %v2414 = vld [vmem:[%s10 + $0x18] sm:$0xf]
    %v2415 = vld [vmem:[%s10 + $0x1c] sm:$0xf]
    %v2416 = vld [vmem:[%s10 + $0x20] sm:$0xf]
    %v2417 = vld [vmem:[%s10 + $0x24] sm:$0xf]
    %v2418 = vld [vmem:[%s10 + $0x28] sm:$0xf]
    %v2419 = vld [vmem:[%s10 + $0x2c] sm:$0xf]
    %v2420 = vld [vmem:[%s10 + $0x30] sm:$0xf]
    %v2421 = vld [vmem:[%s10 + $0x34] sm:$0xf]
    %v2422 = vld [vmem:[%s10 + $0x38] sm:$0xf]
    %v2423 = vld [vmem:[%s10 + $0x3c] sm:$0xf]
    %v2424 = vld [vmem:[#allocation14] sm:$0x1]
    %v2426 = vlaneseq
    %v2427 = vshrl.u32 %v2426, 7
    %v2428 = vsub.s32 0, %v2427
    %v2429 = vrot.slane %v2424, %v2428
    %v2447 = vunpack.c.l.b16 %v2408
    %v2448 = vunpack.c.l.b16 %v2409
    %v2449 = vunpack.c.l.b16 %v2410
    %v2450 = vunpack.c.l.b16 %v2411
    %v2451 = vunpack.c.l.b16 %v2412
    %v2452 = vunpack.c.l.b16 %v2413
    %v2453 = vunpack.c.l.b16 %v2414
    %v2454 = vunpack.c.l.b16 %v2415
    %v2455 = vunpack.c.l.b16 %v2416
    %v2456 = vunpack.c.l.b16 %v2417
    %v2457 = vunpack.c.l.b16 %v2418
    %v2458 = vunpack.c.l.b16 %v2419
    %v2459 = vunpack.c.l.b16 %v2420
    %v2460 = vunpack.c.l.b16 %v2421
    %v2461 = vunpack.c.l.b16 %v2422
    %v2462 = vunpack.c.l.b16 %v2423
    %v2463 = vpack.c.b16 %v2448, %v2447
    %v2464 = vpack.c.b16 %v2450, %v2449
    %v2465 = vpack.c.b16 %v2452, %v2451
    %v2466 = vpack.c.b16 %v2454, %v2453
    %v2467 = vpack.c.b16 %v2456, %v2455
    %v2468 = vpack.c.b16 %v2458, %v2457
    %v2469 = vpack.c.b16 %v2460, %v2459
    %v2470 = vpack.c.b16 %v2462, %v2461
    %2479 = vmatprep.subr.bf16.mxu0 0
    %2480 = vmatpush1.bf16.msra.mxu0 %v2470
    %2481 = vmatprep.subr.bf16.mxu0 0
    %2482 = vmatpush1.bf16.msra.mxu0 %v2469
    %2483 = vmatprep.subr.bf16.mxu0 0
    %2484 = vmatpush1.bf16.msra.mxu0 %v2468
    %2485 = vmatprep.subr.bf16.mxu0 0
    %2486 = vmatpush1.bf16.msra.mxu0 %v2467
    %2487 = vmatprep.subr.bf16.mxu0 0
    %2488 = vmatpush1.bf16.msra.mxu0 %v2466
    %2489 = vmatprep.subr.bf16.mxu0 0
    %2490 = vmatpush1.bf16.msra.mxu0 %v2465
    %2491 = vmatprep.subr.bf16.mxu0 0
    %2492 = vmatpush1.bf16.msra.mxu0 %v2464
    %2493 = vmatprep.subr.bf16.mxu0 0
    %2494 = vmatpush1.bf16.msra.mxu0 %v2463
    %2495 = vmatprep.subr.bf16.mxu0 0
    %2496 = vmatpush2.bf16.msra.mxu0 0
    %2497 = vmatprep.subr.bf16.mxu0 0
    %2498 = vmatpush2.bf16.msra.mxu0 0
    %2499 = vmatprep.subr.bf16.mxu0 0
    %2500 = vmatpush2.bf16.msra.mxu0 0
    %2501 = vmatprep.subr.bf16.mxu0 0
    %2502 = vmatpush2.bf16.msra.mxu0 0
    %2503 = vmatprep.subr.bf16.mxu0 0
    %2504 = vmatpush2.bf16.msra.mxu0 0
    %2505 = vmatprep.subr.bf16.mxu0 0
    %2506 = vmatpush2.bf16.msra.mxu0 0
    %2507 = vmatprep.subr.bf16.mxu0 0
    %2508 = vmatpush2.bf16.msra.mxu0 0
    %2509 = vmatprep.subr.bf16.mxu0 0
    %2510 = vmatpush2.bf16.msra.mxu0 0
    %2511 = vmatprep.mubr.bf16.mxu0 0
    %2512 = vmatmul.mubr.bf16.gmra.mxu0 %v2404
    %v2513 = vpop.f32.mrf.mxu0
    %v2514 = vadd.f32 %v2429, %v2513
    %v2515 = vpop.f32.mrf.mxu0
    %v2516 = vpop.f32.mrf.mxu0
    %v2517 = vadd.f32 %v2429, %v2516
    %v2518 = vpop.f32.mrf.mxu0
    %2519 = vmatprep.mubr.bf16.mxu0 0
    %2520 = vmatmul.mubr.bf16.gmra.mxu0 %v2405
    %v2521 = vpop.f32.mrf.mxu0
    %v2522 = vadd.f32 %v2429, %v2521
    %v2523 = vpop.f32.mrf.mxu0
    %v2524 = vpop.f32.mrf.mxu0
    %v2525 = vadd.f32 %v2429, %v2524
    %v2526 = vpop.f32.mrf.mxu0
    %2527 = vmatprep.mubr.bf16.mxu0 0
    %2528 = vmatmul.mubr.bf16.gmra.mxu0 %v2406
    %v2529 = vpop.f32.mrf.mxu0
    %v2530 = vadd.f32 %v2429, %v2529
    %v2531 = vpop.f32.mrf.mxu0
    %v2532 = vpop.f32.mrf.mxu0
    %v2533 = vadd.f32 %v2429, %v2532
    %v2534 = vpop.f32.mrf.mxu0
    %2535 = vmatprep.mubr.bf16.mxu0 0
    %2536 = vmatmul.mubr.bf16.gmra.mxu0 %v2407
    %v2537 = vpop.f32.mrf.mxu0
    %v2538 = vadd.f32 %v2429, %v2537
    %v2539 = vpop.f32.mrf.mxu0
    %v2540 = vpop.f32.mrf.mxu0
    %v2541 = vadd.f32 %v2429, %v2540
    %v2542 = vpop.f32.mrf.mxu0
    %2543 = vdwg.mxu0
    %v2544 = vmax.f32 %v2514, 0.0
    %v2545 = vmax.f32 %v2517, 0.0
    %v2546 = vmax.f32 %v2522, 0.0
    %v2547 = vmax.f32 %v2525, 0.0
    %v2548 = vmax.f32 %v2530, 0.0
    %v2549 = vmax.f32 %v2533, 0.0
    %v2550 = vmax.f32 %v2538, 0.0
    %v2551 = vmax.f32 %v2541, 0.0
    %v2552 = vld [vmem:[#allocation16] sm:$0x1]
    %v2553 = vld [vmem:[#allocation2] sm:$0x1]
    %2555 = vset.pattern.permute.xlu0 0
    %2556 = vperm.xlu0 %2555, %v2553
    %v2557 = vpop.permute.xlu0 %2556
    %v2559 = vlaneseq
    %v2560 = vshrl.u32 %v2559, 7
    %v2561 = vsub.s32 0, %v2560
    %v2562 = vrot.slane %v2557, %v2561
    %v2564 = vsel %vm630, %v2552, 0
    %v2567 = vsel %vm630, %v2544, 0
    %v2570 = vsel %vm630, %v2545, 0
    %v2573 = vsel %vm630, %v2546, 0
    %v2576 = vsel %vm630, %v2547, 0
    %v2579 = vsel %vm630, %v2548, 0
    %v2582 = vsel %vm630, %v2549, 0
    %v2585 = vsel %vm630, %v2550, 0
    %v2588 = vsel %vm630, %v2551, 0
    %2590 = vmatprep.subr.mxu0 0.0
    %2591 = vmatpush1.xpose.msra.mxu0 0.0
    %2592 = vmatprep.subr.mxu0 0.0
    %2593 = vmatpush1.xpose.msra.mxu0 0.0
    %2594 = vmatprep.subr.mxu0 0.0
    %2595 = vmatpush1.xpose.msra.mxu0 0.0
    %2596 = vmatprep.subr.mxu0 0.0
    %2597 = vmatpush1.xpose.msra.mxu0 0.0
    %2598 = vmatprep.subr.mxu0 0.0
    %2599 = vmatpush1.xpose.msra.mxu0 0.0
    %2600 = vmatprep.subr.mxu0 0.0
    %2601 = vmatpush1.xpose.msra.mxu0 0.0
    %2602 = vmatprep.subr.mxu0 0.0
    %2603 = vmatpush1.xpose.msra.mxu0 0.0
    %2604 = vmatprep.subr.mxu0 0.0
    %2605 = vmatpush1.xpose.msra.mxu0 0.0
    %2606 = vmatprep.subr.mxu0 0.0
    %2607 = vmatpush1.xpose.msra.mxu0 %v2588
    %2608 = vmatprep.subr.mxu0 0.0
    %2609 = vmatpush1.xpose.msra.mxu0 %v2585
    %2610 = vmatprep.subr.mxu0 0.0
    %2611 = vmatpush1.xpose.msra.mxu0 %v2582
    %2612 = vmatprep.subr.mxu0 0.0
    %2613 = vmatpush1.xpose.msra.mxu0 %v2579
    %2614 = vmatprep.subr.mxu0 0.0
    %2615 = vmatpush1.xpose.msra.mxu0 %v2576
    %2616 = vmatprep.subr.mxu0 0.0
    %2617 = vmatpush1.xpose.msra.mxu0 %v2573
    %2618 = vmatprep.subr.mxu0 0.0
    %2619 = vmatpush1.xpose.msra.mxu0 %v2570
    %2620 = vmatprep.subr.mxu0 0.0
    %2621 = vmatpush1.xpose.msra.mxu0 %v2567
    %2622 = vmatprep.subr.mxu0 0.0
    %2623 = vmatpush2.xpose.msra.mxu0 0.0
    %2624 = vmatprep.subr.mxu0 0.0
    %2625 = vmatpush2.xpose.msra.mxu0 0.0
    %2626 = vmatprep.subr.mxu0 0.0
    %2627 = vmatpush2.xpose.msra.mxu0 0.0
    %2628 = vmatprep.subr.mxu0 0.0
    %2629 = vmatpush2.xpose.msra.mxu0 0.0
    %2630 = vmatprep.subr.mxu0 0.0
    %2631 = vmatpush2.xpose.msra.mxu0 0.0
    %2632 = vmatprep.subr.mxu0 0.0
    %2633 = vmatpush2.xpose.msra.mxu0 0.0
    %2634 = vmatprep.subr.mxu0 0.0
    %2635 = vmatpush2.xpose.msra.mxu0 0.0
    %2636 = vmatprep.subr.mxu0 0.0
    %2637 = vmatpush2.xpose.msra.mxu0 0.0
    %2638 = vmatprep.subr.mxu0 0.0
    %2639 = vmatpush2.xpose.msra.mxu0 0.0
    %2640 = vmatprep.subr.mxu0 0.0
    %2641 = vmatpush2.xpose.msra.mxu0 0.0
    %2642 = vmatprep.subr.mxu0 0.0
    %2643 = vmatpush2.xpose.msra.mxu0 0.0
    %2644 = vmatprep.subr.mxu0 0.0
    %2645 = vmatpush2.xpose.msra.mxu0 0.0
    %2646 = vmatprep.subr.mxu0 0.0
    %2647 = vmatpush2.xpose.msra.mxu0 0.0
    %2648 = vmatprep.subr.mxu0 0.0
    %2649 = vmatpush2.xpose.msra.mxu0 0.0
    %2650 = vmatprep.subr.mxu0 0.0
    %2651 = vmatpush2.xpose.msra.mxu0 0.0
    %2652 = vmatprep.subr.mxu0 0.0
    %2653 = vmatpush2.xpose.msra.mxu0 0.0
    %2654 = vmatprep.mubr.f32.mxu0 0.0
    %2655 = vmatmul.mubr.f32.gmra.mxu0 %v2564
    %v2656 = vpop.f32.mrf.mxu0
    %v2657 = vadd.f32 %v2562, %v2656
    %v2658 = vpop.f32.mrf.mxu0
    %2659 = vdwg.mxu0
    %vm2660 = vcmask 516096
    %2661 = vst.msk [vmem:[%s14] sm:$0x1] %vm2660, %v2657
    // Predicated region
    $region94: #{model_forward.1} parent=1 // pred_check
      _
    $region95: #{model_forward.1} parent=1 // pred_check_branch
      %2663 = sbr.rel (0) target = $region97
    $region96: #{model_forward.1} parent=1 // pred_region
      _
    $region97: #{model_forward.1} parent=1 // pred_fallthru
      _
    // Predicated region
    $region98: #{model_forward.1} parent=1 // pred_check
      _
    $region99: #{model_forward.1} parent=1 // pred_check_branch
      %2665 = sbr.rel (0) target = $region101
    $region100: #{model_forward.1} parent=1 // pred_region
      _
    $region101: #{model_forward.1} parent=1 // pred_fallthru
      _
    %2666 = vsyncpa [#allocation4], 1
    %2667 = vsyncpa [#allocation6], 1
    %2668 = vsyncpa [#allocation9], 1
    %2669 = vsyncpa [#allocation12], 1
    %2670 = vsyncpa [#allocation15], 1

</llo_original>
